<compile_context>
chip_gen: v5e
topology: v5e:2x2
jax: 0.10.0
libtpu: 0.0.40
codegen_flags: <defaults>
</compile_context>

<pallas_src>
import math

import jax
import jax.numpy as jnp
from jax.experimental import pallas as pl
from jax.experimental.pallas import tpu as pltpu


def duration_mlp_kernel(x_ref, w0_ref, b0_ref, w1_ref, b1_ref, w2_ref, b2_ref,
                        o_ref):
    # x: (bt, in_size) -- natural layout; contraction happens over in_size of
    # BOTH operands so no wrapper-side transpose (extra HBM pass) is needed.
    x = x_ref[...]
    hp = jax.lax.Precision.HIGHEST

    # hidden_0 + tanh: (hidden, in) x (bt, in) contracted on `in` -> (hidden, bt)
    h0 = jnp.tanh(
        jax.lax.dot_general(w0_ref[...], x, (((1,), (1,)), ((), ())),
                            preferred_element_type=jnp.float32,
                            precision=hp)
        + b0_ref[...])

    # hidden_1 + tanh: (hidden, hidden) @ (hidden, bt) -> (hidden, bt)
    h1 = jnp.tanh(
        jnp.dot(w1_ref[...], h0,
                preferred_element_type=jnp.float32, precision=hp)
        + b1_ref[...])

    # hidden_2 (hidden -> 1): VPU multiply + sublane reduce; w2 is a
    # (hidden, 1) column broadcast across the lane (batch) axis.
    h2 = jnp.sum(h1 * w2_ref[...], axis=0, keepdims=True) + b2_ref[...]

    # Lane-dense (1, bt) store (unmasked vst).
    o_ref[...] = jnp.exp(h2).astype(o_ref.dtype)


def _tensorcores_per_chip():
    """v7x has 2 TensorCores per chip; v5e/v6e have 1."""
    try:
        kind = jax.devices()[0].device_kind.lower()
    except Exception:
        return 1
    if "v7" in kind or "tpu7" in kind:
        return 2
    return 1


def _pick_batch_tile(b_padded, num_cores):
    """Largest lane-dense tile; only ask for multiple steps if the chip has
    multiple TensorCores to shard the parallel grid axis across."""
    candidates = (2048, 1024, 512, 256, 128)
    # Prefer a tile whose step count is a (nonzero) multiple of num_cores so
    # both v7x cores stay busy and balanced; on 1-TC chips this just picks the
    # largest divisor (fewest ~0.35us grid steps).
    for cand in candidates:
        if b_padded % cand == 0 and (b_padded // cand) % num_cores == 0:
            return cand
    for cand in candidates:
        if b_padded % cand == 0:
            return cand
    return 128  # unreachable: b_padded is always a multiple of 128


def duration_model_v2(x, params, *, batch_tile=None):
    """x: [B, input_size] float32. Returns [B, 1] float32 (exp of last linear).

    params layout (TPU-friendly):
      w0: [hidden, input_size]  b0: [hidden, 1]
      w1: [hidden, hidden]      b1: [hidden, 1]
      w2: [hidden, 1]           b2: [1, 1]
    """
    w0, b0, w1, b1, w2, b2 = params
    B, in_size = x.shape
    hidden = w0.shape[0]

    # Pad batch to a multiple of 128 so every block / store is lane-dense.
    b_padded = ((B + 127) // 128) * 128
    if b_padded != B:
        x = jnp.pad(x, ((0, b_padded - B), (0, 0)))

    if batch_tile is None:
        batch_tile = _pick_batch_tile(b_padded, _tensorcores_per_chip())
    assert b_padded % batch_tile == 0 and batch_tile % 128 == 0

    grid = (b_padded // batch_tile,)

    in_specs = [
        pl.BlockSpec((batch_tile, in_size), lambda i: (i, 0)),   # x (natural)
        pl.BlockSpec((hidden, in_size), lambda i: (0, 0)),       # w0
        pl.BlockSpec((hidden, 1), lambda i: (0, 0)),             # b0
        pl.BlockSpec((hidden, hidden), lambda i: (0, 0)),        # w1
        pl.BlockSpec((hidden, 1), lambda i: (0, 0)),             # b1
        pl.BlockSpec((hidden, 1), lambda i: (0, 0)),             # w2 (column)
        pl.BlockSpec((1, 1), lambda i: (0, 0)),                  # b2
    ]
    out_spec = pl.BlockSpec((1, batch_tile), lambda i: (0, i))   # lane-dense

    flops = 2 * b_padded * (hidden * in_size + hidden * hidden + hidden)
    transcendentals = b_padded * (2 * hidden + 1)
    bytes_accessed = (b_padded * (in_size + 1) * 4
                      + 4 * (hidden * in_size + hidden * hidden
                             + 3 * hidden + 1))

    out = pl.pallas_call(
        duration_mlp_kernel,
        out_shape=jax.ShapeDtypeStruct((1, b_padded), jnp.float32),
        grid_spec=pltpu.PrefetchScalarGridSpec(
            num_scalar_prefetch=0,
            grid=grid,
            in_specs=in_specs,
            out_specs=out_spec,
        ),
        compiler_params=pltpu.CompilerParams(
            dimension_semantics=("parallel",)),
        cost_estimate=pl.CostEstimate(
            flops=flops,
            transcendentals=transcendentals,
            bytes_accessed=bytes_accessed),
    )(x, w0, b0, w1, b1, w2, b2)

    # Module contract is (B, 1). Consumers that can take a (1, B)/(B,) result
    # should use out[0, :B] directly to skip this lane->sublane relayout.
    return out[0, :B].reshape(B, 1)


def init_params(key, input_size, hidden_size):
    """Deterministic init mimicking nn.Linear's default U(-1/sqrt(fan_in), .)."""
    ks = jax.random.split(key, 6)

    def lin(kw, kb, fan_in, w_shape, b_shape):
        bound = 1.0 / math.sqrt(fan_in)
        w = jax.random.uniform(kw, w_shape, jnp.float32,
                               minval=-bound, maxval=bound)
        b = jax.random.uniform(kb, b_shape, jnp.float32,
                               minval=-bound, maxval=bound)
        return w, b

    # Weights stored [out, in] (PyTorch convention); w2 as a (hidden, 1) column.
    w0, b0 = lin(ks[0], ks[1], input_size,
                 (hidden_size, input_size), (hidden_size, 1))
    w1, b1 = lin(ks[2], ks[3], hidden_size,
                 (hidden_size, hidden_size), (hidden_size, 1))
    w2, b2 = lin(ks[4], ks[5], hidden_size,
                 (hidden_size, 1), (1, 1))
    return (w0, b0, w1, b1, w2, b2)


def reference_forward(x, params):
    w0, b0, w1, b1, w2, b2 = params
    hp = jax.lax.Precision.HIGHEST
    h0 = jnp.tanh(jnp.dot(x, w0.T, precision=hp) + b0.T)     # (B, hidden)
    h1 = jnp.tanh(jnp.dot(h0, w1.T, precision=hp) + b1.T)    # (B, hidden)
    h2 = jnp.dot(h1, w2, precision=hp) + b2                  # (B, 1)
    return jnp.exp(h2)


if __name__ == "__main__":
    key = jax.random.PRNGKey(0)
    k_x1, k_x2, k_p = jax.random.split(key, 3)

    input_size = 16
    hidden_size = 32
    params = init_params(k_p, input_size, hidden_size)

    # Case 1: 128-aligned batch (single big tile on 1-TC chips, 2 tiles on v7x).
    # Case 2: ragged batch exercising the pad-to-128 + slice path.
    for batch, kx in ((512, k_x1), (300, k_x2)):
        x = jax.random.normal(kx, (batch, input_size), jnp.float32)
        out = jax.block_until_ready(duration_model_v2(x, params))
        ref = reference_forward(x, params)
        assert out.shape == (batch, 1)
        assert jnp.allclose(out, ref, rtol=1e-5, atol=1e-5), (
            f"mismatch at B={batch}: max abs err {jnp.max(jnp.abs(out - ref))}")

    print("KERNEL_OK")
</pallas_src>

<mosaic_0001>
module attributes {stable_mosaic.version = 11 : i64} {
  func.func @duration_mlp_kernel(%arg0: i32, %arg1: memref<512x16xf32, #tpu.memory_space<vmem>>, %arg2: memref<32x16xf32, #tpu.memory_space<vmem>>, %arg3: memref<32x1xf32, #tpu.memory_space<vmem>>, %arg4: memref<32x32xf32, #tpu.memory_space<vmem>>, %arg5: memref<32x1xf32, #tpu.memory_space<vmem>>, %arg6: memref<32x1xf32, #tpu.memory_space<vmem>>, %arg7: memref<1x1xf32, #tpu.memory_space<vmem>>, %arg8: memref<1x512xf32, #tpu.memory_space<vmem>>) attributes {dimension_semantics = [#tpu.dimension_semantics<parallel>], iteration_bounds = array<i64: 1>, scalar_prefetch = 0 : i64, scratch_operands = 0 : i64, tpu.core_type = #tpu.core_type<tc>, window_params = [{transform_indices = @transform_0, window_bounds = array<i64: 512, 16>}, {pipeline_mode = #tpu.pipeline_mode<synchronous>, transform_indices = @transform_1, window_bounds = array<i64: 32, 16>}, {pipeline_mode = #tpu.pipeline_mode<synchronous>, transform_indices = @transform_2, window_bounds = array<i64: 32, 1>}, {pipeline_mode = #tpu.pipeline_mode<synchronous>, transform_indices = @transform_3, window_bounds = array<i64: 32, 32>}, {pipeline_mode = #tpu.pipeline_mode<synchronous>, transform_indices = @transform_4, window_bounds = array<i64: 32, 1>}, {pipeline_mode = #tpu.pipeline_mode<synchronous>, transform_indices = @transform_5, window_bounds = array<i64: 32, 1>}, {pipeline_mode = #tpu.pipeline_mode<synchronous>, transform_indices = @transform_6, window_bounds = array<i64: 1, 1>}, {transform_indices = @transform_7, window_bounds = array<i64: 1, 512>}]} {
    %c0 = arith.constant 0 : index
    %c0_0 = arith.constant 0 : index
    %0 = vector.load %arg1[%c0, %c0_0] : memref<512x16xf32, #tpu.memory_space<vmem>>, vector<512x16xf32>
    %c0_1 = arith.constant 0 : index
    %c0_2 = arith.constant 0 : index
    %1 = vector.load %arg2[%c0_1, %c0_2] : memref<32x16xf32, #tpu.memory_space<vmem>>, vector<32x16xf32>
    %cst = arith.constant dense<0.000000e+00> : vector<32x512xf32>
    %2 = tpu.matmul %1, %0, %cst {dimension_numbers = #tpu.dot_dimension_numbers<[1], [1], [0], [0], [0, 0, 1, 0], [], []>, precision = #tpu.contract_precision<fp32>} : vector<32x16xf32>, vector<512x16xf32>, vector<32x512xf32> -> vector<32x512xf32>
    %c0_3 = arith.constant 0 : index
    %c0_4 = arith.constant 0 : index
    %3 = vector.load %arg3[%c0_3, %c0_4] : memref<32x1xf32, #tpu.memory_space<vmem>>, vector<32x1xf32>
    %4 = vector.broadcast %3 : vector<32x1xf32> to vector<32x512xf32>
    %5 = arith.addf %2, %4 : vector<32x512xf32>
    %6 = math.tanh %5 : vector<32x512xf32>
    %c0_5 = arith.constant 0 : index
    %c0_6 = arith.constant 0 : index
    %7 = vector.load %arg4[%c0_5, %c0_6] : memref<32x32xf32, #tpu.memory_space<vmem>>, vector<32x32xf32>
    %cst_7 = arith.constant dense<0.000000e+00> : vector<32x512xf32>
    %8 = tpu.matmul %7, %6, %cst_7 {dimension_numbers = #tpu.dot_dimension_numbers<[1], [0], [0], [1], [0, 0, 1, 1], [], []>, precision = #tpu.contract_precision<fp32>} : vector<32x32xf32>, vector<32x512xf32>, vector<32x512xf32> -> vector<32x512xf32>
    %c0_8 = arith.constant 0 : index
    %c0_9 = arith.constant 0 : index
    %9 = vector.load %arg5[%c0_8, %c0_9] : memref<32x1xf32, #tpu.memory_space<vmem>>, vector<32x1xf32>
    %10 = vector.broadcast %9 : vector<32x1xf32> to vector<32x512xf32>
    %11 = arith.addf %8, %10 : vector<32x512xf32>
    %12 = math.tanh %11 : vector<32x512xf32>
    %c0_10 = arith.constant 0 : index
    %c0_11 = arith.constant 0 : index
    %13 = vector.load %arg6[%c0_10, %c0_11] : memref<32x1xf32, #tpu.memory_space<vmem>>, vector<32x1xf32>
    %14 = vector.broadcast %13 : vector<32x1xf32> to vector<32x512xf32>
    %15 = arith.mulf %12, %14 : vector<32x512xf32>
    %cst_12 = arith.constant dense<0.000000e+00> : vector<512xf32>
    %16 = vector.multi_reduction <add>, %15, %cst_12 [0] : vector<32x512xf32> to vector<512xf32>
    %17 = vector.shape_cast %16 : vector<512xf32> to vector<1x512xf32>
    %c0_13 = arith.constant 0 : index
    %c0_14 = arith.constant 0 : index
    %18 = vector.load %arg7[%c0_13, %c0_14] : memref<1x1xf32, #tpu.memory_space<vmem>>, vector<1x1xf32>
    %19 = vector.broadcast %18 : vector<1x1xf32> to vector<1x512xf32>
    %20 = arith.addf %17, %19 : vector<1x512xf32>
    %21 = math.exp %20 : vector<1x512xf32>
    %c0_15 = arith.constant 0 : index
    %c0_16 = arith.constant 0 : index
    %22 = vector.load %arg8[%c0_15, %c0_16] : memref<1x512xf32, #tpu.memory_space<vmem>>, vector<1x512xf32>
    tpu.vector_store %arg8[%c0_15, %c0_16], %21 {strides = array<i32>} : memref<1x512xf32, #tpu.memory_space<vmem>>, vector<1x512xf32>,
    return
  }
  func.func @transform_0(%arg0: i32) -> (i32, i32) {
    %c0_i32 = arith.constant 0 : i32
    %c0_i32_0 = arith.constant 0 : i32
    return %arg0, %c0_i32 : i32, i32
  }
  func.func @transform_1(%arg0: i32) -> (i32, i32) {
    %c0_i32 = arith.constant 0 : i32
    %c0_i32_0 = arith.constant 0 : i32
    %c0_i32_1 = arith.constant 0 : i32
    return %c0_i32, %c0_i32_0 : i32, i32
  }
  func.func @transform_2(%arg0: i32) -> (i32, i32) {
    %c0_i32 = arith.constant 0 : i32
    %c0_i32_0 = arith.constant 0 : i32
    %c0_i32_1 = arith.constant 0 : i32
    return %c0_i32, %c0_i32_0 : i32, i32
  }
  func.func @transform_3(%arg0: i32) -> (i32, i32) {
    %c0_i32 = arith.constant 0 : i32
    %c0_i32_0 = arith.constant 0 : i32
    %c0_i32_1 = arith.constant 0 : i32
    return %c0_i32, %c0_i32_0 : i32, i32
  }
  func.func @transform_4(%arg0: i32) -> (i32, i32) {
    %c0_i32 = arith.constant 0 : i32
    %c0_i32_0 = arith.constant 0 : i32
    %c0_i32_1 = arith.constant 0 : i32
    return %c0_i32, %c0_i32_0 : i32, i32
  }
  func.func @transform_5(%arg0: i32) -> (i32, i32) {
    %c0_i32 = arith.constant 0 : i32
    %c0_i32_0 = arith.constant 0 : i32
    %c0_i32_1 = arith.constant 0 : i32
    return %c0_i32, %c0_i32_0 : i32, i32
  }
  func.func @transform_6(%arg0: i32) -> (i32, i32) {
    %c0_i32 = arith.constant 0 : i32
    %c0_i32_0 = arith.constant 0 : i32
    %c0_i32_1 = arith.constant 0 : i32
    return %c0_i32, %c0_i32_0 : i32, i32
  }
  func.func @transform_7(%arg0: i32) -> (i32, i32) {
    %c0_i32 = arith.constant 0 : i32
    %c0_i32_0 = arith.constant 0 : i32
    return %c0_i32, %arg0 : i32, i32
  }
}

</mosaic_0001>

<llo_original>
// kernel: tpu_custom_call.1
$region0: #{tpu_custom_call.1}
  #allocation0 [shape = 'u32[]', space=smem, size = 0x4, offset = 0x4, fixed_abs, tag = 'smem constant byte address 0x4 - core index']
  #allocation1 [shape = 'u32[72,128]{1,0:T(1,128)}', space=vmem, size = 0x9000, scoped, tag = 'internal scratch']
  #allocation2 [shape = 'f32[1,1]{1,0:T(1,128)S(1)}', space=vmem, size = 0x200, scoped, tag = 'scoped memory for tpu_custom_call.1']
  %s0 = inlined_call_operand.vmem [shape: f32[512,16], index: 0, kind: input, shape index: {}]
  %s1 = inlined_call_operand.vmem [shape: f32[32,16], index: 1, kind: input, shape index: {}]
  %s2 = inlined_call_operand.vmem [shape: f32[32,1], index: 2, kind: input, shape index: {}]
  %s3 = inlined_call_operand.vmem [shape: f32[32,32], index: 3, kind: input, shape index: {}]
  %s4 = inlined_call_operand.vmem [shape: f32[32,1], index: 4, kind: input, shape index: {}]
  %s5 = inlined_call_operand.vmem [shape: f32[32,1], index: 5, kind: input, shape index: {}]
  %s6 = inlined_call_operand.<no memory space> [shape: f32[1,1], index: 6, kind: input, shape index: {}]
  %s7 = inlined_call_operand.hbm [shape: f32[1,512], index: 7, kind: output, shape index: {}]
  %s8 = sld [smem:[#allocation0]]
  $region38: #{tpu_custom_call.1} parent=0
    _
  %s10 = ssub.s32 1, %s8
  %s11 = scalar_select 0, %s10, %s8
  %v12 = vstv %s6
  %13 = vst [vmem:[#allocation2] sm:$0x1] %v12
  $region1: #{tpu_custom_call.1} parent=0
    #allocation3 [shape = 'u8[2048]{0}', space=vmem, size = 0x800, scoped, tag = 'output window, operand 0, single buffered']
    #allocation4 [shape = 's32[1]{0}', space=sflag, size = 0x4, scoped, tag = 'scoped memory for tpu_custom_call.1']
    %14 = vsyncpa [#allocation4], 0
    // Predicated region
    $region2: #{tpu_custom_call.1} parent=1 // pred_check
      _
    $region3: #{tpu_custom_call.1} parent=1 // pred_check_branch
      %16 = sbr.rel (0) target = $region5
    $region4: #{tpu_custom_call.1} parent=1 // pred_region
      _
    $region5: #{tpu_custom_call.1} parent=1 // pred_fallthru
      _
    // Predicated region
    $region6: #{tpu_custom_call.1} parent=1 // pred_check
      _
    $region7: #{tpu_custom_call.1} parent=1 // pred_check_branch
      %18 = sbr.rel (0) target = $region9
    $region8: #{tpu_custom_call.1} parent=1 // pred_region
      _
    $region9: #{tpu_custom_call.1} parent=1 // pred_fallthru
      _
    // Predicated region
    $region10: #{tpu_custom_call.1} parent=1 // pred_check
      _
    $region11: #{tpu_custom_call.1} parent=1 // pred_check_branch
      %20 = sbr.rel (0) target = $region13
    $region12: #{tpu_custom_call.1} parent=1 // pred_region
      _
    $region13: #{tpu_custom_call.1} parent=1 // pred_fallthru
      _
    // Predicated region
    $region14: #{tpu_custom_call.1} parent=1 // pred_check
      _
    $region15: #{tpu_custom_call.1} parent=1 // pred_check_branch
      %22 = sbr.rel (0) target = $region17
    $region16: #{tpu_custom_call.1} parent=1 // pred_region
      _
    $region17: #{tpu_custom_call.1} parent=1 // pred_fallthru
      _
    // Predicated region
    $region18: #{tpu_custom_call.1} parent=1 // pred_check
      _
    $region19: #{tpu_custom_call.1} parent=1 // pred_check_branch
      %24 = sbr.rel (0) target = $region21
    $region20: #{tpu_custom_call.1} parent=1 // pred_region
      _
    $region21: #{tpu_custom_call.1} parent=1 // pred_fallthru
      _
    // Predicated region
    $region22: #{tpu_custom_call.1} parent=1 // pred_check
      _
    $region23: #{tpu_custom_call.1} parent=1 // pred_check_branch
      %26 = sbr.rel (0) target = $region25
    $region24: #{tpu_custom_call.1} parent=1 // pred_region
      _
    $region25: #{tpu_custom_call.1} parent=1 // pred_fallthru
      _
    // Predicated region
    $region26: #{tpu_custom_call.1} parent=1 // pred_check
      _
    $region27: #{tpu_custom_call.1} parent=1 // pred_check_branch
      %28 = sbr.rel (0) target = $region29
    $region28: #{tpu_custom_call.1} parent=1 // pred_region
      _
    $region29: #{tpu_custom_call.1} parent=1 // pred_fallthru
      _
    %v29 = vld [vmem:[%s0] sm:$0xff]
    %v30 = vld [vmem:[%s0 + $0x8] sm:$0xff]
    %v31 = vld [vmem:[%s0 + $0x10] sm:$0xff]
    %v32 = vld [vmem:[%s0 + $0x18] sm:$0xff]
    %v33 = vld [vmem:[%s0 + $0x20] sm:$0xff]
    %v34 = vld [vmem:[%s0 + $0x28] sm:$0xff]
    %v35 = vld [vmem:[%s0 + $0x30] sm:$0xff]
    %v36 = vld [vmem:[%s0 + $0x38] sm:$0xff]
    %v37 = vld [vmem:[%s0 + $0x40] sm:$0xff]
    %v38 = vld [vmem:[%s0 + $0x48] sm:$0xff]
    %v39 = vld [vmem:[%s0 + $0x50] sm:$0xff]
    %v40 = vld [vmem:[%s0 + $0x58] sm:$0xff]
    %v41 = vld [vmem:[%s0 + $0x60] sm:$0xff]
    %v42 = vld [vmem:[%s0 + $0x68] sm:$0xff]
    %v43 = vld [vmem:[%s0 + $0x70] sm:$0xff]
    %v44 = vld [vmem:[%s0 + $0x78] sm:$0xff]
    %v45 = vld [vmem:[%s0 + $0x80] sm:$0xff]
    %v46 = vld [vmem:[%s0 + $0x88] sm:$0xff]
    %v47 = vld [vmem:[%s0 + $0x90] sm:$0xff]
    %v48 = vld [vmem:[%s0 + $0x98] sm:$0xff]
    %v49 = vld [vmem:[%s0 + $0xa0] sm:$0xff]
    %v50 = vld [vmem:[%s0 + $0xa8] sm:$0xff]
    %v51 = vld [vmem:[%s0 + $0xb0] sm:$0xff]
    %v52 = vld [vmem:[%s0 + $0xb8] sm:$0xff]
    %v53 = vld [vmem:[%s0 + $0xc0] sm:$0xff]
    %v54 = vld [vmem:[%s0 + $0xc8] sm:$0xff]
    %v55 = vld [vmem:[%s0 + $0xd0] sm:$0xff]
    %v56 = vld [vmem:[%s0 + $0xd8] sm:$0xff]
    %v57 = vld [vmem:[%s0 + $0xe0] sm:$0xff]
    %v58 = vld [vmem:[%s0 + $0xe8] sm:$0xff]
    %v59 = vld [vmem:[%s0 + $0xf0] sm:$0xff]
    %v60 = vld [vmem:[%s0 + $0xf8] sm:$0xff]
    %v61 = vld [vmem:[%s0 + $0x100] sm:$0xff]
    %v62 = vld [vmem:[%s0 + $0x108] sm:$0xff]
    %v63 = vld [vmem:[%s0 + $0x110] sm:$0xff]
    %v64 = vld [vmem:[%s0 + $0x118] sm:$0xff]
    %v65 = vld [vmem:[%s0 + $0x120] sm:$0xff]
    %v66 = vld [vmem:[%s0 + $0x128] sm:$0xff]
    %v67 = vld [vmem:[%s0 + $0x130] sm:$0xff]
    %v68 = vld [vmem:[%s0 + $0x138] sm:$0xff]
    %v69 = vld [vmem:[%s0 + $0x140] sm:$0xff]
    %v70 = vld [vmem:[%s0 + $0x148] sm:$0xff]
    %v71 = vld [vmem:[%s0 + $0x150] sm:$0xff]
    %v72 = vld [vmem:[%s0 + $0x158] sm:$0xff]
    %v73 = vld [vmem:[%s0 + $0x160] sm:$0xff]
    %v74 = vld [vmem:[%s0 + $0x168] sm:$0xff]
    %v75 = vld [vmem:[%s0 + $0x170] sm:$0xff]
    %v76 = vld [vmem:[%s0 + $0x178] sm:$0xff]
    %v77 = vld [vmem:[%s0 + $0x180] sm:$0xff]
    %v78 = vld [vmem:[%s0 + $0x188] sm:$0xff]
    %v79 = vld [vmem:[%s0 + $0x190] sm:$0xff]
    %v80 = vld [vmem:[%s0 + $0x198] sm:$0xff]
    %v81 = vld [vmem:[%s0 + $0x1a0] sm:$0xff]
    %v82 = vld [vmem:[%s0 + $0x1a8] sm:$0xff]
    %v83 = vld [vmem:[%s0 + $0x1b0] sm:$0xff]
    %v84 = vld [vmem:[%s0 + $0x1b8] sm:$0xff]
    %v85 = vld [vmem:[%s0 + $0x1c0] sm:$0xff]
    %v86 = vld [vmem:[%s0 + $0x1c8] sm:$0xff]
    %v87 = vld [vmem:[%s0 + $0x1d0] sm:$0xff]
    %v88 = vld [vmem:[%s0 + $0x1d8] sm:$0xff]
    %v89 = vld [vmem:[%s0 + $0x1e0] sm:$0xff]
    %v90 = vld [vmem:[%s0 + $0x1e8] sm:$0xff]
    %v91 = vld [vmem:[%s0 + $0x1f0] sm:$0xff]
    %v92 = vld [vmem:[%s0 + $0x1f8] sm:$0xff]
    %v93 = vld [vmem:[%s1] sm:$0xff]
    %v94 = vld [vmem:[%s1 + $0x8] sm:$0xff]
    %v95 = vld [vmem:[%s1 + $0x10] sm:$0xff]
    %v96 = vld [vmem:[%s1 + $0x18] sm:$0xff]
    %v97 = vld [vmem:[%s2] sm:$0xff]
    %v98 = vld [vmem:[%s2 + $0x8] sm:$0xff]
    %v99 = vld [vmem:[%s2 + $0x10] sm:$0xff]
    %v100 = vld [vmem:[%s2 + $0x18] sm:$0xff]
    %102 = vset.pattern.permute.xlu0 0
    %103 = vperm.xlu0 %102, %v97
    %v104 = vpop.permute.xlu0 %103
    %107 = vset.pattern.permute.xlu0 0
    %108 = vperm.xlu0 %107, %v98
    %v109 = vpop.permute.xlu0 %108
    %112 = vset.pattern.permute.xlu0 0
    %113 = vperm.xlu0 %112, %v99
    %v114 = vpop.permute.xlu0 %113
    %117 = vset.pattern.permute.xlu0 0
    %118 = vperm.xlu0 %117, %v100
    %v119 = vpop.permute.xlu0 %118
    %vm121 = vcmask 130048
    %v123 = vsel %vm121, %v93, 0
    %v126 = vsel %vm121, %v94, 0
    %v129 = vsel %vm121, %v95, 0
    %v132 = vsel %vm121, %v96, 0
    %v135 = vsel %vm121, %v29, 0
    %v138 = vsel %vm121, %v30, 0
    %v141 = vsel %vm121, %v31, 0
    %v144 = vsel %vm121, %v32, 0
    %v147 = vsel %vm121, %v33, 0
    %v150 = vsel %vm121, %v34, 0
    %v153 = vsel %vm121, %v35, 0
    %v156 = vsel %vm121, %v36, 0
    %v159 = vsel %vm121, %v37, 0
    %v162 = vsel %vm121, %v38, 0
    %v165 = vsel %vm121, %v39, 0
    %v168 = vsel %vm121, %v40, 0
    %v171 = vsel %vm121, %v41, 0
    %v174 = vsel %vm121, %v42, 0
    %v177 = vsel %vm121, %v43, 0
    %v180 = vsel %vm121, %v44, 0
    %v183 = vsel %vm121, %v45, 0
    %v186 = vsel %vm121, %v46, 0
    %v189 = vsel %vm121, %v47, 0
    %v192 = vsel %vm121, %v48, 0
    %v195 = vsel %vm121, %v49, 0
    %v198 = vsel %vm121, %v50, 0
    %v201 = vsel %vm121, %v51, 0
    %v204 = vsel %vm121, %v52, 0
    %v207 = vsel %vm121, %v53, 0
    %v210 = vsel %vm121, %v54, 0
    %v213 = vsel %vm121, %v55, 0
    %v216 = vsel %vm121, %v56, 0
    %v219 = vsel %vm121, %v57, 0
    %v222 = vsel %vm121, %v58, 0
    %v225 = vsel %vm121, %v59, 0
    %v228 = vsel %vm121, %v60, 0
    %v231 = vsel %vm121, %v61, 0
    %v234 = vsel %vm121, %v62, 0
    %v237 = vsel %vm121, %v63, 0
    %v240 = vsel %vm121, %v64, 0
    %v243 = vsel %vm121, %v65, 0
    %v246 = vsel %vm121, %v66, 0
    %v249 = vsel %vm121, %v67, 0
    %v252 = vsel %vm121, %v68, 0
    %v255 = vsel %vm121, %v69, 0
    %v258 = vsel %vm121, %v70, 0
    %v261 = vsel %vm121, %v71, 0
    %v264 = vsel %vm121, %v72, 0
    %v267 = vsel %vm121, %v73, 0
    %v270 = vsel %vm121, %v74, 0
    %v273 = vsel %vm121, %v75, 0
    %v276 = vsel %vm121, %v76, 0
    %v279 = vsel %vm121, %v77, 0
    %v282 = vsel %vm121, %v78, 0
    %v285 = vsel %vm121, %v79, 0
    %v288 = vsel %vm121, %v80, 0
    %v291 = vsel %vm121, %v81, 0
    %v294 = vsel %vm121, %v82, 0
    %v297 = vsel %vm121, %v83, 0
    %v300 = vsel %vm121, %v84, 0
    %v303 = vsel %vm121, %v85, 0
    %v306 = vsel %vm121, %v86, 0
    %v309 = vsel %vm121, %v87, 0
    %v312 = vsel %vm121, %v88, 0
    %v315 = vsel %vm121, %v89, 0
    %v318 = vsel %vm121, %v90, 0
    %v321 = vsel %vm121, %v91, 0
    %v324 = vsel %vm121, %v92, 0
    %v326 = vand.u32 %v180, 4294901760
    %327 = vmatpush.xpose.msra.mxu0 %v326
    %v328 = vand.u32 %v177, 4294901760
    %329 = vmatpush.xpose.msra.mxu0 %v328
    %v330 = vand.u32 %v174, 4294901760
    %331 = vmatpush.xpose.msra.mxu0 %v330
    %v332 = vand.u32 %v171, 4294901760
    %333 = vmatpush.xpose.msra.mxu0 %v332
    %v334 = vand.u32 %v168, 4294901760
    %335 = vmatpush.xpose.msra.mxu0 %v334
    %v336 = vand.u32 %v165, 4294901760
    %337 = vmatpush.xpose.msra.mxu0 %v336
    %v338 = vand.u32 %v162, 4294901760
    %339 = vmatpush.xpose.msra.mxu0 %v338
    %v340 = vand.u32 %v159, 4294901760
    %341 = vmatpush.xpose.msra.mxu0 %v340
    %v342 = vand.u32 %v156, 4294901760
    %343 = vmatpush.xpose.msra.mxu0 %v342
    %v344 = vand.u32 %v153, 4294901760
    %345 = vmatpush.xpose.msra.mxu0 %v344
    %v346 = vand.u32 %v150, 4294901760
    %347 = vmatpush.xpose.msra.mxu0 %v346
    %v348 = vand.u32 %v147, 4294901760
    %349 = vmatpush.xpose.msra.mxu0 %v348
    %v350 = vand.u32 %v144, 4294901760
    %351 = vmatpush.xpose.msra.mxu0 %v350
    %v352 = vand.u32 %v141, 4294901760
    %353 = vmatpush.xpose.msra.mxu0 %v352
    %v354 = vand.u32 %v138, 4294901760
    %355 = vmatpush.xpose.msra.mxu0 %v354
    %v356 = vand.u32 %v135, 4294901760
    %357 = vmatpush.xpose.msra.mxu0 %v356
    %v358 = vand.u32 %v123, 4294901760
    %v359 = vsub.f32 %v123, %v358
    %v360 = vand.u32 %v359, 4294901760
    %v361 = vsub.f32 %v359, %v360
    %v362 = vand.u32 %v361, 4294901760
    %363 = vmatmul.f32.gmra.mxu0 %v362
    %v364 = vpop.f32.mrf.mxu0
    %v365 = vadd.f32 %v104, %v364
    %v366 = vand.u32 %v126, 4294901760
    %v367 = vsub.f32 %v126, %v366
    %v368 = vand.u32 %v367, 4294901760
    %v369 = vsub.f32 %v367, %v368
    %v370 = vand.u32 %v369, 4294901760
    %371 = vmatmul.f32.gmra.mxu0 %v370
    %v372 = vpop.f32.mrf.mxu0
    %v373 = vadd.f32 %v109, %v372
    %v374 = vand.u32 %v129, 4294901760
    %v375 = vsub.f32 %v129, %v374
    %v376 = vand.u32 %v375, 4294901760
    %v377 = vsub.f32 %v375, %v376
    %v378 = vand.u32 %v377, 4294901760
    %379 = vmatmul.f32.gmra.mxu0 %v378
    %v380 = vpop.f32.mrf.mxu0
    %v381 = vadd.f32 %v114, %v380
    %v382 = vand.u32 %v132, 4294901760
    %v383 = vsub.f32 %v132, %v382
    %v384 = vand.u32 %v383, 4294901760
    %v385 = vsub.f32 %v383, %v384
    %v386 = vand.u32 %v385, 4294901760
    %387 = vmatmul.f32.gmra.mxu0 %v386
    %v388 = vpop.f32.mrf.mxu0
    %v389 = vadd.f32 %v119, %v388
    %390 = vdwg.mxu0
    %v391 = vand.u32 %v180, 4294901760
    %v392 = vsub.f32 %v180, %v391
    %v393 = vand.u32 %v392, 4294901760
    %v394 = vsub.f32 %v392, %v393
    %v395 = vand.u32 %v394, 4294901760
    %396 = vmatpush.xpose.msra.mxu0 %v395
    %v397 = vand.u32 %v177, 4294901760
    %v398 = vsub.f32 %v177, %v397
    %v399 = vand.u32 %v398, 4294901760
    %v400 = vsub.f32 %v398, %v399
    %v401 = vand.u32 %v400, 4294901760
    %402 = vmatpush.xpose.msra.mxu0 %v401
    %v403 = vand.u32 %v174, 4294901760
    %v404 = vsub.f32 %v174, %v403
    %v405 = vand.u32 %v404, 4294901760
    %v406 = vsub.f32 %v404, %v405
    %v407 = vand.u32 %v406, 4294901760
    %408 = vmatpush.xpose.msra.mxu0 %v407
    %v409 = vand.u32 %v171, 4294901760
    %v410 = vsub.f32 %v171, %v409
    %v411 = vand.u32 %v410, 4294901760
    %v412 = vsub.f32 %v410, %v411
    %v413 = vand.u32 %v412, 4294901760
    %414 = vmatpush.xpose.msra.mxu0 %v413
    %v415 = vand.u32 %v168, 4294901760
    %v416 = vsub.f32 %v168, %v415
    %v417 = vand.u32 %v416, 4294901760
    %v418 = vsub.f32 %v416, %v417
    %v419 = vand.u32 %v418, 4294901760
    %420 = vmatpush.xpose.msra.mxu0 %v419
    %v421 = vand.u32 %v165, 4294901760
    %v422 = vsub.f32 %v165, %v421
    %v423 = vand.u32 %v422, 4294901760
    %v424 = vsub.f32 %v422, %v423
    %v425 = vand.u32 %v424, 4294901760
    %426 = vmatpush.xpose.msra.mxu0 %v425
    %v427 = vand.u32 %v162, 4294901760
    %v428 = vsub.f32 %v162, %v427
    %v429 = vand.u32 %v428, 4294901760
    %v430 = vsub.f32 %v428, %v429
    %v431 = vand.u32 %v430, 4294901760
    %432 = vmatpush.xpose.msra.mxu0 %v431
    %v433 = vand.u32 %v159, 4294901760
    %v434 = vsub.f32 %v159, %v433
    %v435 = vand.u32 %v434, 4294901760
    %v436 = vsub.f32 %v434, %v435
    %v437 = vand.u32 %v436, 4294901760
    %438 = vmatpush.xpose.msra.mxu0 %v437
    %v439 = vand.u32 %v156, 4294901760
    %v440 = vsub.f32 %v156, %v439
    %v441 = vand.u32 %v440, 4294901760
    %v442 = vsub.f32 %v440, %v441
    %v443 = vand.u32 %v442, 4294901760
    %444 = vmatpush.xpose.msra.mxu0 %v443
    %v445 = vand.u32 %v153, 4294901760
    %v446 = vsub.f32 %v153, %v445
    %v447 = vand.u32 %v446, 4294901760
    %v448 = vsub.f32 %v446, %v447
    %v449 = vand.u32 %v448, 4294901760
    %450 = vmatpush.xpose.msra.mxu0 %v449
    %v451 = vand.u32 %v150, 4294901760
    %v452 = vsub.f32 %v150, %v451
    %v453 = vand.u32 %v452, 4294901760
    %v454 = vsub.f32 %v452, %v453
    %v455 = vand.u32 %v454, 4294901760
    %456 = vmatpush.xpose.msra.mxu0 %v455
    %v457 = vand.u32 %v147, 4294901760
    %v458 = vsub.f32 %v147, %v457
    %v459 = vand.u32 %v458, 4294901760
    %v460 = vsub.f32 %v458, %v459
    %v461 = vand.u32 %v460, 4294901760
    %462 = vmatpush.xpose.msra.mxu0 %v461
    %v463 = vand.u32 %v144, 4294901760
    %v464 = vsub.f32 %v144, %v463
    %v465 = vand.u32 %v464, 4294901760
    %v466 = vsub.f32 %v464, %v465
    %v467 = vand.u32 %v466, 4294901760
    %468 = vmatpush.xpose.msra.mxu0 %v467
    %v469 = vand.u32 %v141, 4294901760
    %v470 = vsub.f32 %v141, %v469
    %v471 = vand.u32 %v470, 4294901760
    %v472 = vsub.f32 %v470, %v471
    %v473 = vand.u32 %v472, 4294901760
    %474 = vmatpush.xpose.msra.mxu0 %v473
    %v475 = vand.u32 %v138, 4294901760
    %v476 = vsub.f32 %v138, %v475
    %v477 = vand.u32 %v476, 4294901760
    %v478 = vsub.f32 %v476, %v477
    %v479 = vand.u32 %v478, 4294901760
    %480 = vmatpush.xpose.msra.mxu0 %v479
    %v481 = vand.u32 %v135, 4294901760
    %v482 = vsub.f32 %v135, %v481
    %v483 = vand.u32 %v482, 4294901760
    %v484 = vsub.f32 %v482, %v483
    %v485 = vand.u32 %v484, 4294901760
    %486 = vmatpush.xpose.msra.mxu0 %v485
    %v487 = vand.u32 %v123, 4294901760
    %488 = vmatmul.f32.gmra.mxu0 %v487
    %v489 = vpop.f32.mrf.mxu0
    %v490 = vadd.f32 %v365, %v489
    %v491 = vand.u32 %v126, 4294901760
    %492 = vmatmul.f32.gmra.mxu0 %v491
    %v493 = vpop.f32.mrf.mxu0
    %v494 = vadd.f32 %v373, %v493
    %v495 = vand.u32 %v129, 4294901760
    %496 = vmatmul.f32.gmra.mxu0 %v495
    %v497 = vpop.f32.mrf.mxu0
    %v498 = vadd.f32 %v381, %v497
    %v499 = vand.u32 %v132, 4294901760
    %500 = vmatmul.f32.gmra.mxu0 %v499
    %v501 = vpop.f32.mrf.mxu0
    %v502 = vadd.f32 %v389, %v501
    %503 = vdwg.mxu0
    %v504 = vand.u32 %v180, 4294901760
    %v505 = vsub.f32 %v180, %v504
    %506 = vmatpush.xpose.msra.mxu0 %v505
    %v507 = vand.u32 %v177, 4294901760
    %v508 = vsub.f32 %v177, %v507
    %509 = vmatpush.xpose.msra.mxu0 %v508
    %v510 = vand.u32 %v174, 4294901760
    %v511 = vsub.f32 %v174, %v510
    %512 = vmatpush.xpose.msra.mxu0 %v511
    %v513 = vand.u32 %v171, 4294901760
    %v514 = vsub.f32 %v171, %v513
    %515 = vmatpush.xpose.msra.mxu0 %v514
    %v516 = vand.u32 %v168, 4294901760
    %v517 = vsub.f32 %v168, %v516
    %518 = vmatpush.xpose.msra.mxu0 %v517
    %v519 = vand.u32 %v165, 4294901760
    %v520 = vsub.f32 %v165, %v519
    %521 = vmatpush.xpose.msra.mxu0 %v520
    %v522 = vand.u32 %v162, 4294901760
    %v523 = vsub.f32 %v162, %v522
    %524 = vmatpush.xpose.msra.mxu0 %v523
    %v525 = vand.u32 %v159, 4294901760
    %v526 = vsub.f32 %v159, %v525
    %527 = vmatpush.xpose.msra.mxu0 %v526
    %v528 = vand.u32 %v156, 4294901760
    %v529 = vsub.f32 %v156, %v528
    %530 = vmatpush.xpose.msra.mxu0 %v529
    %v531 = vand.u32 %v153, 4294901760
    %v532 = vsub.f32 %v153, %v531
    %533 = vmatpush.xpose.msra.mxu0 %v532
    %v534 = vand.u32 %v150, 4294901760
    %v535 = vsub.f32 %v150, %v534
    %536 = vmatpush.xpose.msra.mxu0 %v535
    %v537 = vand.u32 %v147, 4294901760
    %v538 = vsub.f32 %v147, %v537
    %539 = vmatpush.xpose.msra.mxu0 %v538
    %v540 = vand.u32 %v144, 4294901760
    %v541 = vsub.f32 %v144, %v540
    %542 = vmatpush.xpose.msra.mxu0 %v541
    %v543 = vand.u32 %v141, 4294901760
    %v544 = vsub.f32 %v141, %v543
    %545 = vmatpush.xpose.msra.mxu0 %v544
    %v546 = vand.u32 %v138, 4294901760
    %v547 = vsub.f32 %v138, %v546
    %548 = vmatpush.xpose.msra.mxu0 %v547
    %v549 = vand.u32 %v135, 4294901760
    %v550 = vsub.f32 %v135, %v549
    %551 = vmatpush.xpose.msra.mxu0 %v550
    %v552 = vand.u32 %v123, 4294901760
    %v553 = vsub.f32 %v123, %v552
    %554 = vmatmul.f32.gmra.mxu0 %v553
    %v555 = vpop.f32.mrf.mxu0
    %v556 = vadd.f32 %v490, %v555
    %v557 = vand.u32 %v126, 4294901760
    %v558 = vsub.f32 %v126, %v557
    %559 = vmatmul.f32.gmra.mxu0 %v558
    %v560 = vpop.f32.mrf.mxu0
    %v561 = vadd.f32 %v494, %v560
    %v562 = vand.u32 %v129, 4294901760
    %v563 = vsub.f32 %v129, %v562
    %564 = vmatmul.f32.gmra.mxu0 %v563
    %v565 = vpop.f32.mrf.mxu0
    %v566 = vadd.f32 %v498, %v565
    %v567 = vand.u32 %v132, 4294901760
    %v568 = vsub.f32 %v132, %v567
    %569 = vmatmul.f32.gmra.mxu0 %v568
    %v570 = vpop.f32.mrf.mxu0
    %v571 = vadd.f32 %v502, %v570
    %572 = vdwg.mxu0
    %v573 = vand.u32 %v180, 4294901760
    %574 = vmatpush.xpose.msra.mxu0 %v573
    %v575 = vand.u32 %v177, 4294901760
    %576 = vmatpush.xpose.msra.mxu0 %v575
    %v577 = vand.u32 %v174, 4294901760
    %578 = vmatpush.xpose.msra.mxu0 %v577
    %v579 = vand.u32 %v171, 4294901760
    %580 = vmatpush.xpose.msra.mxu0 %v579
    %v581 = vand.u32 %v168, 4294901760
    %582 = vmatpush.xpose.msra.mxu0 %v581
    %v583 = vand.u32 %v165, 4294901760
    %584 = vmatpush.xpose.msra.mxu0 %v583
    %v585 = vand.u32 %v162, 4294901760
    %586 = vmatpush.xpose.msra.mxu0 %v585
    %v587 = vand.u32 %v159, 4294901760
    %588 = vmatpush.xpose.msra.mxu0 %v587
    %v589 = vand.u32 %v156, 4294901760
    %590 = vmatpush.xpose.msra.mxu0 %v589
    %v591 = vand.u32 %v153, 4294901760
    %592 = vmatpush.xpose.msra.mxu0 %v591
    %v593 = vand.u32 %v150, 4294901760
    %594 = vmatpush.xpose.msra.mxu0 %v593
    %v595 = vand.u32 %v147, 4294901760
    %596 = vmatpush.xpose.msra.mxu0 %v595
    %v597 = vand.u32 %v144, 4294901760
    %598 = vmatpush.xpose.msra.mxu0 %v597
    %v599 = vand.u32 %v141, 4294901760
    %600 = vmatpush.xpose.msra.mxu0 %v599
    %v601 = vand.u32 %v138, 4294901760
    %602 = vmatpush.xpose.msra.mxu0 %v601
    %v603 = vand.u32 %v135, 4294901760
    %604 = vmatpush.xpose.msra.mxu0 %v603
    %v605 = vand.u32 %v123, 4294901760
    %v606 = vsub.f32 %v123, %v605
    %v607 = vand.u32 %v606, 4294901760
    %608 = vmatmul.f32.gmra.mxu0 %v607
    %v609 = vpop.f32.mrf.mxu0
    %v610 = vadd.f32 %v556, %v609
    %v611 = vand.u32 %v126, 4294901760
    %v612 = vsub.f32 %v126, %v611
    %v613 = vand.u32 %v612, 4294901760
    %614 = vmatmul.f32.gmra.mxu0 %v613
    %v615 = vpop.f32.mrf.mxu0
    %v616 = vadd.f32 %v561, %v615
    %v617 = vand.u32 %v129, 4294901760
    %v618 = vsub.f32 %v129, %v617
    %v619 = vand.u32 %v618, 4294901760
    %620 = vmatmul.f32.gmra.mxu0 %v619
    %v621 = vpop.f32.mrf.mxu0
    %v622 = vadd.f32 %v566, %v621
    %v623 = vand.u32 %v132, 4294901760
    %v624 = vsub.f32 %v132, %v623
    %v625 = vand.u32 %v624, 4294901760
    %626 = vmatmul.f32.gmra.mxu0 %v625
    %v627 = vpop.f32.mrf.mxu0
    %v628 = vadd.f32 %v571, %v627
    %629 = vdwg.mxu0
    %v630 = vand.u32 %v180, 4294901760
    %v631 = vsub.f32 %v180, %v630
    %v632 = vand.u32 %v631, 4294901760
    %633 = vmatpush.xpose.msra.mxu0 %v632
    %v634 = vand.u32 %v177, 4294901760
    %v635 = vsub.f32 %v177, %v634
    %v636 = vand.u32 %v635, 4294901760
    %637 = vmatpush.xpose.msra.mxu0 %v636
    %v638 = vand.u32 %v174, 4294901760
    %v639 = vsub.f32 %v174, %v638
    %v640 = vand.u32 %v639, 4294901760
    %641 = vmatpush.xpose.msra.mxu0 %v640
    %v642 = vand.u32 %v171, 4294901760
    %v643 = vsub.f32 %v171, %v642
    %v644 = vand.u32 %v643, 4294901760
    %645 = vmatpush.xpose.msra.mxu0 %v644
    %v646 = vand.u32 %v168, 4294901760
    %v647 = vsub.f32 %v168, %v646
    %v648 = vand.u32 %v647, 4294901760
    %649 = vmatpush.xpose.msra.mxu0 %v648
    %v650 = vand.u32 %v165, 4294901760
    %v651 = vsub.f32 %v165, %v650
    %v652 = vand.u32 %v651, 4294901760
    %653 = vmatpush.xpose.msra.mxu0 %v652
    %v654 = vand.u32 %v162, 4294901760
    %v655 = vsub.f32 %v162, %v654
    %v656 = vand.u32 %v655, 4294901760
    %657 = vmatpush.xpose.msra.mxu0 %v656
    %v658 = vand.u32 %v159, 4294901760
    %v659 = vsub.f32 %v159, %v658
    %v660 = vand.u32 %v659, 4294901760
    %661 = vmatpush.xpose.msra.mxu0 %v660
    %v662 = vand.u32 %v156, 4294901760
    %v663 = vsub.f32 %v156, %v662
    %v664 = vand.u32 %v663, 4294901760
    %665 = vmatpush.xpose.msra.mxu0 %v664
    %v666 = vand.u32 %v153, 4294901760
    %v667 = vsub.f32 %v153, %v666
    %v668 = vand.u32 %v667, 4294901760
    %669 = vmatpush.xpose.msra.mxu0 %v668
    %v670 = vand.u32 %v150, 4294901760
    %v671 = vsub.f32 %v150, %v670
    %v672 = vand.u32 %v671, 4294901760
    %673 = vmatpush.xpose.msra.mxu0 %v672
    %v674 = vand.u32 %v147, 4294901760
    %v675 = vsub.f32 %v147, %v674
    %v676 = vand.u32 %v675, 4294901760
    %677 = vmatpush.xpose.msra.mxu0 %v676
    %v678 = vand.u32 %v144, 4294901760
    %v679 = vsub.f32 %v144, %v678
    %v680 = vand.u32 %v679, 4294901760
    %681 = vmatpush.xpose.msra.mxu0 %v680
    %v682 = vand.u32 %v141, 4294901760
    %v683 = vsub.f32 %v141, %v682
    %v684 = vand.u32 %v683, 4294901760
    %685 = vmatpush.xpose.msra.mxu0 %v684
    %v686 = vand.u32 %v138, 4294901760
    %v687 = vsub.f32 %v138, %v686
    %v688 = vand.u32 %v687, 4294901760
    %689 = vmatpush.xpose.msra.mxu0 %v688
    %v690 = vand.u32 %v135, 4294901760
    %v691 = vsub.f32 %v135, %v690
    %v692 = vand.u32 %v691, 4294901760
    %693 = vmatpush.xpose.msra.mxu0 %v692
    %v694 = vand.u32 %v123, 4294901760
    %695 = vmatmul.f32.gmra.mxu0 %v694
    %v696 = vpop.f32.mrf.mxu0
    %v697 = vadd.f32 %v610, %v696
    %v698 = vand.u32 %v126, 4294901760
    %699 = vmatmul.f32.gmra.mxu0 %v698
    %v700 = vpop.f32.mrf.mxu0
    %v701 = vadd.f32 %v616, %v700
    %v702 = vand.u32 %v129, 4294901760
    %703 = vmatmul.f32.gmra.mxu0 %v702
    %v704 = vpop.f32.mrf.mxu0
    %v705 = vadd.f32 %v622, %v704
    %v706 = vand.u32 %v132, 4294901760
    %707 = vmatmul.f32.gmra.mxu0 %v706
    %v708 = vpop.f32.mrf.mxu0
    %v709 = vadd.f32 %v628, %v708
    %710 = vdwg.mxu0
    %v711 = vand.u32 %v180, 4294901760
    %712 = vmatpush.xpose.msra.mxu0 %v711
    %v713 = vand.u32 %v177, 4294901760
    %714 = vmatpush.xpose.msra.mxu0 %v713
    %v715 = vand.u32 %v174, 4294901760
    %716 = vmatpush.xpose.msra.mxu0 %v715
    %v717 = vand.u32 %v171, 4294901760
    %718 = vmatpush.xpose.msra.mxu0 %v717
    %v719 = vand.u32 %v168, 4294901760
    %720 = vmatpush.xpose.msra.mxu0 %v719
    %v721 = vand.u32 %v165, 4294901760
    %722 = vmatpush.xpose.msra.mxu0 %v721
    %v723 = vand.u32 %v162, 4294901760
    %724 = vmatpush.xpose.msra.mxu0 %v723
    %v725 = vand.u32 %v159, 4294901760
    %726 = vmatpush.xpose.msra.mxu0 %v725
    %v727 = vand.u32 %v156, 4294901760
    %728 = vmatpush.xpose.msra.mxu0 %v727
    %v729 = vand.u32 %v153, 4294901760
    %730 = vmatpush.xpose.msra.mxu0 %v729
    %v731 = vand.u32 %v150, 4294901760
    %732 = vmatpush.xpose.msra.mxu0 %v731
    %v733 = vand.u32 %v147, 4294901760
    %734 = vmatpush.xpose.msra.mxu0 %v733
    %v735 = vand.u32 %v144, 4294901760
    %736 = vmatpush.xpose.msra.mxu0 %v735
    %v737 = vand.u32 %v141, 4294901760
    %738 = vmatpush.xpose.msra.mxu0 %v737
    %v739 = vand.u32 %v138, 4294901760
    %740 = vmatpush.xpose.msra.mxu0 %v739
    %v741 = vand.u32 %v135, 4294901760
    %742 = vmatpush.xpose.msra.mxu0 %v741
    %v743 = vand.u32 %v123, 4294901760
    %744 = vmatmul.f32.gmra.mxu0 %v743
    %v745 = vpop.f32.mrf.mxu0
    %v746 = vadd.f32 %v697, %v745
    %v747 = vand.u32 %v126, 4294901760
    %748 = vmatmul.f32.gmra.mxu0 %v747
    %v749 = vpop.f32.mrf.mxu0
    %v750 = vadd.f32 %v701, %v749
    %v751 = vand.u32 %v129, 4294901760
    %752 = vmatmul.f32.gmra.mxu0 %v751
    %v753 = vpop.f32.mrf.mxu0
    %v754 = vadd.f32 %v705, %v753
    %v755 = vand.u32 %v132, 4294901760
    %756 = vmatmul.f32.gmra.mxu0 %v755
    %v757 = vpop.f32.mrf.mxu0
    %v758 = vadd.f32 %v709, %v757
    %759 = vdwg.mxu0
    %v760 = vand.u32 %v228, 4294901760
    %761 = vmatpush.xpose.msra.mxu0 %v760
    %v762 = vand.u32 %v225, 4294901760
    %763 = vmatpush.xpose.msra.mxu0 %v762
    %v764 = vand.u32 %v222, 4294901760
    %765 = vmatpush.xpose.msra.mxu0 %v764
    %v766 = vand.u32 %v219, 4294901760
    %767 = vmatpush.xpose.msra.mxu0 %v766
    %v768 = vand.u32 %v216, 4294901760
    %769 = vmatpush.xpose.msra.mxu0 %v768
    %v770 = vand.u32 %v213, 4294901760
    %771 = vmatpush.xpose.msra.mxu0 %v770
    %v772 = vand.u32 %v210, 4294901760
    %773 = vmatpush.xpose.msra.mxu0 %v772
    %v774 = vand.u32 %v207, 4294901760
    %775 = vmatpush.xpose.msra.mxu0 %v774
    %v776 = vand.u32 %v204, 4294901760
    %777 = vmatpush.xpose.msra.mxu0 %v776
    %v778 = vand.u32 %v201, 4294901760
    %779 = vmatpush.xpose.msra.mxu0 %v778
    %v780 = vand.u32 %v198, 4294901760
    %781 = vmatpush.xpose.msra.mxu0 %v780
    %v782 = vand.u32 %v195, 4294901760
    %783 = vmatpush.xpose.msra.mxu0 %v782
    %v784 = vand.u32 %v192, 4294901760
    %785 = vmatpush.xpose.msra.mxu0 %v784
    %v786 = vand.u32 %v189, 4294901760
    %787 = vmatpush.xpose.msra.mxu0 %v786
    %v788 = vand.u32 %v186, 4294901760
    %789 = vmatpush.xpose.msra.mxu0 %v788
    %v790 = vand.u32 %v183, 4294901760
    %791 = vmatpush.xpose.msra.mxu0 %v790
    %v792 = vand.u32 %v123, 4294901760
    %v793 = vsub.f32 %v123, %v792
    %v794 = vand.u32 %v793, 4294901760
    %v795 = vsub.f32 %v793, %v794
    %v796 = vand.u32 %v795, 4294901760
    %797 = vmatmul.f32.gmra.mxu0 %v796
    %v798 = vpop.f32.mrf.mxu0
    %v799 = vadd.f32 %v104, %v798
    %v800 = vand.u32 %v126, 4294901760
    %v801 = vsub.f32 %v126, %v800
    %v802 = vand.u32 %v801, 4294901760
    %v803 = vsub.f32 %v801, %v802
    %v804 = vand.u32 %v803, 4294901760
    %805 = vmatmul.f32.gmra.mxu0 %v804
    %v806 = vpop.f32.mrf.mxu0
    %v807 = vadd.f32 %v109, %v806
    %v808 = vand.u32 %v129, 4294901760
    %v809 = vsub.f32 %v129, %v808
    %v810 = vand.u32 %v809, 4294901760
    %v811 = vsub.f32 %v809, %v810
    %v812 = vand.u32 %v811, 4294901760
    %813 = vmatmul.f32.gmra.mxu0 %v812
    %v814 = vpop.f32.mrf.mxu0
    %v815 = vadd.f32 %v114, %v814
    %v816 = vand.u32 %v132, 4294901760
    %v817 = vsub.f32 %v132, %v816
    %v818 = vand.u32 %v817, 4294901760
    %v819 = vsub.f32 %v817, %v818
    %v820 = vand.u32 %v819, 4294901760
    %821 = vmatmul.f32.gmra.mxu0 %v820
    %v822 = vpop.f32.mrf.mxu0
    %v823 = vadd.f32 %v119, %v822
    %824 = vdwg.mxu0
    %v825 = vand.u32 %v228, 4294901760
    %v826 = vsub.f32 %v228, %v825
    %v827 = vand.u32 %v826, 4294901760
    %v828 = vsub.f32 %v826, %v827
    %v829 = vand.u32 %v828, 4294901760
    %830 = vmatpush.xpose.msra.mxu0 %v829
    %v831 = vand.u32 %v225, 4294901760
    %v832 = vsub.f32 %v225, %v831
    %v833 = vand.u32 %v832, 4294901760
    %v834 = vsub.f32 %v832, %v833
    %v835 = vand.u32 %v834, 4294901760
    %836 = vmatpush.xpose.msra.mxu0 %v835
    %v837 = vand.u32 %v222, 4294901760
    %v838 = vsub.f32 %v222, %v837
    %v839 = vand.u32 %v838, 4294901760
    %v840 = vsub.f32 %v838, %v839
    %v841 = vand.u32 %v840, 4294901760
    %842 = vmatpush.xpose.msra.mxu0 %v841
    %v843 = vand.u32 %v219, 4294901760
    %v844 = vsub.f32 %v219, %v843
    %v845 = vand.u32 %v844, 4294901760
    %v846 = vsub.f32 %v844, %v845
    %v847 = vand.u32 %v846, 4294901760
    %848 = vmatpush.xpose.msra.mxu0 %v847
    %v849 = vand.u32 %v216, 4294901760
    %v850 = vsub.f32 %v216, %v849
    %v851 = vand.u32 %v850, 4294901760
    %v852 = vsub.f32 %v850, %v851
    %v853 = vand.u32 %v852, 4294901760
    %854 = vmatpush.xpose.msra.mxu0 %v853
    %v855 = vand.u32 %v213, 4294901760
    %v856 = vsub.f32 %v213, %v855
    %v857 = vand.u32 %v856, 4294901760
    %v858 = vsub.f32 %v856, %v857
    %v859 = vand.u32 %v858, 4294901760
    %860 = vmatpush.xpose.msra.mxu0 %v859
    %v861 = vand.u32 %v210, 4294901760
    %v862 = vsub.f32 %v210, %v861
    %v863 = vand.u32 %v862, 4294901760
    %v864 = vsub.f32 %v862, %v863
    %v865 = vand.u32 %v864, 4294901760
    %866 = vmatpush.xpose.msra.mxu0 %v865
    %v867 = vand.u32 %v207, 4294901760
    %v868 = vsub.f32 %v207, %v867
    %v869 = vand.u32 %v868, 4294901760
    %v870 = vsub.f32 %v868, %v869
    %v871 = vand.u32 %v870, 4294901760
    %872 = vmatpush.xpose.msra.mxu0 %v871
    %v873 = vand.u32 %v204, 4294901760
    %v874 = vsub.f32 %v204, %v873
    %v875 = vand.u32 %v874, 4294901760
    %v876 = vsub.f32 %v874, %v875
    %v877 = vand.u32 %v876, 4294901760
    %878 = vmatpush.xpose.msra.mxu0 %v877
    %v879 = vand.u32 %v201, 4294901760
    %v880 = vsub.f32 %v201, %v879
    %v881 = vand.u32 %v880, 4294901760
    %v882 = vsub.f32 %v880, %v881
    %v883 = vand.u32 %v882, 4294901760
    %884 = vmatpush.xpose.msra.mxu0 %v883
    %v885 = vand.u32 %v198, 4294901760
    %v886 = vsub.f32 %v198, %v885
    %v887 = vand.u32 %v886, 4294901760
    %v888 = vsub.f32 %v886, %v887
    %v889 = vand.u32 %v888, 4294901760
    %890 = vmatpush.xpose.msra.mxu0 %v889
    %v891 = vand.u32 %v195, 4294901760
    %v892 = vsub.f32 %v195, %v891
    %v893 = vand.u32 %v892, 4294901760
    %v894 = vsub.f32 %v892, %v893
    %v895 = vand.u32 %v894, 4294901760
    %896 = vmatpush.xpose.msra.mxu0 %v895
    %v897 = vand.u32 %v192, 4294901760
    %v898 = vsub.f32 %v192, %v897
    %v899 = vand.u32 %v898, 4294901760
    %v900 = vsub.f32 %v898, %v899
    %v901 = vand.u32 %v900, 4294901760
    %902 = vmatpush.xpose.msra.mxu0 %v901
    %v903 = vand.u32 %v189, 4294901760
    %v904 = vsub.f32 %v189, %v903
    %v905 = vand.u32 %v904, 4294901760
    %v906 = vsub.f32 %v904, %v905
    %v907 = vand.u32 %v906, 4294901760
    %908 = vmatpush.xpose.msra.mxu0 %v907
    %v909 = vand.u32 %v186, 4294901760
    %v910 = vsub.f32 %v186, %v909
    %v911 = vand.u32 %v910, 4294901760
    %v912 = vsub.f32 %v910, %v911
    %v913 = vand.u32 %v912, 4294901760
    %914 = vmatpush.xpose.msra.mxu0 %v913
    %v915 = vand.u32 %v183, 4294901760
    %v916 = vsub.f32 %v183, %v915
    %v917 = vand.u32 %v916, 4294901760
    %v918 = vsub.f32 %v916, %v917
    %v919 = vand.u32 %v918, 4294901760
    %920 = vmatpush.xpose.msra.mxu0 %v919
    %v921 = vand.u32 %v123, 4294901760
    %922 = vmatmul.f32.gmra.mxu0 %v921
    %v923 = vpop.f32.mrf.mxu0
    %v924 = vadd.f32 %v799, %v923
    %v925 = vand.u32 %v126, 4294901760
    %926 = vmatmul.f32.gmra.mxu0 %v925
    %v927 = vpop.f32.mrf.mxu0
    %v928 = vadd.f32 %v807, %v927
    %v929 = vand.u32 %v129, 4294901760
    %930 = vmatmul.f32.gmra.mxu0 %v929
    %v931 = vpop.f32.mrf.mxu0
    %v932 = vadd.f32 %v815, %v931
    %v933 = vand.u32 %v132, 4294901760
    %934 = vmatmul.f32.gmra.mxu0 %v933
    %v935 = vpop.f32.mrf.mxu0
    %v936 = vadd.f32 %v823, %v935
    %937 = vdwg.mxu0
    %v938 = vand.u32 %v228, 4294901760
    %v939 = vsub.f32 %v228, %v938
    %940 = vmatpush.xpose.msra.mxu0 %v939
    %v941 = vand.u32 %v225, 4294901760
    %v942 = vsub.f32 %v225, %v941
    %943 = vmatpush.xpose.msra.mxu0 %v942
    %v944 = vand.u32 %v222, 4294901760
    %v945 = vsub.f32 %v222, %v944
    %946 = vmatpush.xpose.msra.mxu0 %v945
    %v947 = vand.u32 %v219, 4294901760
    %v948 = vsub.f32 %v219, %v947
    %949 = vmatpush.xpose.msra.mxu0 %v948
    %v950 = vand.u32 %v216, 4294901760
    %v951 = vsub.f32 %v216, %v950
    %952 = vmatpush.xpose.msra.mxu0 %v951
    %v953 = vand.u32 %v213, 4294901760
    %v954 = vsub.f32 %v213, %v953
    %955 = vmatpush.xpose.msra.mxu0 %v954
    %v956 = vand.u32 %v210, 4294901760
    %v957 = vsub.f32 %v210, %v956
    %958 = vmatpush.xpose.msra.mxu0 %v957
    %v959 = vand.u32 %v207, 4294901760
    %v960 = vsub.f32 %v207, %v959
    %961 = vmatpush.xpose.msra.mxu0 %v960
    %v962 = vand.u32 %v204, 4294901760
    %v963 = vsub.f32 %v204, %v962
    %964 = vmatpush.xpose.msra.mxu0 %v963
    %v965 = vand.u32 %v201, 4294901760
    %v966 = vsub.f32 %v201, %v965
    %967 = vmatpush.xpose.msra.mxu0 %v966
    %v968 = vand.u32 %v198, 4294901760
    %v969 = vsub.f32 %v198, %v968
    %970 = vmatpush.xpose.msra.mxu0 %v969
    %v971 = vand.u32 %v195, 4294901760
    %v972 = vsub.f32 %v195, %v971
    %973 = vmatpush.xpose.msra.mxu0 %v972
    %v974 = vand.u32 %v192, 4294901760
    %v975 = vsub.f32 %v192, %v974
    %976 = vmatpush.xpose.msra.mxu0 %v975
    %v977 = vand.u32 %v189, 4294901760
    %v978 = vsub.f32 %v189, %v977
    %979 = vmatpush.xpose.msra.mxu0 %v978
    %v980 = vand.u32 %v186, 4294901760
    %v981 = vsub.f32 %v186, %v980
    %982 = vmatpush.xpose.msra.mxu0 %v981
    %v983 = vand.u32 %v183, 4294901760
    %v984 = vsub.f32 %v183, %v983
    %985 = vmatpush.xpose.msra.mxu0 %v984
    %v986 = vand.u32 %v123, 4294901760
    %v987 = vsub.f32 %v123, %v986
    %988 = vmatmul.f32.gmra.mxu0 %v987
    %v989 = vpop.f32.mrf.mxu0
    %v990 = vadd.f32 %v924, %v989
    %v991 = vand.u32 %v126, 4294901760
    %v992 = vsub.f32 %v126, %v991
    %993 = vmatmul.f32.gmra.mxu0 %v992
    %v994 = vpop.f32.mrf.mxu0
    %v995 = vadd.f32 %v928, %v994
    %v996 = vand.u32 %v129, 4294901760
    %v997 = vsub.f32 %v129, %v996
    %998 = vmatmul.f32.gmra.mxu0 %v997
    %v999 = vpop.f32.mrf.mxu0
    %v1000 = vadd.f32 %v932, %v999
    %v1001 = vand.u32 %v132, 4294901760
    %v1002 = vsub.f32 %v132, %v1001
    %1003 = vmatmul.f32.gmra.mxu0 %v1002
    %v1004 = vpop.f32.mrf.mxu0
    %v1005 = vadd.f32 %v936, %v1004
    %1006 = vdwg.mxu0
    %v1007 = vand.u32 %v228, 4294901760
    %1008 = vmatpush.xpose.msra.mxu0 %v1007
    %v1009 = vand.u32 %v225, 4294901760
    %1010 = vmatpush.xpose.msra.mxu0 %v1009
    %v1011 = vand.u32 %v222, 4294901760
    %1012 = vmatpush.xpose.msra.mxu0 %v1011
    %v1013 = vand.u32 %v219, 4294901760
    %1014 = vmatpush.xpose.msra.mxu0 %v1013
    %v1015 = vand.u32 %v216, 4294901760
    %1016 = vmatpush.xpose.msra.mxu0 %v1015
    %v1017 = vand.u32 %v213, 4294901760
    %1018 = vmatpush.xpose.msra.mxu0 %v1017
    %v1019 = vand.u32 %v210, 4294901760
    %1020 = vmatpush.xpose.msra.mxu0 %v1019
    %v1021 = vand.u32 %v207, 4294901760
    %1022 = vmatpush.xpose.msra.mxu0 %v1021
    %v1023 = vand.u32 %v204, 4294901760
    %1024 = vmatpush.xpose.msra.mxu0 %v1023
    %v1025 = vand.u32 %v201, 4294901760
    %1026 = vmatpush.xpose.msra.mxu0 %v1025
    %v1027 = vand.u32 %v198, 4294901760
    %1028 = vmatpush.xpose.msra.mxu0 %v1027
    %v1029 = vand.u32 %v195, 4294901760
    %1030 = vmatpush.xpose.msra.mxu0 %v1029
    %v1031 = vand.u32 %v192, 4294901760
    %1032 = vmatpush.xpose.msra.mxu0 %v1031
    %v1033 = vand.u32 %v189, 4294901760
    %1034 = vmatpush.xpose.msra.mxu0 %v1033
    %v1035 = vand.u32 %v186, 4294901760
    %1036 = vmatpush.xpose.msra.mxu0 %v1035
    %v1037 = vand.u32 %v183, 4294901760
    %1038 = vmatpush.xpose.msra.mxu0 %v1037
    %v1039 = vand.u32 %v123, 4294901760
    %v1040 = vsub.f32 %v123, %v1039
    %v1041 = vand.u32 %v1040, 4294901760
    %1042 = vmatmul.f32.gmra.mxu0 %v1041
    %v1043 = vpop.f32.mrf.mxu0
    %v1044 = vadd.f32 %v990, %v1043
    %v1045 = vand.u32 %v126, 4294901760
    %v1046 = vsub.f32 %v126, %v1045
    %v1047 = vand.u32 %v1046, 4294901760
    %1048 = vmatmul.f32.gmra.mxu0 %v1047
    %v1049 = vpop.f32.mrf.mxu0
    %v1050 = vadd.f32 %v995, %v1049
    %v1051 = vand.u32 %v129, 4294901760
    %v1052 = vsub.f32 %v129, %v1051
    %v1053 = vand.u32 %v1052, 4294901760
    %1054 = vmatmul.f32.gmra.mxu0 %v1053
    %v1055 = vpop.f32.mrf.mxu0
    %v1056 = vadd.f32 %v1000, %v1055
    %v1057 = vand.u32 %v132, 4294901760
    %v1058 = vsub.f32 %v132, %v1057
    %v1059 = vand.u32 %v1058, 4294901760
    %1060 = vmatmul.f32.gmra.mxu0 %v1059
    %v1061 = vpop.f32.mrf.mxu0
    %v1062 = vadd.f32 %v1005, %v1061
    %1063 = vdwg.mxu0
    %v1064 = vand.u32 %v228, 4294901760
    %v1065 = vsub.f32 %v228, %v1064
    %v1066 = vand.u32 %v1065, 4294901760
    %1067 = vmatpush.xpose.msra.mxu0 %v1066
    %v1068 = vand.u32 %v225, 4294901760
    %v1069 = vsub.f32 %v225, %v1068
    %v1070 = vand.u32 %v1069, 4294901760
    %1071 = vmatpush.xpose.msra.mxu0 %v1070
    %v1072 = vand.u32 %v222, 4294901760
    %v1073 = vsub.f32 %v222, %v1072
    %v1074 = vand.u32 %v1073, 4294901760
    %1075 = vmatpush.xpose.msra.mxu0 %v1074
    %v1076 = vand.u32 %v219, 4294901760
    %v1077 = vsub.f32 %v219, %v1076
    %v1078 = vand.u32 %v1077, 4294901760
    %1079 = vmatpush.xpose.msra.mxu0 %v1078
    %v1080 = vand.u32 %v216, 4294901760
    %v1081 = vsub.f32 %v216, %v1080
    %v1082 = vand.u32 %v1081, 4294901760
    %1083 = vmatpush.xpose.msra.mxu0 %v1082
    %v1084 = vand.u32 %v213, 4294901760
    %v1085 = vsub.f32 %v213, %v1084
    %v1086 = vand.u32 %v1085, 4294901760
    %1087 = vmatpush.xpose.msra.mxu0 %v1086
    %v1088 = vand.u32 %v210, 4294901760
    %v1089 = vsub.f32 %v210, %v1088
    %v1090 = vand.u32 %v1089, 4294901760
    %1091 = vmatpush.xpose.msra.mxu0 %v1090
    %v1092 = vand.u32 %v207, 4294901760
    %v1093 = vsub.f32 %v207, %v1092
    %v1094 = vand.u32 %v1093, 4294901760
    %1095 = vmatpush.xpose.msra.mxu0 %v1094
    %v1096 = vand.u32 %v204, 4294901760
    %v1097 = vsub.f32 %v204, %v1096
    %v1098 = vand.u32 %v1097, 4294901760
    %1099 = vmatpush.xpose.msra.mxu0 %v1098
    %v1100 = vand.u32 %v201, 4294901760
    %v1101 = vsub.f32 %v201, %v1100
    %v1102 = vand.u32 %v1101, 4294901760
    %1103 = vmatpush.xpose.msra.mxu0 %v1102
    %v1104 = vand.u32 %v198, 4294901760
    %v1105 = vsub.f32 %v198, %v1104
    %v1106 = vand.u32 %v1105, 4294901760
    %1107 = vmatpush.xpose.msra.mxu0 %v1106
    %v1108 = vand.u32 %v195, 4294901760
    %v1109 = vsub.f32 %v195, %v1108
    %v1110 = vand.u32 %v1109, 4294901760
    %1111 = vmatpush.xpose.msra.mxu0 %v1110
    %v1112 = vand.u32 %v192, 4294901760
    %v1113 = vsub.f32 %v192, %v1112
    %v1114 = vand.u32 %v1113, 4294901760
    %1115 = vmatpush.xpose.msra.mxu0 %v1114
    %v1116 = vand.u32 %v189, 4294901760
    %v1117 = vsub.f32 %v189, %v1116
    %v1118 = vand.u32 %v1117, 4294901760
    %1119 = vmatpush.xpose.msra.mxu0 %v1118
    %v1120 = vand.u32 %v186, 4294901760
    %v1121 = vsub.f32 %v186, %v1120
    %v1122 = vand.u32 %v1121, 4294901760
    %1123 = vmatpush.xpose.msra.mxu0 %v1122
    %v1124 = vand.u32 %v183, 4294901760
    %v1125 = vsub.f32 %v183, %v1124
    %v1126 = vand.u32 %v1125, 4294901760
    %1127 = vmatpush.xpose.msra.mxu0 %v1126
    %v1128 = vand.u32 %v123, 4294901760
    %1129 = vmatmul.f32.gmra.mxu0 %v1128
    %v1130 = vpop.f32.mrf.mxu0
    %v1131 = vadd.f32 %v1044, %v1130
    %v1132 = vand.u32 %v126, 4294901760
    %1133 = vmatmul.f32.gmra.mxu0 %v1132
    %v1134 = vpop.f32.mrf.mxu0
    %v1135 = vadd.f32 %v1050, %v1134
    %v1136 = vand.u32 %v129, 4294901760
    %1137 = vmatmul.f32.gmra.mxu0 %v1136
    %v1138 = vpop.f32.mrf.mxu0
    %v1139 = vadd.f32 %v1056, %v1138
    %v1140 = vand.u32 %v132, 4294901760
    %1141 = vmatmul.f32.gmra.mxu0 %v1140
    %v1142 = vpop.f32.mrf.mxu0
    %v1143 = vadd.f32 %v1062, %v1142
    %1144 = vdwg.mxu0
    %v1145 = vand.u32 %v228, 4294901760
    %1146 = vmatpush.xpose.msra.mxu0 %v1145
    %v1147 = vand.u32 %v225, 4294901760
    %1148 = vmatpush.xpose.msra.mxu0 %v1147
    %v1149 = vand.u32 %v222, 4294901760
    %1150 = vmatpush.xpose.msra.mxu0 %v1149
    %v1151 = vand.u32 %v219, 4294901760
    %1152 = vmatpush.xpose.msra.mxu0 %v1151
    %v1153 = vand.u32 %v216, 4294901760
    %1154 = vmatpush.xpose.msra.mxu0 %v1153
    %v1155 = vand.u32 %v213, 4294901760
    %1156 = vmatpush.xpose.msra.mxu0 %v1155
    %v1157 = vand.u32 %v210, 4294901760
    %1158 = vmatpush.xpose.msra.mxu0 %v1157
    %v1159 = vand.u32 %v207, 4294901760
    %1160 = vmatpush.xpose.msra.mxu0 %v1159
    %v1161 = vand.u32 %v204, 4294901760
    %1162 = vmatpush.xpose.msra.mxu0 %v1161
    %v1163 = vand.u32 %v201, 4294901760
    %1164 = vmatpush.xpose.msra.mxu0 %v1163
    %v1165 = vand.u32 %v198, 4294901760
    %1166 = vmatpush.xpose.msra.mxu0 %v1165
    %v1167 = vand.u32 %v195, 4294901760
    %1168 = vmatpush.xpose.msra.mxu0 %v1167
    %v1169 = vand.u32 %v192, 4294901760
    %1170 = vmatpush.xpose.msra.mxu0 %v1169
    %v1171 = vand.u32 %v189, 4294901760
    %1172 = vmatpush.xpose.msra.mxu0 %v1171
    %v1173 = vand.u32 %v186, 4294901760
    %1174 = vmatpush.xpose.msra.mxu0 %v1173
    %v1175 = vand.u32 %v183, 4294901760
    %1176 = vmatpush.xpose.msra.mxu0 %v1175
    %v1177 = vand.u32 %v123, 4294901760
    %1178 = vmatmul.f32.gmra.mxu0 %v1177
    %v1179 = vpop.f32.mrf.mxu0
    %v1180 = vadd.f32 %v1131, %v1179
    %v1181 = vand.u32 %v126, 4294901760
    %1182 = vmatmul.f32.gmra.mxu0 %v1181
    %v1183 = vpop.f32.mrf.mxu0
    %v1184 = vadd.f32 %v1135, %v1183
    %v1185 = vand.u32 %v129, 4294901760
    %1186 = vmatmul.f32.gmra.mxu0 %v1185
    %v1187 = vpop.f32.mrf.mxu0
    %v1188 = vadd.f32 %v1139, %v1187
    %v1189 = vand.u32 %v132, 4294901760
    %1190 = vmatmul.f32.gmra.mxu0 %v1189
    %v1191 = vpop.f32.mrf.mxu0
    %v1192 = vadd.f32 %v1143, %v1191
    %1193 = vdwg.mxu0
    %v1194 = vand.u32 %v276, 4294901760
    %1195 = vmatpush.xpose.msra.mxu0 %v1194
    %v1196 = vand.u32 %v273, 4294901760
    %1197 = vmatpush.xpose.msra.mxu0 %v1196
    %v1198 = vand.u32 %v270, 4294901760
    %1199 = vmatpush.xpose.msra.mxu0 %v1198
    %v1200 = vand.u32 %v267, 4294901760
    %1201 = vmatpush.xpose.msra.mxu0 %v1200
    %v1202 = vand.u32 %v264, 4294901760
    %1203 = vmatpush.xpose.msra.mxu0 %v1202
    %v1204 = vand.u32 %v261, 4294901760
    %1205 = vmatpush.xpose.msra.mxu0 %v1204
    %v1206 = vand.u32 %v258, 4294901760
    %1207 = vmatpush.xpose.msra.mxu0 %v1206
    %v1208 = vand.u32 %v255, 4294901760
    %1209 = vmatpush.xpose.msra.mxu0 %v1208
    %v1210 = vand.u32 %v252, 4294901760
    %1211 = vmatpush.xpose.msra.mxu0 %v1210
    %v1212 = vand.u32 %v249, 4294901760
    %1213 = vmatpush.xpose.msra.mxu0 %v1212
    %v1214 = vand.u32 %v246, 4294901760
    %1215 = vmatpush.xpose.msra.mxu0 %v1214
    %v1216 = vand.u32 %v243, 4294901760
    %1217 = vmatpush.xpose.msra.mxu0 %v1216
    %v1218 = vand.u32 %v240, 4294901760
    %1219 = vmatpush.xpose.msra.mxu0 %v1218
    %v1220 = vand.u32 %v237, 4294901760
    %1221 = vmatpush.xpose.msra.mxu0 %v1220
    %v1222 = vand.u32 %v234, 4294901760
    %1223 = vmatpush.xpose.msra.mxu0 %v1222
    %v1224 = vand.u32 %v231, 4294901760
    %1225 = vmatpush.xpose.msra.mxu0 %v1224
    %v1226 = vand.u32 %v123, 4294901760
    %v1227 = vsub.f32 %v123, %v1226
    %v1228 = vand.u32 %v1227, 4294901760
    %v1229 = vsub.f32 %v1227, %v1228
    %v1230 = vand.u32 %v1229, 4294901760
    %1231 = vmatmul.f32.gmra.mxu0 %v1230
    %v1232 = vpop.f32.mrf.mxu0
    %v1233 = vadd.f32 %v104, %v1232
    %v1234 = vand.u32 %v126, 4294901760
    %v1235 = vsub.f32 %v126, %v1234
    %v1236 = vand.u32 %v1235, 4294901760
    %v1237 = vsub.f32 %v1235, %v1236
    %v1238 = vand.u32 %v1237, 4294901760
    %1239 = vmatmul.f32.gmra.mxu0 %v1238
    %v1240 = vpop.f32.mrf.mxu0
    %v1241 = vadd.f32 %v109, %v1240
    %v1242 = vand.u32 %v129, 4294901760
    %v1243 = vsub.f32 %v129, %v1242
    %v1244 = vand.u32 %v1243, 4294901760
    %v1245 = vsub.f32 %v1243, %v1244
    %v1246 = vand.u32 %v1245, 4294901760
    %1247 = vmatmul.f32.gmra.mxu0 %v1246
    %v1248 = vpop.f32.mrf.mxu0
    %v1249 = vadd.f32 %v114, %v1248
    %v1250 = vand.u32 %v132, 4294901760
    %v1251 = vsub.f32 %v132, %v1250
    %v1252 = vand.u32 %v1251, 4294901760
    %v1253 = vsub.f32 %v1251, %v1252
    %v1254 = vand.u32 %v1253, 4294901760
    %1255 = vmatmul.f32.gmra.mxu0 %v1254
    %v1256 = vpop.f32.mrf.mxu0
    %v1257 = vadd.f32 %v119, %v1256
    %1258 = vdwg.mxu0
    %v1259 = vand.u32 %v276, 4294901760
    %v1260 = vsub.f32 %v276, %v1259
    %v1261 = vand.u32 %v1260, 4294901760
    %v1262 = vsub.f32 %v1260, %v1261
    %v1263 = vand.u32 %v1262, 4294901760
    %1264 = vmatpush.xpose.msra.mxu0 %v1263
    %v1265 = vand.u32 %v273, 4294901760
    %v1266 = vsub.f32 %v273, %v1265
    %v1267 = vand.u32 %v1266, 4294901760
    %v1268 = vsub.f32 %v1266, %v1267
    %v1269 = vand.u32 %v1268, 4294901760
    %1270 = vmatpush.xpose.msra.mxu0 %v1269
    %v1271 = vand.u32 %v270, 4294901760
    %v1272 = vsub.f32 %v270, %v1271
    %v1273 = vand.u32 %v1272, 4294901760
    %v1274 = vsub.f32 %v1272, %v1273
    %v1275 = vand.u32 %v1274, 4294901760
    %1276 = vmatpush.xpose.msra.mxu0 %v1275
    %v1277 = vand.u32 %v267, 4294901760
    %v1278 = vsub.f32 %v267, %v1277
    %v1279 = vand.u32 %v1278, 4294901760
    %v1280 = vsub.f32 %v1278, %v1279
    %v1281 = vand.u32 %v1280, 4294901760
    %1282 = vmatpush.xpose.msra.mxu0 %v1281
    %v1283 = vand.u32 %v264, 4294901760
    %v1284 = vsub.f32 %v264, %v1283
    %v1285 = vand.u32 %v1284, 4294901760
    %v1286 = vsub.f32 %v1284, %v1285
    %v1287 = vand.u32 %v1286, 4294901760
    %1288 = vmatpush.xpose.msra.mxu0 %v1287
    %v1289 = vand.u32 %v261, 4294901760
    %v1290 = vsub.f32 %v261, %v1289
    %v1291 = vand.u32 %v1290, 4294901760
    %v1292 = vsub.f32 %v1290, %v1291
    %v1293 = vand.u32 %v1292, 4294901760
    %1294 = vmatpush.xpose.msra.mxu0 %v1293
    %v1295 = vand.u32 %v258, 4294901760
    %v1296 = vsub.f32 %v258, %v1295
    %v1297 = vand.u32 %v1296, 4294901760
    %v1298 = vsub.f32 %v1296, %v1297
    %v1299 = vand.u32 %v1298, 4294901760
    %1300 = vmatpush.xpose.msra.mxu0 %v1299
    %v1301 = vand.u32 %v255, 4294901760
    %v1302 = vsub.f32 %v255, %v1301
    %v1303 = vand.u32 %v1302, 4294901760
    %v1304 = vsub.f32 %v1302, %v1303
    %v1305 = vand.u32 %v1304, 4294901760
    %1306 = vmatpush.xpose.msra.mxu0 %v1305
    %v1307 = vand.u32 %v252, 4294901760
    %v1308 = vsub.f32 %v252, %v1307
    %v1309 = vand.u32 %v1308, 4294901760
    %v1310 = vsub.f32 %v1308, %v1309
    %v1311 = vand.u32 %v1310, 4294901760
    %1312 = vmatpush.xpose.msra.mxu0 %v1311
    %v1313 = vand.u32 %v249, 4294901760
    %v1314 = vsub.f32 %v249, %v1313
    %v1315 = vand.u32 %v1314, 4294901760
    %v1316 = vsub.f32 %v1314, %v1315
    %v1317 = vand.u32 %v1316, 4294901760
    %1318 = vmatpush.xpose.msra.mxu0 %v1317
    %v1319 = vand.u32 %v246, 4294901760
    %v1320 = vsub.f32 %v246, %v1319
    %v1321 = vand.u32 %v1320, 4294901760
    %v1322 = vsub.f32 %v1320, %v1321
    %v1323 = vand.u32 %v1322, 4294901760
    %1324 = vmatpush.xpose.msra.mxu0 %v1323
    %v1325 = vand.u32 %v243, 4294901760
    %v1326 = vsub.f32 %v243, %v1325
    %v1327 = vand.u32 %v1326, 4294901760
    %v1328 = vsub.f32 %v1326, %v1327
    %v1329 = vand.u32 %v1328, 4294901760
    %1330 = vmatpush.xpose.msra.mxu0 %v1329
    %v1331 = vand.u32 %v240, 4294901760
    %v1332 = vsub.f32 %v240, %v1331
    %v1333 = vand.u32 %v1332, 4294901760
    %v1334 = vsub.f32 %v1332, %v1333
    %v1335 = vand.u32 %v1334, 4294901760
    %1336 = vmatpush.xpose.msra.mxu0 %v1335
    %v1337 = vand.u32 %v237, 4294901760
    %v1338 = vsub.f32 %v237, %v1337
    %v1339 = vand.u32 %v1338, 4294901760
    %v1340 = vsub.f32 %v1338, %v1339
    %v1341 = vand.u32 %v1340, 4294901760
    %1342 = vmatpush.xpose.msra.mxu0 %v1341
    %v1343 = vand.u32 %v234, 4294901760
    %v1344 = vsub.f32 %v234, %v1343
    %v1345 = vand.u32 %v1344, 4294901760
    %v1346 = vsub.f32 %v1344, %v1345
    %v1347 = vand.u32 %v1346, 4294901760
    %1348 = vmatpush.xpose.msra.mxu0 %v1347
    %v1349 = vand.u32 %v231, 4294901760
    %v1350 = vsub.f32 %v231, %v1349
    %v1351 = vand.u32 %v1350, 4294901760
    %v1352 = vsub.f32 %v1350, %v1351
    %v1353 = vand.u32 %v1352, 4294901760
    %1354 = vmatpush.xpose.msra.mxu0 %v1353
    %v1355 = vand.u32 %v123, 4294901760
    %1356 = vmatmul.f32.gmra.mxu0 %v1355
    %v1357 = vpop.f32.mrf.mxu0
    %v1358 = vadd.f32 %v1233, %v1357
    %v1359 = vand.u32 %v126, 4294901760
    %1360 = vmatmul.f32.gmra.mxu0 %v1359
    %v1361 = vpop.f32.mrf.mxu0
    %v1362 = vadd.f32 %v1241, %v1361
    %v1363 = vand.u32 %v129, 4294901760
    %1364 = vmatmul.f32.gmra.mxu0 %v1363
    %v1365 = vpop.f32.mrf.mxu0
    %v1366 = vadd.f32 %v1249, %v1365
    %v1367 = vand.u32 %v132, 4294901760
    %1368 = vmatmul.f32.gmra.mxu0 %v1367
    %v1369 = vpop.f32.mrf.mxu0
    %v1370 = vadd.f32 %v1257, %v1369
    %1371 = vdwg.mxu0
    %v1372 = vand.u32 %v276, 4294901760
    %v1373 = vsub.f32 %v276, %v1372
    %1374 = vmatpush.xpose.msra.mxu0 %v1373
    %v1375 = vand.u32 %v273, 4294901760
    %v1376 = vsub.f32 %v273, %v1375
    %1377 = vmatpush.xpose.msra.mxu0 %v1376
    %v1378 = vand.u32 %v270, 4294901760
    %v1379 = vsub.f32 %v270, %v1378
    %1380 = vmatpush.xpose.msra.mxu0 %v1379
    %v1381 = vand.u32 %v267, 4294901760
    %v1382 = vsub.f32 %v267, %v1381
    %1383 = vmatpush.xpose.msra.mxu0 %v1382
    %v1384 = vand.u32 %v264, 4294901760
    %v1385 = vsub.f32 %v264, %v1384
    %1386 = vmatpush.xpose.msra.mxu0 %v1385
    %v1387 = vand.u32 %v261, 4294901760
    %v1388 = vsub.f32 %v261, %v1387
    %1389 = vmatpush.xpose.msra.mxu0 %v1388
    %v1390 = vand.u32 %v258, 4294901760
    %v1391 = vsub.f32 %v258, %v1390
    %1392 = vmatpush.xpose.msra.mxu0 %v1391
    %v1393 = vand.u32 %v255, 4294901760
    %v1394 = vsub.f32 %v255, %v1393
    %1395 = vmatpush.xpose.msra.mxu0 %v1394
    %v1396 = vand.u32 %v252, 4294901760
    %v1397 = vsub.f32 %v252, %v1396
    %1398 = vmatpush.xpose.msra.mxu0 %v1397
    %v1399 = vand.u32 %v249, 4294901760
    %v1400 = vsub.f32 %v249, %v1399
    %1401 = vmatpush.xpose.msra.mxu0 %v1400
    %v1402 = vand.u32 %v246, 4294901760
    %v1403 = vsub.f32 %v246, %v1402
    %1404 = vmatpush.xpose.msra.mxu0 %v1403
    %v1405 = vand.u32 %v243, 4294901760
    %v1406 = vsub.f32 %v243, %v1405
    %1407 = vmatpush.xpose.msra.mxu0 %v1406
    %v1408 = vand.u32 %v240, 4294901760
    %v1409 = vsub.f32 %v240, %v1408
    %1410 = vmatpush.xpose.msra.mxu0 %v1409
    %v1411 = vand.u32 %v237, 4294901760
    %v1412 = vsub.f32 %v237, %v1411
    %1413 = vmatpush.xpose.msra.mxu0 %v1412
    %v1414 = vand.u32 %v234, 4294901760
    %v1415 = vsub.f32 %v234, %v1414
    %1416 = vmatpush.xpose.msra.mxu0 %v1415
    %v1417 = vand.u32 %v231, 4294901760
    %v1418 = vsub.f32 %v231, %v1417
    %1419 = vmatpush.xpose.msra.mxu0 %v1418
    %v1420 = vand.u32 %v123, 4294901760
    %v1421 = vsub.f32 %v123, %v1420
    %1422 = vmatmul.f32.gmra.mxu0 %v1421
    %v1423 = vpop.f32.mrf.mxu0
    %v1424 = vadd.f32 %v1358, %v1423
    %v1425 = vand.u32 %v126, 4294901760
    %v1426 = vsub.f32 %v126, %v1425
    %1427 = vmatmul.f32.gmra.mxu0 %v1426
    %v1428 = vpop.f32.mrf.mxu0
    %v1429 = vadd.f32 %v1362, %v1428
    %v1430 = vand.u32 %v129, 4294901760
    %v1431 = vsub.f32 %v129, %v1430
    %1432 = vmatmul.f32.gmra.mxu0 %v1431
    %v1433 = vpop.f32.mrf.mxu0
    %v1434 = vadd.f32 %v1366, %v1433
    %v1435 = vand.u32 %v132, 4294901760
    %v1436 = vsub.f32 %v132, %v1435
    %1437 = vmatmul.f32.gmra.mxu0 %v1436
    %v1438 = vpop.f32.mrf.mxu0
    %v1439 = vadd.f32 %v1370, %v1438
    %1440 = vdwg.mxu0
    %v1441 = vand.u32 %v276, 4294901760
    %1442 = vmatpush.xpose.msra.mxu0 %v1441
    %v1443 = vand.u32 %v273, 4294901760
    %1444 = vmatpush.xpose.msra.mxu0 %v1443
    %v1445 = vand.u32 %v270, 4294901760
    %1446 = vmatpush.xpose.msra.mxu0 %v1445
    %v1447 = vand.u32 %v267, 4294901760
    %1448 = vmatpush.xpose.msra.mxu0 %v1447
    %v1449 = vand.u32 %v264, 4294901760
    %1450 = vmatpush.xpose.msra.mxu0 %v1449
    %v1451 = vand.u32 %v261, 4294901760
    %1452 = vmatpush.xpose.msra.mxu0 %v1451
    %v1453 = vand.u32 %v258, 4294901760
    %1454 = vmatpush.xpose.msra.mxu0 %v1453
    %v1455 = vand.u32 %v255, 4294901760
    %1456 = vmatpush.xpose.msra.mxu0 %v1455
    %v1457 = vand.u32 %v252, 4294901760
    %1458 = vmatpush.xpose.msra.mxu0 %v1457
    %v1459 = vand.u32 %v249, 4294901760
    %1460 = vmatpush.xpose.msra.mxu0 %v1459
    %v1461 = vand.u32 %v246, 4294901760
    %1462 = vmatpush.xpose.msra.mxu0 %v1461
    %v1463 = vand.u32 %v243, 4294901760
    %1464 = vmatpush.xpose.msra.mxu0 %v1463
    %v1465 = vand.u32 %v240, 4294901760
    %1466 = vmatpush.xpose.msra.mxu0 %v1465
    %v1467 = vand.u32 %v237, 4294901760
    %1468 = vmatpush.xpose.msra.mxu0 %v1467
    %v1469 = vand.u32 %v234, 4294901760
    %1470 = vmatpush.xpose.msra.mxu0 %v1469
    %v1471 = vand.u32 %v231, 4294901760
    %1472 = vmatpush.xpose.msra.mxu0 %v1471
    %v1473 = vand.u32 %v123, 4294901760
    %v1474 = vsub.f32 %v123, %v1473
    %v1475 = vand.u32 %v1474, 4294901760
    %1476 = vmatmul.f32.gmra.mxu0 %v1475
    %v1477 = vpop.f32.mrf.mxu0
    %v1478 = vadd.f32 %v1424, %v1477
    %v1479 = vand.u32 %v126, 4294901760
    %v1480 = vsub.f32 %v126, %v1479
    %v1481 = vand.u32 %v1480, 4294901760
    %1482 = vmatmul.f32.gmra.mxu0 %v1481
    %v1483 = vpop.f32.mrf.mxu0
    %v1484 = vadd.f32 %v1429, %v1483
    %v1485 = vand.u32 %v129, 4294901760
    %v1486 = vsub.f32 %v129, %v1485
    %v1487 = vand.u32 %v1486, 4294901760
    %1488 = vmatmul.f32.gmra.mxu0 %v1487
    %v1489 = vpop.f32.mrf.mxu0
    %v1490 = vadd.f32 %v1434, %v1489
    %v1491 = vand.u32 %v132, 4294901760
    %v1492 = vsub.f32 %v132, %v1491
    %v1493 = vand.u32 %v1492, 4294901760
    %1494 = vmatmul.f32.gmra.mxu0 %v1493
    %v1495 = vpop.f32.mrf.mxu0
    %v1496 = vadd.f32 %v1439, %v1495
    %1497 = vdwg.mxu0
    %v1498 = vand.u32 %v276, 4294901760
    %v1499 = vsub.f32 %v276, %v1498
    %v1500 = vand.u32 %v1499, 4294901760
    %1501 = vmatpush.xpose.msra.mxu0 %v1500
    %v1502 = vand.u32 %v273, 4294901760
    %v1503 = vsub.f32 %v273, %v1502
    %v1504 = vand.u32 %v1503, 4294901760
    %1505 = vmatpush.xpose.msra.mxu0 %v1504
    %v1506 = vand.u32 %v270, 4294901760
    %v1507 = vsub.f32 %v270, %v1506
    %v1508 = vand.u32 %v1507, 4294901760
    %1509 = vmatpush.xpose.msra.mxu0 %v1508
    %v1510 = vand.u32 %v267, 4294901760
    %v1511 = vsub.f32 %v267, %v1510
    %v1512 = vand.u32 %v1511, 4294901760
    %1513 = vmatpush.xpose.msra.mxu0 %v1512
    %v1514 = vand.u32 %v264, 4294901760
    %v1515 = vsub.f32 %v264, %v1514
    %v1516 = vand.u32 %v1515, 4294901760
    %1517 = vmatpush.xpose.msra.mxu0 %v1516
    %v1518 = vand.u32 %v261, 4294901760
    %v1519 = vsub.f32 %v261, %v1518
    %v1520 = vand.u32 %v1519, 4294901760
    %1521 = vmatpush.xpose.msra.mxu0 %v1520
    %v1522 = vand.u32 %v258, 4294901760
    %v1523 = vsub.f32 %v258, %v1522
    %v1524 = vand.u32 %v1523, 4294901760
    %1525 = vmatpush.xpose.msra.mxu0 %v1524
    %v1526 = vand.u32 %v255, 4294901760
    %v1527 = vsub.f32 %v255, %v1526
    %v1528 = vand.u32 %v1527, 4294901760
    %1529 = vmatpush.xpose.msra.mxu0 %v1528
    %v1530 = vand.u32 %v252, 4294901760
    %v1531 = vsub.f32 %v252, %v1530
    %v1532 = vand.u32 %v1531, 4294901760
    %1533 = vmatpush.xpose.msra.mxu0 %v1532
    %v1534 = vand.u32 %v249, 4294901760
    %v1535 = vsub.f32 %v249, %v1534
    %v1536 = vand.u32 %v1535, 4294901760
    %1537 = vmatpush.xpose.msra.mxu0 %v1536
    %v1538 = vand.u32 %v246, 4294901760
    %v1539 = vsub.f32 %v246, %v1538
    %v1540 = vand.u32 %v1539, 4294901760
    %1541 = vmatpush.xpose.msra.mxu0 %v1540
    %v1542 = vand.u32 %v243, 4294901760
    %v1543 = vsub.f32 %v243, %v1542
    %v1544 = vand.u32 %v1543, 4294901760
    %1545 = vmatpush.xpose.msra.mxu0 %v1544
    %v1546 = vand.u32 %v240, 4294901760
    %v1547 = vsub.f32 %v240, %v1546
    %v1548 = vand.u32 %v1547, 4294901760
    %1549 = vmatpush.xpose.msra.mxu0 %v1548
    %v1550 = vand.u32 %v237, 4294901760
    %v1551 = vsub.f32 %v237, %v1550
    %v1552 = vand.u32 %v1551, 4294901760
    %1553 = vmatpush.xpose.msra.mxu0 %v1552
    %v1554 = vand.u32 %v234, 4294901760
    %v1555 = vsub.f32 %v234, %v1554
    %v1556 = vand.u32 %v1555, 4294901760
    %1557 = vmatpush.xpose.msra.mxu0 %v1556
    %v1558 = vand.u32 %v231, 4294901760
    %v1559 = vsub.f32 %v231, %v1558
    %v1560 = vand.u32 %v1559, 4294901760
    %1561 = vmatpush.xpose.msra.mxu0 %v1560
    %v1562 = vand.u32 %v123, 4294901760
    %1563 = vmatmul.f32.gmra.mxu0 %v1562
    %v1564 = vpop.f32.mrf.mxu0
    %v1565 = vadd.f32 %v1478, %v1564
    %v1566 = vand.u32 %v126, 4294901760
    %1567 = vmatmul.f32.gmra.mxu0 %v1566
    %v1568 = vpop.f32.mrf.mxu0
    %v1569 = vadd.f32 %v1484, %v1568
    %v1570 = vand.u32 %v129, 4294901760
    %1571 = vmatmul.f32.gmra.mxu0 %v1570
    %v1572 = vpop.f32.mrf.mxu0
    %v1573 = vadd.f32 %v1490, %v1572
    %v1574 = vand.u32 %v132, 4294901760
    %1575 = vmatmul.f32.gmra.mxu0 %v1574
    %v1576 = vpop.f32.mrf.mxu0
    %v1577 = vadd.f32 %v1496, %v1576
    %1578 = vdwg.mxu0
    %v1579 = vand.u32 %v276, 4294901760
    %1580 = vmatpush.xpose.msra.mxu0 %v1579
    %v1581 = vand.u32 %v273, 4294901760
    %1582 = vmatpush.xpose.msra.mxu0 %v1581
    %v1583 = vand.u32 %v270, 4294901760
    %1584 = vmatpush.xpose.msra.mxu0 %v1583
    %v1585 = vand.u32 %v267, 4294901760
    %1586 = vmatpush.xpose.msra.mxu0 %v1585
    %v1587 = vand.u32 %v264, 4294901760
    %1588 = vmatpush.xpose.msra.mxu0 %v1587
    %v1589 = vand.u32 %v261, 4294901760
    %1590 = vmatpush.xpose.msra.mxu0 %v1589
    %v1591 = vand.u32 %v258, 4294901760
    %1592 = vmatpush.xpose.msra.mxu0 %v1591
    %v1593 = vand.u32 %v255, 4294901760
    %1594 = vmatpush.xpose.msra.mxu0 %v1593
    %v1595 = vand.u32 %v252, 4294901760
    %1596 = vmatpush.xpose.msra.mxu0 %v1595
    %v1597 = vand.u32 %v249, 4294901760
    %1598 = vmatpush.xpose.msra.mxu0 %v1597
    %v1599 = vand.u32 %v246, 4294901760
    %1600 = vmatpush.xpose.msra.mxu0 %v1599
    %v1601 = vand.u32 %v243, 4294901760
    %1602 = vmatpush.xpose.msra.mxu0 %v1601
    %v1603 = vand.u32 %v240, 4294901760
    %1604 = vmatpush.xpose.msra.mxu0 %v1603
    %v1605 = vand.u32 %v237, 4294901760
    %1606 = vmatpush.xpose.msra.mxu0 %v1605
    %v1607 = vand.u32 %v234, 4294901760
    %1608 = vmatpush.xpose.msra.mxu0 %v1607
    %v1609 = vand.u32 %v231, 4294901760
    %1610 = vmatpush.xpose.msra.mxu0 %v1609
    %v1611 = vand.u32 %v123, 4294901760
    %1612 = vmatmul.f32.gmra.mxu0 %v1611
    %v1613 = vpop.f32.mrf.mxu0
    %v1614 = vadd.f32 %v1565, %v1613
    %v1615 = vand.u32 %v126, 4294901760
    %1616 = vmatmul.f32.gmra.mxu0 %v1615
    %v1617 = vpop.f32.mrf.mxu0
    %v1618 = vadd.f32 %v1569, %v1617
    %v1619 = vand.u32 %v129, 4294901760
    %1620 = vmatmul.f32.gmra.mxu0 %v1619
    %v1621 = vpop.f32.mrf.mxu0
    %v1622 = vadd.f32 %v1573, %v1621
    %v1623 = vand.u32 %v132, 4294901760
    %1624 = vmatmul.f32.gmra.mxu0 %v1623
    %v1625 = vpop.f32.mrf.mxu0
    %v1626 = vadd.f32 %v1577, %v1625
    %1627 = vdwg.mxu0
    %v1628 = vand.u32 %v324, 4294901760
    %1629 = vmatpush.xpose.msra.mxu0 %v1628
    %v1630 = vand.u32 %v321, 4294901760
    %1631 = vmatpush.xpose.msra.mxu0 %v1630
    %v1632 = vand.u32 %v318, 4294901760
    %1633 = vmatpush.xpose.msra.mxu0 %v1632
    %v1634 = vand.u32 %v315, 4294901760
    %1635 = vmatpush.xpose.msra.mxu0 %v1634
    %v1636 = vand.u32 %v312, 4294901760
    %1637 = vmatpush.xpose.msra.mxu0 %v1636
    %v1638 = vand.u32 %v309, 4294901760
    %1639 = vmatpush.xpose.msra.mxu0 %v1638
    %v1640 = vand.u32 %v306, 4294901760
    %1641 = vmatpush.xpose.msra.mxu0 %v1640
    %v1642 = vand.u32 %v303, 4294901760
    %1643 = vmatpush.xpose.msra.mxu0 %v1642
    %v1644 = vand.u32 %v300, 4294901760
    %1645 = vmatpush.xpose.msra.mxu0 %v1644
    %v1646 = vand.u32 %v297, 4294901760
    %1647 = vmatpush.xpose.msra.mxu0 %v1646
    %v1648 = vand.u32 %v294, 4294901760
    %1649 = vmatpush.xpose.msra.mxu0 %v1648
    %v1650 = vand.u32 %v291, 4294901760
    %1651 = vmatpush.xpose.msra.mxu0 %v1650
    %v1652 = vand.u32 %v288, 4294901760
    %1653 = vmatpush.xpose.msra.mxu0 %v1652
    %v1654 = vand.u32 %v285, 4294901760
    %1655 = vmatpush.xpose.msra.mxu0 %v1654
    %v1656 = vand.u32 %v282, 4294901760
    %1657 = vmatpush.xpose.msra.mxu0 %v1656
    %v1658 = vand.u32 %v279, 4294901760
    %1659 = vmatpush.xpose.msra.mxu0 %v1658
    %v1660 = vand.u32 %v123, 4294901760
    %v1661 = vsub.f32 %v123, %v1660
    %v1662 = vand.u32 %v1661, 4294901760
    %v1663 = vsub.f32 %v1661, %v1662
    %v1664 = vand.u32 %v1663, 4294901760
    %1665 = vmatmul.f32.gmra.mxu0 %v1664
    %v1666 = vpop.f32.mrf.mxu0
    %v1667 = vadd.f32 %v104, %v1666
    %v1668 = vand.u32 %v126, 4294901760
    %v1669 = vsub.f32 %v126, %v1668
    %v1670 = vand.u32 %v1669, 4294901760
    %v1671 = vsub.f32 %v1669, %v1670
    %v1672 = vand.u32 %v1671, 4294901760
    %1673 = vmatmul.f32.gmra.mxu0 %v1672
    %v1674 = vpop.f32.mrf.mxu0
    %v1675 = vadd.f32 %v109, %v1674
    %v1676 = vand.u32 %v129, 4294901760
    %v1677 = vsub.f32 %v129, %v1676
    %v1678 = vand.u32 %v1677, 4294901760
    %v1679 = vsub.f32 %v1677, %v1678
    %v1680 = vand.u32 %v1679, 4294901760
    %1681 = vmatmul.f32.gmra.mxu0 %v1680
    %v1682 = vpop.f32.mrf.mxu0
    %v1683 = vadd.f32 %v114, %v1682
    %v1684 = vand.u32 %v132, 4294901760
    %v1685 = vsub.f32 %v132, %v1684
    %v1686 = vand.u32 %v1685, 4294901760
    %v1687 = vsub.f32 %v1685, %v1686
    %v1688 = vand.u32 %v1687, 4294901760
    %1689 = vmatmul.f32.gmra.mxu0 %v1688
    %v1690 = vpop.f32.mrf.mxu0
    %v1691 = vadd.f32 %v119, %v1690
    %1692 = vdwg.mxu0
    %v1693 = vand.u32 %v324, 4294901760
    %v1694 = vsub.f32 %v324, %v1693
    %v1695 = vand.u32 %v1694, 4294901760
    %v1696 = vsub.f32 %v1694, %v1695
    %v1697 = vand.u32 %v1696, 4294901760
    %1698 = vmatpush.xpose.msra.mxu0 %v1697
    %v1699 = vand.u32 %v321, 4294901760
    %v1700 = vsub.f32 %v321, %v1699
    %v1701 = vand.u32 %v1700, 4294901760
    %v1702 = vsub.f32 %v1700, %v1701
    %v1703 = vand.u32 %v1702, 4294901760
    %1704 = vmatpush.xpose.msra.mxu0 %v1703
    %v1705 = vand.u32 %v318, 4294901760
    %v1706 = vsub.f32 %v318, %v1705
    %v1707 = vand.u32 %v1706, 4294901760
    %v1708 = vsub.f32 %v1706, %v1707
    %v1709 = vand.u32 %v1708, 4294901760
    %1710 = vmatpush.xpose.msra.mxu0 %v1709
    %v1711 = vand.u32 %v315, 4294901760
    %v1712 = vsub.f32 %v315, %v1711
    %v1713 = vand.u32 %v1712, 4294901760
    %v1714 = vsub.f32 %v1712, %v1713
    %v1715 = vand.u32 %v1714, 4294901760
    %1716 = vmatpush.xpose.msra.mxu0 %v1715
    %v1717 = vand.u32 %v312, 4294901760
    %v1718 = vsub.f32 %v312, %v1717
    %v1719 = vand.u32 %v1718, 4294901760
    %v1720 = vsub.f32 %v1718, %v1719
    %v1721 = vand.u32 %v1720, 4294901760
    %1722 = vmatpush.xpose.msra.mxu0 %v1721
    %v1723 = vand.u32 %v309, 4294901760
    %v1724 = vsub.f32 %v309, %v1723
    %v1725 = vand.u32 %v1724, 4294901760
    %v1726 = vsub.f32 %v1724, %v1725
    %v1727 = vand.u32 %v1726, 4294901760
    %1728 = vmatpush.xpose.msra.mxu0 %v1727
    %v1729 = vand.u32 %v306, 4294901760
    %v1730 = vsub.f32 %v306, %v1729
    %v1731 = vand.u32 %v1730, 4294901760
    %v1732 = vsub.f32 %v1730, %v1731
    %v1733 = vand.u32 %v1732, 4294901760
    %1734 = vmatpush.xpose.msra.mxu0 %v1733
    %v1735 = vand.u32 %v303, 4294901760
    %v1736 = vsub.f32 %v303, %v1735
    %v1737 = vand.u32 %v1736, 4294901760
    %v1738 = vsub.f32 %v1736, %v1737
    %v1739 = vand.u32 %v1738, 4294901760
    %1740 = vmatpush.xpose.msra.mxu0 %v1739
    %v1741 = vand.u32 %v300, 4294901760
    %v1742 = vsub.f32 %v300, %v1741
    %v1743 = vand.u32 %v1742, 4294901760
    %v1744 = vsub.f32 %v1742, %v1743
    %v1745 = vand.u32 %v1744, 4294901760
    %1746 = vmatpush.xpose.msra.mxu0 %v1745
    %v1747 = vand.u32 %v297, 4294901760
    %v1748 = vsub.f32 %v297, %v1747
    %v1749 = vand.u32 %v1748, 4294901760
    %v1750 = vsub.f32 %v1748, %v1749
    %v1751 = vand.u32 %v1750, 4294901760
    %1752 = vmatpush.xpose.msra.mxu0 %v1751
    %v1753 = vand.u32 %v294, 4294901760
    %v1754 = vsub.f32 %v294, %v1753
    %v1755 = vand.u32 %v1754, 4294901760
    %v1756 = vsub.f32 %v1754, %v1755
    %v1757 = vand.u32 %v1756, 4294901760
    %1758 = vmatpush.xpose.msra.mxu0 %v1757
    %v1759 = vand.u32 %v291, 4294901760
    %v1760 = vsub.f32 %v291, %v1759
    %v1761 = vand.u32 %v1760, 4294901760
    %v1762 = vsub.f32 %v1760, %v1761
    %v1763 = vand.u32 %v1762, 4294901760
    %1764 = vmatpush.xpose.msra.mxu0 %v1763
    %v1765 = vand.u32 %v288, 4294901760
    %v1766 = vsub.f32 %v288, %v1765
    %v1767 = vand.u32 %v1766, 4294901760
    %v1768 = vsub.f32 %v1766, %v1767
    %v1769 = vand.u32 %v1768, 4294901760
    %1770 = vmatpush.xpose.msra.mxu0 %v1769
    %v1771 = vand.u32 %v285, 4294901760
    %v1772 = vsub.f32 %v285, %v1771
    %v1773 = vand.u32 %v1772, 4294901760
    %v1774 = vsub.f32 %v1772, %v1773
    %v1775 = vand.u32 %v1774, 4294901760
    %1776 = vmatpush.xpose.msra.mxu0 %v1775
    %v1777 = vand.u32 %v282, 4294901760
    %v1778 = vsub.f32 %v282, %v1777
    %v1779 = vand.u32 %v1778, 4294901760
    %v1780 = vsub.f32 %v1778, %v1779
    %v1781 = vand.u32 %v1780, 4294901760
    %1782 = vmatpush.xpose.msra.mxu0 %v1781
    %v1783 = vand.u32 %v279, 4294901760
    %v1784 = vsub.f32 %v279, %v1783
    %v1785 = vand.u32 %v1784, 4294901760
    %v1786 = vsub.f32 %v1784, %v1785
    %v1787 = vand.u32 %v1786, 4294901760
    %1788 = vmatpush.xpose.msra.mxu0 %v1787
    %v1789 = vand.u32 %v123, 4294901760
    %1790 = vmatmul.f32.gmra.mxu0 %v1789
    %v1791 = vpop.f32.mrf.mxu0
    %v1792 = vadd.f32 %v1667, %v1791
    %v1793 = vand.u32 %v126, 4294901760
    %1794 = vmatmul.f32.gmra.mxu0 %v1793
    %v1795 = vpop.f32.mrf.mxu0
    %v1796 = vadd.f32 %v1675, %v1795
    %v1797 = vand.u32 %v129, 4294901760
    %1798 = vmatmul.f32.gmra.mxu0 %v1797
    %v1799 = vpop.f32.mrf.mxu0
    %v1800 = vadd.f32 %v1683, %v1799
    %v1801 = vand.u32 %v132, 4294901760
    %1802 = vmatmul.f32.gmra.mxu0 %v1801
    %v1803 = vpop.f32.mrf.mxu0
    %v1804 = vadd.f32 %v1691, %v1803
    %1805 = vdwg.mxu0
    %v1806 = vand.u32 %v324, 4294901760
    %v1807 = vsub.f32 %v324, %v1806
    %1808 = vmatpush.xpose.msra.mxu0 %v1807
    %v1809 = vand.u32 %v321, 4294901760
    %v1810 = vsub.f32 %v321, %v1809
    %1811 = vmatpush.xpose.msra.mxu0 %v1810
    %v1812 = vand.u32 %v318, 4294901760
    %v1813 = vsub.f32 %v318, %v1812
    %1814 = vmatpush.xpose.msra.mxu0 %v1813
    %v1815 = vand.u32 %v315, 4294901760
    %v1816 = vsub.f32 %v315, %v1815
    %1817 = vmatpush.xpose.msra.mxu0 %v1816
    %v1818 = vand.u32 %v312, 4294901760
    %v1819 = vsub.f32 %v312, %v1818
    %1820 = vmatpush.xpose.msra.mxu0 %v1819
    %v1821 = vand.u32 %v309, 4294901760
    %v1822 = vsub.f32 %v309, %v1821
    %1823 = vmatpush.xpose.msra.mxu0 %v1822
    %v1824 = vand.u32 %v306, 4294901760
    %v1825 = vsub.f32 %v306, %v1824
    %1826 = vmatpush.xpose.msra.mxu0 %v1825
    %v1827 = vand.u32 %v303, 4294901760
    %v1828 = vsub.f32 %v303, %v1827
    %1829 = vmatpush.xpose.msra.mxu0 %v1828
    %v1830 = vand.u32 %v300, 4294901760
    %v1831 = vsub.f32 %v300, %v1830
    %1832 = vmatpush.xpose.msra.mxu0 %v1831
    %v1833 = vand.u32 %v297, 4294901760
    %v1834 = vsub.f32 %v297, %v1833
    %1835 = vmatpush.xpose.msra.mxu0 %v1834
    %v1836 = vand.u32 %v294, 4294901760
    %v1837 = vsub.f32 %v294, %v1836
    %1838 = vmatpush.xpose.msra.mxu0 %v1837
    %v1839 = vand.u32 %v291, 4294901760
    %v1840 = vsub.f32 %v291, %v1839
    %1841 = vmatpush.xpose.msra.mxu0 %v1840
    %v1842 = vand.u32 %v288, 4294901760
    %v1843 = vsub.f32 %v288, %v1842
    %1844 = vmatpush.xpose.msra.mxu0 %v1843
    %v1845 = vand.u32 %v285, 4294901760
    %v1846 = vsub.f32 %v285, %v1845
    %1847 = vmatpush.xpose.msra.mxu0 %v1846
    %v1848 = vand.u32 %v282, 4294901760
    %v1849 = vsub.f32 %v282, %v1848
    %1850 = vmatpush.xpose.msra.mxu0 %v1849
    %v1851 = vand.u32 %v279, 4294901760
    %v1852 = vsub.f32 %v279, %v1851
    %1853 = vmatpush.xpose.msra.mxu0 %v1852
    %v1854 = vand.u32 %v123, 4294901760
    %v1855 = vsub.f32 %v123, %v1854
    %1856 = vmatmul.f32.gmra.mxu0 %v1855
    %v1857 = vpop.f32.mrf.mxu0
    %v1858 = vadd.f32 %v1792, %v1857
    %v1859 = vand.u32 %v126, 4294901760
    %v1860 = vsub.f32 %v126, %v1859
    %1861 = vmatmul.f32.gmra.mxu0 %v1860
    %v1862 = vpop.f32.mrf.mxu0
    %v1863 = vadd.f32 %v1796, %v1862
    %v1864 = vand.u32 %v129, 4294901760
    %v1865 = vsub.f32 %v129, %v1864
    %1866 = vmatmul.f32.gmra.mxu0 %v1865
    %v1867 = vpop.f32.mrf.mxu0
    %v1868 = vadd.f32 %v1800, %v1867
    %v1869 = vand.u32 %v132, 4294901760
    %v1870 = vsub.f32 %v132, %v1869
    %1871 = vmatmul.f32.gmra.mxu0 %v1870
    %v1872 = vpop.f32.mrf.mxu0
    %v1873 = vadd.f32 %v1804, %v1872
    %1874 = vdwg.mxu0
    %v1875 = vand.u32 %v324, 4294901760
    %1876 = vmatpush.xpose.msra.mxu0 %v1875
    %v1877 = vand.u32 %v321, 4294901760
    %1878 = vmatpush.xpose.msra.mxu0 %v1877
    %v1879 = vand.u32 %v318, 4294901760
    %1880 = vmatpush.xpose.msra.mxu0 %v1879
    %v1881 = vand.u32 %v315, 4294901760
    %1882 = vmatpush.xpose.msra.mxu0 %v1881
    %v1883 = vand.u32 %v312, 4294901760
    %1884 = vmatpush.xpose.msra.mxu0 %v1883
    %v1885 = vand.u32 %v309, 4294901760
    %1886 = vmatpush.xpose.msra.mxu0 %v1885
    %v1887 = vand.u32 %v306, 4294901760
    %1888 = vmatpush.xpose.msra.mxu0 %v1887
    %v1889 = vand.u32 %v303, 4294901760
    %1890 = vmatpush.xpose.msra.mxu0 %v1889
    %v1891 = vand.u32 %v300, 4294901760
    %1892 = vmatpush.xpose.msra.mxu0 %v1891
    %v1893 = vand.u32 %v297, 4294901760
    %1894 = vmatpush.xpose.msra.mxu0 %v1893
    %v1895 = vand.u32 %v294, 4294901760
    %1896 = vmatpush.xpose.msra.mxu0 %v1895
    %v1897 = vand.u32 %v291, 4294901760
    %1898 = vmatpush.xpose.msra.mxu0 %v1897
    %v1899 = vand.u32 %v288, 4294901760
    %1900 = vmatpush.xpose.msra.mxu0 %v1899
    %v1901 = vand.u32 %v285, 4294901760
    %1902 = vmatpush.xpose.msra.mxu0 %v1901
    %v1903 = vand.u32 %v282, 4294901760
    %1904 = vmatpush.xpose.msra.mxu0 %v1903
    %v1905 = vand.u32 %v279, 4294901760
    %1906 = vmatpush.xpose.msra.mxu0 %v1905
    %v1907 = vand.u32 %v123, 4294901760
    %v1908 = vsub.f32 %v123, %v1907
    %v1909 = vand.u32 %v1908, 4294901760
    %1910 = vmatmul.f32.gmra.mxu0 %v1909
    %v1911 = vpop.f32.mrf.mxu0
    %v1912 = vadd.f32 %v1858, %v1911
    %v1913 = vand.u32 %v126, 4294901760
    %v1914 = vsub.f32 %v126, %v1913
    %v1915 = vand.u32 %v1914, 4294901760
    %1916 = vmatmul.f32.gmra.mxu0 %v1915
    %v1917 = vpop.f32.mrf.mxu0
    %v1918 = vadd.f32 %v1863, %v1917
    %v1919 = vand.u32 %v129, 4294901760
    %v1920 = vsub.f32 %v129, %v1919
    %v1921 = vand.u32 %v1920, 4294901760
    %1922 = vmatmul.f32.gmra.mxu0 %v1921
    %v1923 = vpop.f32.mrf.mxu0
    %v1924 = vadd.f32 %v1868, %v1923
    %v1925 = vand.u32 %v132, 4294901760
    %v1926 = vsub.f32 %v132, %v1925
    %v1927 = vand.u32 %v1926, 4294901760
    %1928 = vmatmul.f32.gmra.mxu0 %v1927
    %v1929 = vpop.f32.mrf.mxu0
    %v1930 = vadd.f32 %v1873, %v1929
    %1931 = vdwg.mxu0
    %v1932 = vand.u32 %v324, 4294901760
    %v1933 = vsub.f32 %v324, %v1932
    %v1934 = vand.u32 %v1933, 4294901760
    %1935 = vmatpush.xpose.msra.mxu0 %v1934
    %v1936 = vand.u32 %v321, 4294901760
    %v1937 = vsub.f32 %v321, %v1936
    %v1938 = vand.u32 %v1937, 4294901760
    %1939 = vmatpush.xpose.msra.mxu0 %v1938
    %v1940 = vand.u32 %v318, 4294901760
    %v1941 = vsub.f32 %v318, %v1940
    %v1942 = vand.u32 %v1941, 4294901760
    %1943 = vmatpush.xpose.msra.mxu0 %v1942
    %v1944 = vand.u32 %v315, 4294901760
    %v1945 = vsub.f32 %v315, %v1944
    %v1946 = vand.u32 %v1945, 4294901760
    %1947 = vmatpush.xpose.msra.mxu0 %v1946
    %v1948 = vand.u32 %v312, 4294901760
    %v1949 = vsub.f32 %v312, %v1948
    %v1950 = vand.u32 %v1949, 4294901760
    %1951 = vmatpush.xpose.msra.mxu0 %v1950
    %v1952 = vand.u32 %v309, 4294901760
    %v1953 = vsub.f32 %v309, %v1952
    %v1954 = vand.u32 %v1953, 4294901760
    %1955 = vmatpush.xpose.msra.mxu0 %v1954
    %v1956 = vand.u32 %v306, 4294901760
    %v1957 = vsub.f32 %v306, %v1956
    %v1958 = vand.u32 %v1957, 4294901760
    %1959 = vmatpush.xpose.msra.mxu0 %v1958
    %v1960 = vand.u32 %v303, 4294901760
    %v1961 = vsub.f32 %v303, %v1960
    %v1962 = vand.u32 %v1961, 4294901760
    %1963 = vmatpush.xpose.msra.mxu0 %v1962
    %v1964 = vand.u32 %v300, 4294901760
    %v1965 = vsub.f32 %v300, %v1964
    %v1966 = vand.u32 %v1965, 4294901760
    %1967 = vmatpush.xpose.msra.mxu0 %v1966
    %v1968 = vand.u32 %v297, 4294901760
    %v1969 = vsub.f32 %v297, %v1968
    %v1970 = vand.u32 %v1969, 4294901760
    %1971 = vmatpush.xpose.msra.mxu0 %v1970
    %v1972 = vand.u32 %v294, 4294901760
    %v1973 = vsub.f32 %v294, %v1972
    %v1974 = vand.u32 %v1973, 4294901760
    %1975 = vmatpush.xpose.msra.mxu0 %v1974
    %v1976 = vand.u32 %v291, 4294901760
    %v1977 = vsub.f32 %v291, %v1976
    %v1978 = vand.u32 %v1977, 4294901760
    %1979 = vmatpush.xpose.msra.mxu0 %v1978
    %v1980 = vand.u32 %v288, 4294901760
    %v1981 = vsub.f32 %v288, %v1980
    %v1982 = vand.u32 %v1981, 4294901760
    %1983 = vmatpush.xpose.msra.mxu0 %v1982
    %v1984 = vand.u32 %v285, 4294901760
    %v1985 = vsub.f32 %v285, %v1984
    %v1986 = vand.u32 %v1985, 4294901760
    %1987 = vmatpush.xpose.msra.mxu0 %v1986
    %v1988 = vand.u32 %v282, 4294901760
    %v1989 = vsub.f32 %v282, %v1988
    %v1990 = vand.u32 %v1989, 4294901760
    %1991 = vmatpush.xpose.msra.mxu0 %v1990
    %v1992 = vand.u32 %v279, 4294901760
    %v1993 = vsub.f32 %v279, %v1992
    %v1994 = vand.u32 %v1993, 4294901760
    %1995 = vmatpush.xpose.msra.mxu0 %v1994
    %v1996 = vand.u32 %v123, 4294901760
    %1997 = vmatmul.f32.gmra.mxu0 %v1996
    %v1998 = vpop.f32.mrf.mxu0
    %v1999 = vadd.f32 %v1912, %v1998
    %v2000 = vand.u32 %v126, 4294901760
    %2001 = vmatmul.f32.gmra.mxu0 %v2000
    %v2002 = vpop.f32.mrf.mxu0
    %v2003 = vadd.f32 %v1918, %v2002
    %v2004 = vand.u32 %v129, 4294901760
    %2005 = vmatmul.f32.gmra.mxu0 %v2004
    %v2006 = vpop.f32.mrf.mxu0
    %v2007 = vadd.f32 %v1924, %v2006
    %v2008 = vand.u32 %v132, 4294901760
    %2009 = vmatmul.f32.gmra.mxu0 %v2008
    %v2010 = vpop.f32.mrf.mxu0
    %v2011 = vadd.f32 %v1930, %v2010
    %2012 = vdwg.mxu0
    %v2013 = vand.u32 %v324, 4294901760
    %2014 = vmatpush.xpose.msra.mxu0 %v2013
    %v2015 = vand.u32 %v321, 4294901760
    %2016 = vmatpush.xpose.msra.mxu0 %v2015
    %v2017 = vand.u32 %v318, 4294901760
    %2018 = vmatpush.xpose.msra.mxu0 %v2017
    %v2019 = vand.u32 %v315, 4294901760
    %2020 = vmatpush.xpose.msra.mxu0 %v2019
    %v2021 = vand.u32 %v312, 4294901760
    %2022 = vmatpush.xpose.msra.mxu0 %v2021
    %v2023 = vand.u32 %v309, 4294901760
    %2024 = vmatpush.xpose.msra.mxu0 %v2023
    %v2025 = vand.u32 %v306, 4294901760
    %2026 = vmatpush.xpose.msra.mxu0 %v2025
    %v2027 = vand.u32 %v303, 4294901760
    %2028 = vmatpush.xpose.msra.mxu0 %v2027
    %v2029 = vand.u32 %v300, 4294901760
    %2030 = vmatpush.xpose.msra.mxu0 %v2029
    %v2031 = vand.u32 %v297, 4294901760
    %2032 = vmatpush.xpose.msra.mxu0 %v2031
    %v2033 = vand.u32 %v294, 4294901760
    %2034 = vmatpush.xpose.msra.mxu0 %v2033
    %v2035 = vand.u32 %v291, 4294901760
    %2036 = vmatpush.xpose.msra.mxu0 %v2035
    %v2037 = vand.u32 %v288, 4294901760
    %2038 = vmatpush.xpose.msra.mxu0 %v2037
    %v2039 = vand.u32 %v285, 4294901760
    %2040 = vmatpush.xpose.msra.mxu0 %v2039
    %v2041 = vand.u32 %v282, 4294901760
    %2042 = vmatpush.xpose.msra.mxu0 %v2041
    %v2043 = vand.u32 %v279, 4294901760
    %2044 = vmatpush.xpose.msra.mxu0 %v2043
    %v2045 = vand.u32 %v123, 4294901760
    %2046 = vmatmul.f32.gmra.mxu0 %v2045
    %v2047 = vpop.f32.mrf.mxu0
    %v2048 = vadd.f32 %v1999, %v2047
    %v2049 = vand.u32 %v126, 4294901760
    %2050 = vmatmul.f32.gmra.mxu0 %v2049
    %v2051 = vpop.f32.mrf.mxu0
    %v2052 = vadd.f32 %v2003, %v2051
    %v2053 = vand.u32 %v129, 4294901760
    %2054 = vmatmul.f32.gmra.mxu0 %v2053
    %v2055 = vpop.f32.mrf.mxu0
    %v2056 = vadd.f32 %v2007, %v2055
    %v2057 = vand.u32 %v132, 4294901760
    %2058 = vmatmul.f32.gmra.mxu0 %v2057
    %v2059 = vpop.f32.mrf.mxu0
    %v2060 = vadd.f32 %v2011, %v2059
    %2061 = vdwg.mxu0
    %v2062 = vtanh.pop %v746
    %v2063 = vtanh.pop %v1180
    %v2064 = vtanh.pop %v1614
    %v2065 = vtanh.pop %v2048
    %v2066 = vtanh.pop %v750
    %v2067 = vtanh.pop %v1184
    %v2068 = vtanh.pop %v1618
    %v2069 = vtanh.pop %v2052
    %v2070 = vtanh.pop %v754
    %v2071 = vtanh.pop %v1188
    %v2072 = vtanh.pop %v1622
    %v2073 = vtanh.pop %v2056
    %v2074 = vtanh.pop %v758
    %v2075 = vtanh.pop %v1192
    %v2076 = vtanh.pop %v1626
    %v2077 = vtanh.pop %v2060
    %v2078 = vld [vmem:[%s3] sm:$0xff]
    %v2079 = vld [vmem:[%s3 + $0x8] sm:$0xff]
    %v2080 = vld [vmem:[%s3 + $0x10] sm:$0xff]
    %v2081 = vld [vmem:[%s3 + $0x18] sm:$0xff]
    %v2082 = vld [vmem:[%s4] sm:$0xff]
    %v2083 = vld [vmem:[%s4 + $0x8] sm:$0xff]
    %v2084 = vld [vmem:[%s4 + $0x10] sm:$0xff]
    %v2085 = vld [vmem:[%s4 + $0x18] sm:$0xff]
    %2087 = vset.pattern.permute.xlu0 0
    %2088 = vperm.xlu0 %2087, %v2082
    %v2089 = vpop.permute.xlu0 %2088
    %2092 = vset.pattern.permute.xlu0 0
    %2093 = vperm.xlu0 %2092, %v2083
    %v2094 = vpop.permute.xlu0 %2093
    %2097 = vset.pattern.permute.xlu0 0
    %2098 = vperm.xlu0 %2097, %v2084
    %v2099 = vpop.permute.xlu0 %2098
    %2102 = vset.pattern.permute.xlu0 0
    %2103 = vperm.xlu0 %2102, %v2085
    %v2104 = vpop.permute.xlu0 %2103
    %vm2106 = vcmask 261120
    %v2108 = vsel %vm2106, %v2078, 0
    %v2111 = vsel %vm2106, %v2079, 0
    %v2114 = vsel %vm2106, %v2080, 0
    %v2117 = vsel %vm2106, %v2081, 0
    %2119 = vmatpush.msra.mxu0 0.0
    %2120 = vmatpush.msra.mxu0 0.0
    %2121 = vmatpush.msra.mxu0 0.0
    %2122 = vmatpush.msra.mxu0 0.0
    %2123 = vmatpush.msra.mxu0 0.0
    %2124 = vmatpush.msra.mxu0 0.0
    %2125 = vmatpush.msra.mxu0 0.0
    %2126 = vmatpush.msra.mxu0 0.0
    %2127 = vmatpush.msra.mxu0 0.0
    %2128 = vmatpush.msra.mxu0 0.0
    %2129 = vmatpush.msra.mxu0 0.0
    %2130 = vmatpush.msra.mxu0 0.0
    %v2131 = vand.u32 %v2074, 4294901760
    %2132 = vmatpush.msra.mxu0 %v2131
    %v2133 = vand.u32 %v2070, 4294901760
    %2134 = vmatpush.msra.mxu0 %v2133
    %v2135 = vand.u32 %v2066, 4294901760
    %2136 = vmatpush.msra.mxu0 %v2135
    %v2137 = vand.u32 %v2062, 4294901760
    %2138 = vmatpush.msra.mxu0 %v2137
    %v2139 = vand.u32 %v2108, 4294901760
    %v2140 = vsub.f32 %v2108, %v2139
    %v2141 = vand.u32 %v2140, 4294901760
    %v2142 = vsub.f32 %v2140, %v2141
    %v2143 = vand.u32 %v2142, 4294901760
    %2144 = vmatmul.f32.gmra.mxu0 %v2143
    %v2145 = vpop.f32.mrf.mxu0
    %v2146 = vadd.f32 %v2089, %v2145
    %v2147 = vand.u32 %v2111, 4294901760
    %v2148 = vsub.f32 %v2111, %v2147
    %v2149 = vand.u32 %v2148, 4294901760
    %v2150 = vsub.f32 %v2148, %v2149
    %v2151 = vand.u32 %v2150, 4294901760
    %2152 = vmatmul.f32.gmra.mxu0 %v2151
    %v2153 = vpop.f32.mrf.mxu0
    %v2154 = vadd.f32 %v2094, %v2153
    %v2155 = vand.u32 %v2114, 4294901760
    %v2156 = vsub.f32 %v2114, %v2155
    %v2157 = vand.u32 %v2156, 4294901760
    %v2158 = vsub.f32 %v2156, %v2157
    %v2159 = vand.u32 %v2158, 4294901760
    %2160 = vmatmul.f32.gmra.mxu0 %v2159
    %v2161 = vpop.f32.mrf.mxu0
    %v2162 = vadd.f32 %v2099, %v2161
    %v2163 = vand.u32 %v2117, 4294901760
    %v2164 = vsub.f32 %v2117, %v2163
    %v2165 = vand.u32 %v2164, 4294901760
    %v2166 = vsub.f32 %v2164, %v2165
    %v2167 = vand.u32 %v2166, 4294901760
    %2168 = vmatmul.f32.gmra.mxu0 %v2167
    %v2169 = vpop.f32.mrf.mxu0
    %v2170 = vadd.f32 %v2104, %v2169
    %2171 = vdwg.mxu0
    %2172 = vmatpush.msra.mxu0 0.0
    %2173 = vmatpush.msra.mxu0 0.0
    %2174 = vmatpush.msra.mxu0 0.0
    %2175 = vmatpush.msra.mxu0 0.0
    %2176 = vmatpush.msra.mxu0 0.0
    %2177 = vmatpush.msra.mxu0 0.0
    %2178 = vmatpush.msra.mxu0 0.0
    %2179 = vmatpush.msra.mxu0 0.0
    %2180 = vmatpush.msra.mxu0 0.0
    %2181 = vmatpush.msra.mxu0 0.0
    %2182 = vmatpush.msra.mxu0 0.0
    %2183 = vmatpush.msra.mxu0 0.0
    %v2184 = vand.u32 %v2074, 4294901760
    %v2185 = vsub.f32 %v2074, %v2184
    %v2186 = vand.u32 %v2185, 4294901760
    %v2187 = vsub.f32 %v2185, %v2186
    %v2188 = vand.u32 %v2187, 4294901760
    %2189 = vmatpush.msra.mxu0 %v2188
    %v2190 = vand.u32 %v2070, 4294901760
    %v2191 = vsub.f32 %v2070, %v2190
    %v2192 = vand.u32 %v2191, 4294901760
    %v2193 = vsub.f32 %v2191, %v2192
    %v2194 = vand.u32 %v2193, 4294901760
    %2195 = vmatpush.msra.mxu0 %v2194
    %v2196 = vand.u32 %v2066, 4294901760
    %v2197 = vsub.f32 %v2066, %v2196
    %v2198 = vand.u32 %v2197, 4294901760
    %v2199 = vsub.f32 %v2197, %v2198
    %v2200 = vand.u32 %v2199, 4294901760
    %2201 = vmatpush.msra.mxu0 %v2200
    %v2202 = vand.u32 %v2062, 4294901760
    %v2203 = vsub.f32 %v2062, %v2202
    %v2204 = vand.u32 %v2203, 4294901760
    %v2205 = vsub.f32 %v2203, %v2204
    %v2206 = vand.u32 %v2205, 4294901760
    %2207 = vmatpush.msra.mxu0 %v2206
    %v2208 = vand.u32 %v2108, 4294901760
    %2209 = vmatmul.f32.gmra.mxu0 %v2208
    %v2210 = vpop.f32.mrf.mxu0
    %v2211 = vadd.f32 %v2146, %v2210
    %v2212 = vand.u32 %v2111, 4294901760
    %2213 = vmatmul.f32.gmra.mxu0 %v2212
    %v2214 = vpop.f32.mrf.mxu0
    %v2215 = vadd.f32 %v2154, %v2214
    %v2216 = vand.u32 %v2114, 4294901760
    %2217 = vmatmul.f32.gmra.mxu0 %v2216
    %v2218 = vpop.f32.mrf.mxu0
    %v2219 = vadd.f32 %v2162, %v2218
    %v2220 = vand.u32 %v2117, 4294901760
    %2221 = vmatmul.f32.gmra.mxu0 %v2220
    %v2222 = vpop.f32.mrf.mxu0
    %v2223 = vadd.f32 %v2170, %v2222
    %2224 = vdwg.mxu0
    %2225 = vmatpush.msra.mxu0 0.0
    %2226 = vmatpush.msra.mxu0 0.0
    %2227 = vmatpush.msra.mxu0 0.0
    %2228 = vmatpush.msra.mxu0 0.0
    %2229 = vmatpush.msra.mxu0 0.0
    %2230 = vmatpush.msra.mxu0 0.0
    %2231 = vmatpush.msra.mxu0 0.0
    %2232 = vmatpush.msra.mxu0 0.0
    %2233 = vmatpush.msra.mxu0 0.0
    %2234 = vmatpush.msra.mxu0 0.0
    %2235 = vmatpush.msra.mxu0 0.0
    %2236 = vmatpush.msra.mxu0 0.0
    %v2237 = vand.u32 %v2074, 4294901760
    %v2238 = vsub.f32 %v2074, %v2237
    %2239 = vmatpush.msra.mxu0 %v2238
    %v2240 = vand.u32 %v2070, 4294901760
    %v2241 = vsub.f32 %v2070, %v2240
    %2242 = vmatpush.msra.mxu0 %v2241
    %v2243 = vand.u32 %v2066, 4294901760
    %v2244 = vsub.f32 %v2066, %v2243
    %2245 = vmatpush.msra.mxu0 %v2244
    %v2246 = vand.u32 %v2062, 4294901760
    %v2247 = vsub.f32 %v2062, %v2246
    %2248 = vmatpush.msra.mxu0 %v2247
    %v2249 = vand.u32 %v2108, 4294901760
    %v2250 = vsub.f32 %v2108, %v2249
    %2251 = vmatmul.f32.gmra.mxu0 %v2250
    %v2252 = vpop.f32.mrf.mxu0
    %v2253 = vadd.f32 %v2211, %v2252
    %v2254 = vand.u32 %v2111, 4294901760
    %v2255 = vsub.f32 %v2111, %v2254
    %2256 = vmatmul.f32.gmra.mxu0 %v2255
    %v2257 = vpop.f32.mrf.mxu0
    %v2258 = vadd.f32 %v2215, %v2257
    %v2259 = vand.u32 %v2114, 4294901760
    %v2260 = vsub.f32 %v2114, %v2259
    %2261 = vmatmul.f32.gmra.mxu0 %v2260
    %v2262 = vpop.f32.mrf.mxu0
    %v2263 = vadd.f32 %v2219, %v2262
    %v2264 = vand.u32 %v2117, 4294901760
    %v2265 = vsub.f32 %v2117, %v2264
    %2266 = vmatmul.f32.gmra.mxu0 %v2265
    %v2267 = vpop.f32.mrf.mxu0
    %v2268 = vadd.f32 %v2223, %v2267
    %2269 = vdwg.mxu0
    %2270 = vmatpush.msra.mxu0 0.0
    %2271 = vmatpush.msra.mxu0 0.0
    %2272 = vmatpush.msra.mxu0 0.0
    %2273 = vmatpush.msra.mxu0 0.0
    %2274 = vmatpush.msra.mxu0 0.0
    %2275 = vmatpush.msra.mxu0 0.0
    %2276 = vmatpush.msra.mxu0 0.0
    %2277 = vmatpush.msra.mxu0 0.0
    %2278 = vmatpush.msra.mxu0 0.0
    %2279 = vmatpush.msra.mxu0 0.0
    %2280 = vmatpush.msra.mxu0 0.0
    %2281 = vmatpush.msra.mxu0 0.0
    %v2282 = vand.u32 %v2074, 4294901760
    %2283 = vmatpush.msra.mxu0 %v2282
    %v2284 = vand.u32 %v2070, 4294901760
    %2285 = vmatpush.msra.mxu0 %v2284
    %v2286 = vand.u32 %v2066, 4294901760
    %2287 = vmatpush.msra.mxu0 %v2286
    %v2288 = vand.u32 %v2062, 4294901760
    %2289 = vmatpush.msra.mxu0 %v2288
    %v2290 = vand.u32 %v2108, 4294901760
    %v2291 = vsub.f32 %v2108, %v2290
    %v2292 = vand.u32 %v2291, 4294901760
    %2293 = vmatmul.f32.gmra.mxu0 %v2292
    %v2294 = vpop.f32.mrf.mxu0
    %v2295 = vadd.f32 %v2253, %v2294
    %v2296 = vand.u32 %v2111, 4294901760
    %v2297 = vsub.f32 %v2111, %v2296
    %v2298 = vand.u32 %v2297, 4294901760
    %2299 = vmatmul.f32.gmra.mxu0 %v2298
    %v2300 = vpop.f32.mrf.mxu0
    %v2301 = vadd.f32 %v2258, %v2300
    %v2302 = vand.u32 %v2114, 4294901760
    %v2303 = vsub.f32 %v2114, %v2302
    %v2304 = vand.u32 %v2303, 4294901760
    %2305 = vmatmul.f32.gmra.mxu0 %v2304
    %v2306 = vpop.f32.mrf.mxu0
    %v2307 = vadd.f32 %v2263, %v2306
    %v2308 = vand.u32 %v2117, 4294901760
    %v2309 = vsub.f32 %v2117, %v2308
    %v2310 = vand.u32 %v2309, 4294901760
    %2311 = vmatmul.f32.gmra.mxu0 %v2310
    %v2312 = vpop.f32.mrf.mxu0
    %v2313 = vadd.f32 %v2268, %v2312
    %2314 = vdwg.mxu0
    %2315 = vmatpush.msra.mxu0 0.0
    %2316 = vmatpush.msra.mxu0 0.0
    %2317 = vmatpush.msra.mxu0 0.0
    %2318 = vmatpush.msra.mxu0 0.0
    %2319 = vmatpush.msra.mxu0 0.0
    %2320 = vmatpush.msra.mxu0 0.0
    %2321 = vmatpush.msra.mxu0 0.0
    %2322 = vmatpush.msra.mxu0 0.0
    %2323 = vmatpush.msra.mxu0 0.0
    %2324 = vmatpush.msra.mxu0 0.0
    %2325 = vmatpush.msra.mxu0 0.0
    %2326 = vmatpush.msra.mxu0 0.0
    %v2327 = vand.u32 %v2074, 4294901760
    %v2328 = vsub.f32 %v2074, %v2327
    %v2329 = vand.u32 %v2328, 4294901760
    %2330 = vmatpush.msra.mxu0 %v2329
    %v2331 = vand.u32 %v2070, 4294901760
    %v2332 = vsub.f32 %v2070, %v2331
    %v2333 = vand.u32 %v2332, 4294901760
    %2334 = vmatpush.msra.mxu0 %v2333
    %v2335 = vand.u32 %v2066, 4294901760
    %v2336 = vsub.f32 %v2066, %v2335
    %v2337 = vand.u32 %v2336, 4294901760
    %2338 = vmatpush.msra.mxu0 %v2337
    %v2339 = vand.u32 %v2062, 4294901760
    %v2340 = vsub.f32 %v2062, %v2339
    %v2341 = vand.u32 %v2340, 4294901760
    %2342 = vmatpush.msra.mxu0 %v2341
    %v2343 = vand.u32 %v2108, 4294901760
    %2344 = vmatmul.f32.gmra.mxu0 %v2343
    %v2345 = vpop.f32.mrf.mxu0
    %v2346 = vadd.f32 %v2295, %v2345
    %v2347 = vand.u32 %v2111, 4294901760
    %2348 = vmatmul.f32.gmra.mxu0 %v2347
    %v2349 = vpop.f32.mrf.mxu0
    %v2350 = vadd.f32 %v2301, %v2349
    %v2351 = vand.u32 %v2114, 4294901760
    %2352 = vmatmul.f32.gmra.mxu0 %v2351
    %v2353 = vpop.f32.mrf.mxu0
    %v2354 = vadd.f32 %v2307, %v2353
    %v2355 = vand.u32 %v2117, 4294901760
    %2356 = vmatmul.f32.gmra.mxu0 %v2355
    %v2357 = vpop.f32.mrf.mxu0
    %v2358 = vadd.f32 %v2313, %v2357
    %2359 = vdwg.mxu0
    %2360 = vmatpush.msra.mxu0 0.0
    %2361 = vmatpush.msra.mxu0 0.0
    %2362 = vmatpush.msra.mxu0 0.0
    %2363 = vmatpush.msra.mxu0 0.0
    %2364 = vmatpush.msra.mxu0 0.0
    %2365 = vmatpush.msra.mxu0 0.0
    %2366 = vmatpush.msra.mxu0 0.0
    %2367 = vmatpush.msra.mxu0 0.0
    %2368 = vmatpush.msra.mxu0 0.0
    %2369 = vmatpush.msra.mxu0 0.0
    %2370 = vmatpush.msra.mxu0 0.0
    %2371 = vmatpush.msra.mxu0 0.0
    %v2372 = vand.u32 %v2074, 4294901760
    %2373 = vmatpush.msra.mxu0 %v2372
    %v2374 = vand.u32 %v2070, 4294901760
    %2375 = vmatpush.msra.mxu0 %v2374
    %v2376 = vand.u32 %v2066, 4294901760
    %2377 = vmatpush.msra.mxu0 %v2376
    %v2378 = vand.u32 %v2062, 4294901760
    %2379 = vmatpush.msra.mxu0 %v2378
    %v2380 = vand.u32 %v2108, 4294901760
    %2381 = vmatmul.f32.gmra.mxu0 %v2380
    %v2382 = vpop.f32.mrf.mxu0
    %v2383 = vadd.f32 %v2346, %v2382
    %v2384 = vand.u32 %v2111, 4294901760
    %2385 = vmatmul.f32.gmra.mxu0 %v2384
    %v2386 = vpop.f32.mrf.mxu0
    %v2387 = vadd.f32 %v2350, %v2386
    %v2388 = vand.u32 %v2114, 4294901760
    %2389 = vmatmul.f32.gmra.mxu0 %v2388
    %v2390 = vpop.f32.mrf.mxu0
    %v2391 = vadd.f32 %v2354, %v2390
    %v2392 = vand.u32 %v2117, 4294901760
    %2393 = vmatmul.f32.gmra.mxu0 %v2392
    %v2394 = vpop.f32.mrf.mxu0
    %v2395 = vadd.f32 %v2358, %v2394
    %2396 = vdwg.mxu0
    %2397 = vmatpush.msra.mxu0 0.0
    %2398 = vmatpush.msra.mxu0 0.0
    %2399 = vmatpush.msra.mxu0 0.0
    %2400 = vmatpush.msra.mxu0 0.0
    %2401 = vmatpush.msra.mxu0 0.0
    %2402 = vmatpush.msra.mxu0 0.0
    %2403 = vmatpush.msra.mxu0 0.0
    %2404 = vmatpush.msra.mxu0 0.0
    %2405 = vmatpush.msra.mxu0 0.0
    %2406 = vmatpush.msra.mxu0 0.0
    %2407 = vmatpush.msra.mxu0 0.0
    %2408 = vmatpush.msra.mxu0 0.0
    %v2409 = vand.u32 %v2075, 4294901760
    %2410 = vmatpush.msra.mxu0 %v2409
    %v2411 = vand.u32 %v2071, 4294901760
    %2412 = vmatpush.msra.mxu0 %v2411
    %v2413 = vand.u32 %v2067, 4294901760
    %2414 = vmatpush.msra.mxu0 %v2413
    %v2415 = vand.u32 %v2063, 4294901760
    %2416 = vmatpush.msra.mxu0 %v2415
    %v2417 = vand.u32 %v2108, 4294901760
    %v2418 = vsub.f32 %v2108, %v2417
    %v2419 = vand.u32 %v2418, 4294901760
    %v2420 = vsub.f32 %v2418, %v2419
    %v2421 = vand.u32 %v2420, 4294901760
    %2422 = vmatmul.f32.gmra.mxu0 %v2421
    %v2423 = vpop.f32.mrf.mxu0
    %v2424 = vadd.f32 %v2089, %v2423
    %v2425 = vand.u32 %v2111, 4294901760
    %v2426 = vsub.f32 %v2111, %v2425
    %v2427 = vand.u32 %v2426, 4294901760
    %v2428 = vsub.f32 %v2426, %v2427
    %v2429 = vand.u32 %v2428, 4294901760
    %2430 = vmatmul.f32.gmra.mxu0 %v2429
    %v2431 = vpop.f32.mrf.mxu0
    %v2432 = vadd.f32 %v2094, %v2431
    %v2433 = vand.u32 %v2114, 4294901760
    %v2434 = vsub.f32 %v2114, %v2433
    %v2435 = vand.u32 %v2434, 4294901760
    %v2436 = vsub.f32 %v2434, %v2435
    %v2437 = vand.u32 %v2436, 4294901760
    %2438 = vmatmul.f32.gmra.mxu0 %v2437
    %v2439 = vpop.f32.mrf.mxu0
    %v2440 = vadd.f32 %v2099, %v2439
    %v2441 = vand.u32 %v2117, 4294901760
    %v2442 = vsub.f32 %v2117, %v2441
    %v2443 = vand.u32 %v2442, 4294901760
    %v2444 = vsub.f32 %v2442, %v2443
    %v2445 = vand.u32 %v2444, 4294901760
    %2446 = vmatmul.f32.gmra.mxu0 %v2445
    %v2447 = vpop.f32.mrf.mxu0
    %v2448 = vadd.f32 %v2104, %v2447
    %2449 = vdwg.mxu0
    %2450 = vmatpush.msra.mxu0 0.0
    %2451 = vmatpush.msra.mxu0 0.0
    %2452 = vmatpush.msra.mxu0 0.0
    %2453 = vmatpush.msra.mxu0 0.0
    %2454 = vmatpush.msra.mxu0 0.0
    %2455 = vmatpush.msra.mxu0 0.0
    %2456 = vmatpush.msra.mxu0 0.0
    %2457 = vmatpush.msra.mxu0 0.0
    %2458 = vmatpush.msra.mxu0 0.0
    %2459 = vmatpush.msra.mxu0 0.0
    %2460 = vmatpush.msra.mxu0 0.0
    %2461 = vmatpush.msra.mxu0 0.0
    %v2462 = vand.u32 %v2075, 4294901760
    %v2463 = vsub.f32 %v2075, %v2462
    %v2464 = vand.u32 %v2463, 4294901760
    %v2465 = vsub.f32 %v2463, %v2464
    %v2466 = vand.u32 %v2465, 4294901760
    %2467 = vmatpush.msra.mxu0 %v2466
    %v2468 = vand.u32 %v2071, 4294901760
    %v2469 = vsub.f32 %v2071, %v2468
    %v2470 = vand.u32 %v2469, 4294901760
    %v2471 = vsub.f32 %v2469, %v2470
    %v2472 = vand.u32 %v2471, 4294901760
    %2473 = vmatpush.msra.mxu0 %v2472
    %v2474 = vand.u32 %v2067, 4294901760
    %v2475 = vsub.f32 %v2067, %v2474
    %v2476 = vand.u32 %v2475, 4294901760
    %v2477 = vsub.f32 %v2475, %v2476
    %v2478 = vand.u32 %v2477, 4294901760
    %2479 = vmatpush.msra.mxu0 %v2478
    %v2480 = vand.u32 %v2063, 4294901760
    %v2481 = vsub.f32 %v2063, %v2480
    %v2482 = vand.u32 %v2481, 4294901760
    %v2483 = vsub.f32 %v2481, %v2482
    %v2484 = vand.u32 %v2483, 4294901760
    %2485 = vmatpush.msra.mxu0 %v2484
    %v2486 = vand.u32 %v2108, 4294901760
    %2487 = vmatmul.f32.gmra.mxu0 %v2486
    %v2488 = vpop.f32.mrf.mxu0
    %v2489 = vadd.f32 %v2424, %v2488
    %v2490 = vand.u32 %v2111, 4294901760
    %2491 = vmatmul.f32.gmra.mxu0 %v2490
    %v2492 = vpop.f32.mrf.mxu0
    %v2493 = vadd.f32 %v2432, %v2492
    %v2494 = vand.u32 %v2114, 4294901760
    %2495 = vmatmul.f32.gmra.mxu0 %v2494
    %v2496 = vpop.f32.mrf.mxu0
    %v2497 = vadd.f32 %v2440, %v2496
    %v2498 = vand.u32 %v2117, 4294901760
    %2499 = vmatmul.f32.gmra.mxu0 %v2498
    %v2500 = vpop.f32.mrf.mxu0
    %v2501 = vadd.f32 %v2448, %v2500
    %2502 = vdwg.mxu0
    %2503 = vmatpush.msra.mxu0 0.0
    %2504 = vmatpush.msra.mxu0 0.0
    %2505 = vmatpush.msra.mxu0 0.0
    %2506 = vmatpush.msra.mxu0 0.0
    %2507 = vmatpush.msra.mxu0 0.0
    %2508 = vmatpush.msra.mxu0 0.0
    %2509 = vmatpush.msra.mxu0 0.0
    %2510 = vmatpush.msra.mxu0 0.0
    %2511 = vmatpush.msra.mxu0 0.0
    %2512 = vmatpush.msra.mxu0 0.0
    %2513 = vmatpush.msra.mxu0 0.0
    %2514 = vmatpush.msra.mxu0 0.0
    %v2515 = vand.u32 %v2075, 4294901760
    %v2516 = vsub.f32 %v2075, %v2515
    %2517 = vmatpush.msra.mxu0 %v2516
    %v2518 = vand.u32 %v2071, 4294901760
    %v2519 = vsub.f32 %v2071, %v2518
    %2520 = vmatpush.msra.mxu0 %v2519
    %v2521 = vand.u32 %v2067, 4294901760
    %v2522 = vsub.f32 %v2067, %v2521
    %2523 = vmatpush.msra.mxu0 %v2522
    %v2524 = vand.u32 %v2063, 4294901760
    %v2525 = vsub.f32 %v2063, %v2524
    %2526 = vmatpush.msra.mxu0 %v2525
    %v2527 = vand.u32 %v2108, 4294901760
    %v2528 = vsub.f32 %v2108, %v2527
    %2529 = vmatmul.f32.gmra.mxu0 %v2528
    %v2530 = vpop.f32.mrf.mxu0
    %v2531 = vadd.f32 %v2489, %v2530
    %v2532 = vand.u32 %v2111, 4294901760
    %v2533 = vsub.f32 %v2111, %v2532
    %2534 = vmatmul.f32.gmra.mxu0 %v2533
    %v2535 = vpop.f32.mrf.mxu0
    %v2536 = vadd.f32 %v2493, %v2535
    %v2537 = vand.u32 %v2114, 4294901760
    %v2538 = vsub.f32 %v2114, %v2537
    %2539 = vmatmul.f32.gmra.mxu0 %v2538
    %v2540 = vpop.f32.mrf.mxu0
    %v2541 = vadd.f32 %v2497, %v2540
    %v2542 = vand.u32 %v2117, 4294901760
    %v2543 = vsub.f32 %v2117, %v2542
    %2544 = vmatmul.f32.gmra.mxu0 %v2543
    %v2545 = vpop.f32.mrf.mxu0
    %v2546 = vadd.f32 %v2501, %v2545
    %2547 = vdwg.mxu0
    %2548 = vmatpush.msra.mxu0 0.0
    %2549 = vmatpush.msra.mxu0 0.0
    %2550 = vmatpush.msra.mxu0 0.0
    %2551 = vmatpush.msra.mxu0 0.0
    %2552 = vmatpush.msra.mxu0 0.0
    %2553 = vmatpush.msra.mxu0 0.0
    %2554 = vmatpush.msra.mxu0 0.0
    %2555 = vmatpush.msra.mxu0 0.0
    %2556 = vmatpush.msra.mxu0 0.0
    %2557 = vmatpush.msra.mxu0 0.0
    %2558 = vmatpush.msra.mxu0 0.0
    %2559 = vmatpush.msra.mxu0 0.0
    %v2560 = vand.u32 %v2075, 4294901760
    %2561 = vmatpush.msra.mxu0 %v2560
    %v2562 = vand.u32 %v2071, 4294901760
    %2563 = vmatpush.msra.mxu0 %v2562
    %v2564 = vand.u32 %v2067, 4294901760
    %2565 = vmatpush.msra.mxu0 %v2564
    %v2566 = vand.u32 %v2063, 4294901760
    %2567 = vmatpush.msra.mxu0 %v2566
    %v2568 = vand.u32 %v2108, 4294901760
    %v2569 = vsub.f32 %v2108, %v2568
    %v2570 = vand.u32 %v2569, 4294901760
    %2571 = vmatmul.f32.gmra.mxu0 %v2570
    %v2572 = vpop.f32.mrf.mxu0
    %v2573 = vadd.f32 %v2531, %v2572
    %v2574 = vand.u32 %v2111, 4294901760
    %v2575 = vsub.f32 %v2111, %v2574
    %v2576 = vand.u32 %v2575, 4294901760
    %2577 = vmatmul.f32.gmra.mxu0 %v2576
    %v2578 = vpop.f32.mrf.mxu0
    %v2579 = vadd.f32 %v2536, %v2578
    %v2580 = vand.u32 %v2114, 4294901760
    %v2581 = vsub.f32 %v2114, %v2580
    %v2582 = vand.u32 %v2581, 4294901760
    %2583 = vmatmul.f32.gmra.mxu0 %v2582
    %v2584 = vpop.f32.mrf.mxu0
    %v2585 = vadd.f32 %v2541, %v2584
    %v2586 = vand.u32 %v2117, 4294901760
    %v2587 = vsub.f32 %v2117, %v2586
    %v2588 = vand.u32 %v2587, 4294901760
    %2589 = vmatmul.f32.gmra.mxu0 %v2588
    %v2590 = vpop.f32.mrf.mxu0
    %v2591 = vadd.f32 %v2546, %v2590
    %2592 = vdwg.mxu0
    %2593 = vmatpush.msra.mxu0 0.0
    %2594 = vmatpush.msra.mxu0 0.0
    %2595 = vmatpush.msra.mxu0 0.0
    %2596 = vmatpush.msra.mxu0 0.0
    %2597 = vmatpush.msra.mxu0 0.0
    %2598 = vmatpush.msra.mxu0 0.0
    %2599 = vmatpush.msra.mxu0 0.0
    %2600 = vmatpush.msra.mxu0 0.0
    %2601 = vmatpush.msra.mxu0 0.0
    %2602 = vmatpush.msra.mxu0 0.0
    %2603 = vmatpush.msra.mxu0 0.0
    %2604 = vmatpush.msra.mxu0 0.0
    %v2605 = vand.u32 %v2075, 4294901760
    %v2606 = vsub.f32 %v2075, %v2605
    %v2607 = vand.u32 %v2606, 4294901760
    %2608 = vmatpush.msra.mxu0 %v2607
    %v2609 = vand.u32 %v2071, 4294901760
    %v2610 = vsub.f32 %v2071, %v2609
    %v2611 = vand.u32 %v2610, 4294901760
    %2612 = vmatpush.msra.mxu0 %v2611
    %v2613 = vand.u32 %v2067, 4294901760
    %v2614 = vsub.f32 %v2067, %v2613
    %v2615 = vand.u32 %v2614, 4294901760
    %2616 = vmatpush.msra.mxu0 %v2615
    %v2617 = vand.u32 %v2063, 4294901760
    %v2618 = vsub.f32 %v2063, %v2617
    %v2619 = vand.u32 %v2618, 4294901760
    %2620 = vmatpush.msra.mxu0 %v2619
    %v2621 = vand.u32 %v2108, 4294901760
    %2622 = vmatmul.f32.gmra.mxu0 %v2621
    %v2623 = vpop.f32.mrf.mxu0
    %v2624 = vadd.f32 %v2573, %v2623
    %v2625 = vand.u32 %v2111, 4294901760
    %2626 = vmatmul.f32.gmra.mxu0 %v2625
    %v2627 = vpop.f32.mrf.mxu0
    %v2628 = vadd.f32 %v2579, %v2627
    %v2629 = vand.u32 %v2114, 4294901760
    %2630 = vmatmul.f32.gmra.mxu0 %v2629
    %v2631 = vpop.f32.mrf.mxu0
    %v2632 = vadd.f32 %v2585, %v2631
    %v2633 = vand.u32 %v2117, 4294901760
    %2634 = vmatmul.f32.gmra.mxu0 %v2633
    %v2635 = vpop.f32.mrf.mxu0
    %v2636 = vadd.f32 %v2591, %v2635
    %2637 = vdwg.mxu0
    %2638 = vmatpush.msra.mxu0 0.0
    %2639 = vmatpush.msra.mxu0 0.0
    %2640 = vmatpush.msra.mxu0 0.0
    %2641 = vmatpush.msra.mxu0 0.0
    %2642 = vmatpush.msra.mxu0 0.0
    %2643 = vmatpush.msra.mxu0 0.0
    %2644 = vmatpush.msra.mxu0 0.0
    %2645 = vmatpush.msra.mxu0 0.0
    %2646 = vmatpush.msra.mxu0 0.0
    %2647 = vmatpush.msra.mxu0 0.0
    %2648 = vmatpush.msra.mxu0 0.0
    %2649 = vmatpush.msra.mxu0 0.0
    %v2650 = vand.u32 %v2075, 4294901760
    %2651 = vmatpush.msra.mxu0 %v2650
    %v2652 = vand.u32 %v2071, 4294901760
    %2653 = vmatpush.msra.mxu0 %v2652
    %v2654 = vand.u32 %v2067, 4294901760
    %2655 = vmatpush.msra.mxu0 %v2654
    %v2656 = vand.u32 %v2063, 4294901760
    %2657 = vmatpush.msra.mxu0 %v2656
    %v2658 = vand.u32 %v2108, 4294901760
    %2659 = vmatmul.f32.gmra.mxu0 %v2658
    %v2660 = vpop.f32.mrf.mxu0
    %v2661 = vadd.f32 %v2624, %v2660
    %v2662 = vand.u32 %v2111, 4294901760
    %2663 = vmatmul.f32.gmra.mxu0 %v2662
    %v2664 = vpop.f32.mrf.mxu0
    %v2665 = vadd.f32 %v2628, %v2664
    %v2666 = vand.u32 %v2114, 4294901760
    %2667 = vmatmul.f32.gmra.mxu0 %v2666
    %v2668 = vpop.f32.mrf.mxu0
    %v2669 = vadd.f32 %v2632, %v2668
    %v2670 = vand.u32 %v2117, 4294901760
    %2671 = vmatmul.f32.gmra.mxu0 %v2670
    %v2672 = vpop.f32.mrf.mxu0
    %v2673 = vadd.f32 %v2636, %v2672
    %2674 = vdwg.mxu0
    %2675 = vmatpush.msra.mxu0 0.0
    %2676 = vmatpush.msra.mxu0 0.0
    %2677 = vmatpush.msra.mxu0 0.0
    %2678 = vmatpush.msra.mxu0 0.0
    %2679 = vmatpush.msra.mxu0 0.0
    %2680 = vmatpush.msra.mxu0 0.0
    %2681 = vmatpush.msra.mxu0 0.0
    %2682 = vmatpush.msra.mxu0 0.0
    %2683 = vmatpush.msra.mxu0 0.0
    %2684 = vmatpush.msra.mxu0 0.0
    %2685 = vmatpush.msra.mxu0 0.0
    %2686 = vmatpush.msra.mxu0 0.0
    %v2687 = vand.u32 %v2076, 4294901760
    %2688 = vmatpush.msra.mxu0 %v2687
    %v2689 = vand.u32 %v2072, 4294901760
    %2690 = vmatpush.msra.mxu0 %v2689
    %v2691 = vand.u32 %v2068, 4294901760
    %2692 = vmatpush.msra.mxu0 %v2691
    %v2693 = vand.u32 %v2064, 4294901760
    %2694 = vmatpush.msra.mxu0 %v2693
    %v2695 = vand.u32 %v2108, 4294901760
    %v2696 = vsub.f32 %v2108, %v2695
    %v2697 = vand.u32 %v2696, 4294901760
    %v2698 = vsub.f32 %v2696, %v2697
    %v2699 = vand.u32 %v2698, 4294901760
    %2700 = vmatmul.f32.gmra.mxu0 %v2699
    %v2701 = vpop.f32.mrf.mxu0
    %v2702 = vadd.f32 %v2089, %v2701
    %v2703 = vand.u32 %v2111, 4294901760
    %v2704 = vsub.f32 %v2111, %v2703
    %v2705 = vand.u32 %v2704, 4294901760
    %v2706 = vsub.f32 %v2704, %v2705
    %v2707 = vand.u32 %v2706, 4294901760
    %2708 = vmatmul.f32.gmra.mxu0 %v2707
    %v2709 = vpop.f32.mrf.mxu0
    %v2710 = vadd.f32 %v2094, %v2709
    %v2711 = vand.u32 %v2114, 4294901760
    %v2712 = vsub.f32 %v2114, %v2711
    %v2713 = vand.u32 %v2712, 4294901760
    %v2714 = vsub.f32 %v2712, %v2713
    %v2715 = vand.u32 %v2714, 4294901760
    %2716 = vmatmul.f32.gmra.mxu0 %v2715
    %v2717 = vpop.f32.mrf.mxu0
    %v2718 = vadd.f32 %v2099, %v2717
    %v2719 = vand.u32 %v2117, 4294901760
    %v2720 = vsub.f32 %v2117, %v2719
    %v2721 = vand.u32 %v2720, 4294901760
    %v2722 = vsub.f32 %v2720, %v2721
    %v2723 = vand.u32 %v2722, 4294901760
    %2724 = vmatmul.f32.gmra.mxu0 %v2723
    %v2725 = vpop.f32.mrf.mxu0
    %v2726 = vadd.f32 %v2104, %v2725
    %2727 = vdwg.mxu0
    %2728 = vmatpush.msra.mxu0 0.0
    %2729 = vmatpush.msra.mxu0 0.0
    %2730 = vmatpush.msra.mxu0 0.0
    %2731 = vmatpush.msra.mxu0 0.0
    %2732 = vmatpush.msra.mxu0 0.0
    %2733 = vmatpush.msra.mxu0 0.0
    %2734 = vmatpush.msra.mxu0 0.0
    %2735 = vmatpush.msra.mxu0 0.0
    %2736 = vmatpush.msra.mxu0 0.0
    %2737 = vmatpush.msra.mxu0 0.0
    %2738 = vmatpush.msra.mxu0 0.0
    %2739 = vmatpush.msra.mxu0 0.0
    %v2740 = vand.u32 %v2076, 4294901760
    %v2741 = vsub.f32 %v2076, %v2740
    %v2742 = vand.u32 %v2741, 4294901760
    %v2743 = vsub.f32 %v2741, %v2742
    %v2744 = vand.u32 %v2743, 4294901760
    %2745 = vmatpush.msra.mxu0 %v2744
    %v2746 = vand.u32 %v2072, 4294901760
    %v2747 = vsub.f32 %v2072, %v2746
    %v2748 = vand.u32 %v2747, 4294901760
    %v2749 = vsub.f32 %v2747, %v2748
    %v2750 = vand.u32 %v2749, 4294901760
    %2751 = vmatpush.msra.mxu0 %v2750
    %v2752 = vand.u32 %v2068, 4294901760
    %v2753 = vsub.f32 %v2068, %v2752
    %v2754 = vand.u32 %v2753, 4294901760
    %v2755 = vsub.f32 %v2753, %v2754
    %v2756 = vand.u32 %v2755, 4294901760
    %2757 = vmatpush.msra.mxu0 %v2756
    %v2758 = vand.u32 %v2064, 4294901760
    %v2759 = vsub.f32 %v2064, %v2758
    %v2760 = vand.u32 %v2759, 4294901760
    %v2761 = vsub.f32 %v2759, %v2760
    %v2762 = vand.u32 %v2761, 4294901760
    %2763 = vmatpush.msra.mxu0 %v2762
    %v2764 = vand.u32 %v2108, 4294901760
    %2765 = vmatmul.f32.gmra.mxu0 %v2764
    %v2766 = vpop.f32.mrf.mxu0
    %v2767 = vadd.f32 %v2702, %v2766
    %v2768 = vand.u32 %v2111, 4294901760
    %2769 = vmatmul.f32.gmra.mxu0 %v2768
    %v2770 = vpop.f32.mrf.mxu0
    %v2771 = vadd.f32 %v2710, %v2770
    %v2772 = vand.u32 %v2114, 4294901760
    %2773 = vmatmul.f32.gmra.mxu0 %v2772
    %v2774 = vpop.f32.mrf.mxu0
    %v2775 = vadd.f32 %v2718, %v2774
    %v2776 = vand.u32 %v2117, 4294901760
    %2777 = vmatmul.f32.gmra.mxu0 %v2776
    %v2778 = vpop.f32.mrf.mxu0
    %v2779 = vadd.f32 %v2726, %v2778
    %2780 = vdwg.mxu0
    %2781 = vmatpush.msra.mxu0 0.0
    %2782 = vmatpush.msra.mxu0 0.0
    %2783 = vmatpush.msra.mxu0 0.0
    %2784 = vmatpush.msra.mxu0 0.0
    %2785 = vmatpush.msra.mxu0 0.0
    %2786 = vmatpush.msra.mxu0 0.0
    %2787 = vmatpush.msra.mxu0 0.0
    %2788 = vmatpush.msra.mxu0 0.0
    %2789 = vmatpush.msra.mxu0 0.0
    %2790 = vmatpush.msra.mxu0 0.0
    %2791 = vmatpush.msra.mxu0 0.0
    %2792 = vmatpush.msra.mxu0 0.0
    %v2793 = vand.u32 %v2076, 4294901760
    %v2794 = vsub.f32 %v2076, %v2793
    %2795 = vmatpush.msra.mxu0 %v2794
    %v2796 = vand.u32 %v2072, 4294901760
    %v2797 = vsub.f32 %v2072, %v2796
    %2798 = vmatpush.msra.mxu0 %v2797
    %v2799 = vand.u32 %v2068, 4294901760
    %v2800 = vsub.f32 %v2068, %v2799
    %2801 = vmatpush.msra.mxu0 %v2800
    %v2802 = vand.u32 %v2064, 4294901760
    %v2803 = vsub.f32 %v2064, %v2802
    %2804 = vmatpush.msra.mxu0 %v2803
    %v2805 = vand.u32 %v2108, 4294901760
    %v2806 = vsub.f32 %v2108, %v2805
    %2807 = vmatmul.f32.gmra.mxu0 %v2806
    %v2808 = vpop.f32.mrf.mxu0
    %v2809 = vadd.f32 %v2767, %v2808
    %v2810 = vand.u32 %v2111, 4294901760
    %v2811 = vsub.f32 %v2111, %v2810
    %2812 = vmatmul.f32.gmra.mxu0 %v2811
    %v2813 = vpop.f32.mrf.mxu0
    %v2814 = vadd.f32 %v2771, %v2813
    %v2815 = vand.u32 %v2114, 4294901760
    %v2816 = vsub.f32 %v2114, %v2815
    %2817 = vmatmul.f32.gmra.mxu0 %v2816
    %v2818 = vpop.f32.mrf.mxu0
    %v2819 = vadd.f32 %v2775, %v2818
    %v2820 = vand.u32 %v2117, 4294901760
    %v2821 = vsub.f32 %v2117, %v2820
    %2822 = vmatmul.f32.gmra.mxu0 %v2821
    %v2823 = vpop.f32.mrf.mxu0
    %v2824 = vadd.f32 %v2779, %v2823
    %2825 = vdwg.mxu0
    %2826 = vmatpush.msra.mxu0 0.0
    %2827 = vmatpush.msra.mxu0 0.0
    %2828 = vmatpush.msra.mxu0 0.0
    %2829 = vmatpush.msra.mxu0 0.0
    %2830 = vmatpush.msra.mxu0 0.0
    %2831 = vmatpush.msra.mxu0 0.0
    %2832 = vmatpush.msra.mxu0 0.0
    %2833 = vmatpush.msra.mxu0 0.0
    %2834 = vmatpush.msra.mxu0 0.0
    %2835 = vmatpush.msra.mxu0 0.0
    %2836 = vmatpush.msra.mxu0 0.0
    %2837 = vmatpush.msra.mxu0 0.0
    %v2838 = vand.u32 %v2076, 4294901760
    %2839 = vmatpush.msra.mxu0 %v2838
    %v2840 = vand.u32 %v2072, 4294901760
    %2841 = vmatpush.msra.mxu0 %v2840
    %v2842 = vand.u32 %v2068, 4294901760
    %2843 = vmatpush.msra.mxu0 %v2842
    %v2844 = vand.u32 %v2064, 4294901760
    %2845 = vmatpush.msra.mxu0 %v2844
    %v2846 = vand.u32 %v2108, 4294901760
    %v2847 = vsub.f32 %v2108, %v2846
    %v2848 = vand.u32 %v2847, 4294901760
    %2849 = vmatmul.f32.gmra.mxu0 %v2848
    %v2850 = vpop.f32.mrf.mxu0
    %v2851 = vadd.f32 %v2809, %v2850
    %v2852 = vand.u32 %v2111, 4294901760
    %v2853 = vsub.f32 %v2111, %v2852
    %v2854 = vand.u32 %v2853, 4294901760
    %2855 = vmatmul.f32.gmra.mxu0 %v2854
    %v2856 = vpop.f32.mrf.mxu0
    %v2857 = vadd.f32 %v2814, %v2856
    %v2858 = vand.u32 %v2114, 4294901760
    %v2859 = vsub.f32 %v2114, %v2858
    %v2860 = vand.u32 %v2859, 4294901760
    %2861 = vmatmul.f32.gmra.mxu0 %v2860
    %v2862 = vpop.f32.mrf.mxu0
    %v2863 = vadd.f32 %v2819, %v2862
    %v2864 = vand.u32 %v2117, 4294901760
    %v2865 = vsub.f32 %v2117, %v2864
    %v2866 = vand.u32 %v2865, 4294901760
    %2867 = vmatmul.f32.gmra.mxu0 %v2866
    %v2868 = vpop.f32.mrf.mxu0
    %v2869 = vadd.f32 %v2824, %v2868
    %2870 = vdwg.mxu0
    %2871 = vmatpush.msra.mxu0 0.0
    %2872 = vmatpush.msra.mxu0 0.0
    %2873 = vmatpush.msra.mxu0 0.0
    %2874 = vmatpush.msra.mxu0 0.0
    %2875 = vmatpush.msra.mxu0 0.0
    %2876 = vmatpush.msra.mxu0 0.0
    %2877 = vmatpush.msra.mxu0 0.0
    %2878 = vmatpush.msra.mxu0 0.0
    %2879 = vmatpush.msra.mxu0 0.0
    %2880 = vmatpush.msra.mxu0 0.0
    %2881 = vmatpush.msra.mxu0 0.0
    %2882 = vmatpush.msra.mxu0 0.0
    %v2883 = vand.u32 %v2076, 4294901760
    %v2884 = vsub.f32 %v2076, %v2883
    %v2885 = vand.u32 %v2884, 4294901760
    %2886 = vmatpush.msra.mxu0 %v2885
    %v2887 = vand.u32 %v2072, 4294901760
    %v2888 = vsub.f32 %v2072, %v2887
    %v2889 = vand.u32 %v2888, 4294901760
    %2890 = vmatpush.msra.mxu0 %v2889
    %v2891 = vand.u32 %v2068, 4294901760
    %v2892 = vsub.f32 %v2068, %v2891
    %v2893 = vand.u32 %v2892, 4294901760
    %2894 = vmatpush.msra.mxu0 %v2893
    %v2895 = vand.u32 %v2064, 4294901760
    %v2896 = vsub.f32 %v2064, %v2895
    %v2897 = vand.u32 %v2896, 4294901760
    %2898 = vmatpush.msra.mxu0 %v2897
    %v2899 = vand.u32 %v2108, 4294901760
    %2900 = vmatmul.f32.gmra.mxu0 %v2899
    %v2901 = vpop.f32.mrf.mxu0
    %v2902 = vadd.f32 %v2851, %v2901
    %v2903 = vand.u32 %v2111, 4294901760
    %2904 = vmatmul.f32.gmra.mxu0 %v2903
    %v2905 = vpop.f32.mrf.mxu0
    %v2906 = vadd.f32 %v2857, %v2905
    %v2907 = vand.u32 %v2114, 4294901760
    %2908 = vmatmul.f32.gmra.mxu0 %v2907
    %v2909 = vpop.f32.mrf.mxu0
    %v2910 = vadd.f32 %v2863, %v2909
    %v2911 = vand.u32 %v2117, 4294901760
    %2912 = vmatmul.f32.gmra.mxu0 %v2911
    %v2913 = vpop.f32.mrf.mxu0
    %v2914 = vadd.f32 %v2869, %v2913
    %2915 = vdwg.mxu0
    %2916 = vmatpush.msra.mxu0 0.0
    %2917 = vmatpush.msra.mxu0 0.0
    %2918 = vmatpush.msra.mxu0 0.0
    %2919 = vmatpush.msra.mxu0 0.0
    %2920 = vmatpush.msra.mxu0 0.0
    %2921 = vmatpush.msra.mxu0 0.0
    %2922 = vmatpush.msra.mxu0 0.0
    %2923 = vmatpush.msra.mxu0 0.0
    %2924 = vmatpush.msra.mxu0 0.0
    %2925 = vmatpush.msra.mxu0 0.0
    %2926 = vmatpush.msra.mxu0 0.0
    %2927 = vmatpush.msra.mxu0 0.0
    %v2928 = vand.u32 %v2076, 4294901760
    %2929 = vmatpush.msra.mxu0 %v2928
    %v2930 = vand.u32 %v2072, 4294901760
    %2931 = vmatpush.msra.mxu0 %v2930
    %v2932 = vand.u32 %v2068, 4294901760
    %2933 = vmatpush.msra.mxu0 %v2932
    %v2934 = vand.u32 %v2064, 4294901760
    %2935 = vmatpush.msra.mxu0 %v2934
    %v2936 = vand.u32 %v2108, 4294901760
    %2937 = vmatmul.f32.gmra.mxu0 %v2936
    %v2938 = vpop.f32.mrf.mxu0
    %v2939 = vadd.f32 %v2902, %v2938
    %v2940 = vand.u32 %v2111, 4294901760
    %2941 = vmatmul.f32.gmra.mxu0 %v2940
    %v2942 = vpop.f32.mrf.mxu0
    %v2943 = vadd.f32 %v2906, %v2942
    %v2944 = vand.u32 %v2114, 4294901760
    %2945 = vmatmul.f32.gmra.mxu0 %v2944
    %v2946 = vpop.f32.mrf.mxu0
    %v2947 = vadd.f32 %v2910, %v2946
    %v2948 = vand.u32 %v2117, 4294901760
    %2949 = vmatmul.f32.gmra.mxu0 %v2948
    %v2950 = vpop.f32.mrf.mxu0
    %v2951 = vadd.f32 %v2914, %v2950
    %2952 = vdwg.mxu0
    %2953 = vmatpush.msra.mxu0 0.0
    %2954 = vmatpush.msra.mxu0 0.0
    %2955 = vmatpush.msra.mxu0 0.0
    %2956 = vmatpush.msra.mxu0 0.0
    %2957 = vmatpush.msra.mxu0 0.0
    %2958 = vmatpush.msra.mxu0 0.0
    %2959 = vmatpush.msra.mxu0 0.0
    %2960 = vmatpush.msra.mxu0 0.0
    %2961 = vmatpush.msra.mxu0 0.0
    %2962 = vmatpush.msra.mxu0 0.0
    %2963 = vmatpush.msra.mxu0 0.0
    %2964 = vmatpush.msra.mxu0 0.0
    %v2965 = vand.u32 %v2077, 4294901760
    %2966 = vmatpush.msra.mxu0 %v2965
    %v2967 = vand.u32 %v2073, 4294901760
    %2968 = vmatpush.msra.mxu0 %v2967
    %v2969 = vand.u32 %v2069, 4294901760
    %2970 = vmatpush.msra.mxu0 %v2969
    %v2971 = vand.u32 %v2065, 4294901760
    %2972 = vmatpush.msra.mxu0 %v2971
    %v2973 = vand.u32 %v2108, 4294901760
    %v2974 = vsub.f32 %v2108, %v2973
    %v2975 = vand.u32 %v2974, 4294901760
    %v2976 = vsub.f32 %v2974, %v2975
    %v2977 = vand.u32 %v2976, 4294901760
    %2978 = vmatmul.f32.gmra.mxu0 %v2977
    %v2979 = vpop.f32.mrf.mxu0
    %v2980 = vadd.f32 %v2089, %v2979
    %v2981 = vand.u32 %v2111, 4294901760
    %v2982 = vsub.f32 %v2111, %v2981
    %v2983 = vand.u32 %v2982, 4294901760
    %v2984 = vsub.f32 %v2982, %v2983
    %v2985 = vand.u32 %v2984, 4294901760
    %2986 = vmatmul.f32.gmra.mxu0 %v2985
    %v2987 = vpop.f32.mrf.mxu0
    %v2988 = vadd.f32 %v2094, %v2987
    %v2989 = vand.u32 %v2114, 4294901760
    %v2990 = vsub.f32 %v2114, %v2989
    %v2991 = vand.u32 %v2990, 4294901760
    %v2992 = vsub.f32 %v2990, %v2991
    %v2993 = vand.u32 %v2992, 4294901760
    %2994 = vmatmul.f32.gmra.mxu0 %v2993
    %v2995 = vpop.f32.mrf.mxu0
    %v2996 = vadd.f32 %v2099, %v2995
    %v2997 = vand.u32 %v2117, 4294901760
    %v2998 = vsub.f32 %v2117, %v2997
    %v2999 = vand.u32 %v2998, 4294901760
    %v3000 = vsub.f32 %v2998, %v2999
    %v3001 = vand.u32 %v3000, 4294901760
    %3002 = vmatmul.f32.gmra.mxu0 %v3001
    %v3003 = vpop.f32.mrf.mxu0
    %v3004 = vadd.f32 %v2104, %v3003
    %3005 = vdwg.mxu0
    %3006 = vmatpush.msra.mxu0 0.0
    %3007 = vmatpush.msra.mxu0 0.0
    %3008 = vmatpush.msra.mxu0 0.0
    %3009 = vmatpush.msra.mxu0 0.0
    %3010 = vmatpush.msra.mxu0 0.0
    %3011 = vmatpush.msra.mxu0 0.0
    %3012 = vmatpush.msra.mxu0 0.0
    %3013 = vmatpush.msra.mxu0 0.0
    %3014 = vmatpush.msra.mxu0 0.0
    %3015 = vmatpush.msra.mxu0 0.0
    %3016 = vmatpush.msra.mxu0 0.0
    %3017 = vmatpush.msra.mxu0 0.0
    %v3018 = vand.u32 %v2077, 4294901760
    %v3019 = vsub.f32 %v2077, %v3018
    %v3020 = vand.u32 %v3019, 4294901760
    %v3021 = vsub.f32 %v3019, %v3020
    %v3022 = vand.u32 %v3021, 4294901760
    %3023 = vmatpush.msra.mxu0 %v3022
    %v3024 = vand.u32 %v2073, 4294901760
    %v3025 = vsub.f32 %v2073, %v3024
    %v3026 = vand.u32 %v3025, 4294901760
    %v3027 = vsub.f32 %v3025, %v3026
    %v3028 = vand.u32 %v3027, 4294901760
    %3029 = vmatpush.msra.mxu0 %v3028
    %v3030 = vand.u32 %v2069, 4294901760
    %v3031 = vsub.f32 %v2069, %v3030
    %v3032 = vand.u32 %v3031, 4294901760
    %v3033 = vsub.f32 %v3031, %v3032
    %v3034 = vand.u32 %v3033, 4294901760
    %3035 = vmatpush.msra.mxu0 %v3034
    %v3036 = vand.u32 %v2065, 4294901760
    %v3037 = vsub.f32 %v2065, %v3036
    %v3038 = vand.u32 %v3037, 4294901760
    %v3039 = vsub.f32 %v3037, %v3038
    %v3040 = vand.u32 %v3039, 4294901760
    %3041 = vmatpush.msra.mxu0 %v3040
    %v3042 = vand.u32 %v2108, 4294901760
    %3043 = vmatmul.f32.gmra.mxu0 %v3042
    %v3044 = vpop.f32.mrf.mxu0
    %v3045 = vadd.f32 %v2980, %v3044
    %v3046 = vand.u32 %v2111, 4294901760
    %3047 = vmatmul.f32.gmra.mxu0 %v3046
    %v3048 = vpop.f32.mrf.mxu0
    %v3049 = vadd.f32 %v2988, %v3048
    %v3050 = vand.u32 %v2114, 4294901760
    %3051 = vmatmul.f32.gmra.mxu0 %v3050
    %v3052 = vpop.f32.mrf.mxu0
    %v3053 = vadd.f32 %v2996, %v3052
    %v3054 = vand.u32 %v2117, 4294901760
    %3055 = vmatmul.f32.gmra.mxu0 %v3054
    %v3056 = vpop.f32.mrf.mxu0
    %v3057 = vadd.f32 %v3004, %v3056
    %3058 = vdwg.mxu0
    %3059 = vmatpush.msra.mxu0 0.0
    %3060 = vmatpush.msra.mxu0 0.0
    %3061 = vmatpush.msra.mxu0 0.0
    %3062 = vmatpush.msra.mxu0 0.0
    %3063 = vmatpush.msra.mxu0 0.0
    %3064 = vmatpush.msra.mxu0 0.0
    %3065 = vmatpush.msra.mxu0 0.0
    %3066 = vmatpush.msra.mxu0 0.0
    %3067 = vmatpush.msra.mxu0 0.0
    %3068 = vmatpush.msra.mxu0 0.0
    %3069 = vmatpush.msra.mxu0 0.0
    %3070 = vmatpush.msra.mxu0 0.0
    %v3071 = vand.u32 %v2077, 4294901760
    %v3072 = vsub.f32 %v2077, %v3071
    %3073 = vmatpush.msra.mxu0 %v3072
    %v3074 = vand.u32 %v2073, 4294901760
    %v3075 = vsub.f32 %v2073, %v3074
    %3076 = vmatpush.msra.mxu0 %v3075
    %v3077 = vand.u32 %v2069, 4294901760
    %v3078 = vsub.f32 %v2069, %v3077
    %3079 = vmatpush.msra.mxu0 %v3078
    %v3080 = vand.u32 %v2065, 4294901760
    %v3081 = vsub.f32 %v2065, %v3080
    %3082 = vmatpush.msra.mxu0 %v3081
    %v3083 = vand.u32 %v2108, 4294901760
    %v3084 = vsub.f32 %v2108, %v3083
    %3085 = vmatmul.f32.gmra.mxu0 %v3084
    %v3086 = vpop.f32.mrf.mxu0
    %v3087 = vadd.f32 %v3045, %v3086
    %v3088 = vand.u32 %v2111, 4294901760
    %v3089 = vsub.f32 %v2111, %v3088
    %3090 = vmatmul.f32.gmra.mxu0 %v3089
    %v3091 = vpop.f32.mrf.mxu0
    %v3092 = vadd.f32 %v3049, %v3091
    %v3093 = vand.u32 %v2114, 4294901760
    %v3094 = vsub.f32 %v2114, %v3093
    %3095 = vmatmul.f32.gmra.mxu0 %v3094
    %v3096 = vpop.f32.mrf.mxu0
    %v3097 = vadd.f32 %v3053, %v3096
    %v3098 = vand.u32 %v2117, 4294901760
    %v3099 = vsub.f32 %v2117, %v3098
    %3100 = vmatmul.f32.gmra.mxu0 %v3099
    %v3101 = vpop.f32.mrf.mxu0
    %v3102 = vadd.f32 %v3057, %v3101
    %3103 = vdwg.mxu0
    %3104 = vmatpush.msra.mxu0 0.0
    %3105 = vmatpush.msra.mxu0 0.0
    %3106 = vmatpush.msra.mxu0 0.0
    %3107 = vmatpush.msra.mxu0 0.0
    %3108 = vmatpush.msra.mxu0 0.0
    %3109 = vmatpush.msra.mxu0 0.0
    %3110 = vmatpush.msra.mxu0 0.0
    %3111 = vmatpush.msra.mxu0 0.0
    %3112 = vmatpush.msra.mxu0 0.0
    %3113 = vmatpush.msra.mxu0 0.0
    %3114 = vmatpush.msra.mxu0 0.0
    %3115 = vmatpush.msra.mxu0 0.0
    %v3116 = vand.u32 %v2077, 4294901760
    %3117 = vmatpush.msra.mxu0 %v3116
    %v3118 = vand.u32 %v2073, 4294901760
    %3119 = vmatpush.msra.mxu0 %v3118
    %v3120 = vand.u32 %v2069, 4294901760
    %3121 = vmatpush.msra.mxu0 %v3120
    %v3122 = vand.u32 %v2065, 4294901760
    %3123 = vmatpush.msra.mxu0 %v3122
    %v3124 = vand.u32 %v2108, 4294901760
    %v3125 = vsub.f32 %v2108, %v3124
    %v3126 = vand.u32 %v3125, 4294901760
    %3127 = vmatmul.f32.gmra.mxu0 %v3126
    %v3128 = vpop.f32.mrf.mxu0
    %v3129 = vadd.f32 %v3087, %v3128
    %v3130 = vand.u32 %v2111, 4294901760
    %v3131 = vsub.f32 %v2111, %v3130
    %v3132 = vand.u32 %v3131, 4294901760
    %3133 = vmatmul.f32.gmra.mxu0 %v3132
    %v3134 = vpop.f32.mrf.mxu0
    %v3135 = vadd.f32 %v3092, %v3134
    %v3136 = vand.u32 %v2114, 4294901760
    %v3137 = vsub.f32 %v2114, %v3136
    %v3138 = vand.u32 %v3137, 4294901760
    %3139 = vmatmul.f32.gmra.mxu0 %v3138
    %v3140 = vpop.f32.mrf.mxu0
    %v3141 = vadd.f32 %v3097, %v3140
    %v3142 = vand.u32 %v2117, 4294901760
    %v3143 = vsub.f32 %v2117, %v3142
    %v3144 = vand.u32 %v3143, 4294901760
    %3145 = vmatmul.f32.gmra.mxu0 %v3144
    %v3146 = vpop.f32.mrf.mxu0
    %v3147 = vadd.f32 %v3102, %v3146
    %3148 = vdwg.mxu0
    %3149 = vmatpush.msra.mxu0 0.0
    %3150 = vmatpush.msra.mxu0 0.0
    %3151 = vmatpush.msra.mxu0 0.0
    %3152 = vmatpush.msra.mxu0 0.0
    %3153 = vmatpush.msra.mxu0 0.0
    %3154 = vmatpush.msra.mxu0 0.0
    %3155 = vmatpush.msra.mxu0 0.0
    %3156 = vmatpush.msra.mxu0 0.0
    %3157 = vmatpush.msra.mxu0 0.0
    %3158 = vmatpush.msra.mxu0 0.0
    %3159 = vmatpush.msra.mxu0 0.0
    %3160 = vmatpush.msra.mxu0 0.0
    %v3161 = vand.u32 %v2077, 4294901760
    %v3162 = vsub.f32 %v2077, %v3161
    %v3163 = vand.u32 %v3162, 4294901760
    %3164 = vmatpush.msra.mxu0 %v3163
    %v3165 = vand.u32 %v2073, 4294901760
    %v3166 = vsub.f32 %v2073, %v3165
    %v3167 = vand.u32 %v3166, 4294901760
    %3168 = vmatpush.msra.mxu0 %v3167
    %v3169 = vand.u32 %v2069, 4294901760
    %v3170 = vsub.f32 %v2069, %v3169
    %v3171 = vand.u32 %v3170, 4294901760
    %3172 = vmatpush.msra.mxu0 %v3171
    %v3173 = vand.u32 %v2065, 4294901760
    %v3174 = vsub.f32 %v2065, %v3173
    %v3175 = vand.u32 %v3174, 4294901760
    %3176 = vmatpush.msra.mxu0 %v3175
    %v3177 = vand.u32 %v2108, 4294901760
    %3178 = vmatmul.f32.gmra.mxu0 %v3177
    %v3179 = vpop.f32.mrf.mxu0
    %v3180 = vadd.f32 %v3129, %v3179
    %v3181 = vand.u32 %v2111, 4294901760
    %3182 = vmatmul.f32.gmra.mxu0 %v3181
    %v3183 = vpop.f32.mrf.mxu0
    %v3184 = vadd.f32 %v3135, %v3183
    %v3185 = vand.u32 %v2114, 4294901760
    %3186 = vmatmul.f32.gmra.mxu0 %v3185
    %v3187 = vpop.f32.mrf.mxu0
    %v3188 = vadd.f32 %v3141, %v3187
    %v3189 = vand.u32 %v2117, 4294901760
    %3190 = vmatmul.f32.gmra.mxu0 %v3189
    %v3191 = vpop.f32.mrf.mxu0
    %v3192 = vadd.f32 %v3147, %v3191
    %3193 = vdwg.mxu0
    %3194 = vmatpush.msra.mxu0 0.0
    %3195 = vmatpush.msra.mxu0 0.0
    %3196 = vmatpush.msra.mxu0 0.0
    %3197 = vmatpush.msra.mxu0 0.0
    %3198 = vmatpush.msra.mxu0 0.0
    %3199 = vmatpush.msra.mxu0 0.0
    %3200 = vmatpush.msra.mxu0 0.0
    %3201 = vmatpush.msra.mxu0 0.0
    %3202 = vmatpush.msra.mxu0 0.0
    %3203 = vmatpush.msra.mxu0 0.0
    %3204 = vmatpush.msra.mxu0 0.0
    %3205 = vmatpush.msra.mxu0 0.0
    %v3206 = vand.u32 %v2077, 4294901760
    %3207 = vmatpush.msra.mxu0 %v3206
    %v3208 = vand.u32 %v2073, 4294901760
    %3209 = vmatpush.msra.mxu0 %v3208
    %v3210 = vand.u32 %v2069, 4294901760
    %3211 = vmatpush.msra.mxu0 %v3210
    %v3212 = vand.u32 %v2065, 4294901760
    %3213 = vmatpush.msra.mxu0 %v3212
    %v3214 = vand.u32 %v2108, 4294901760
    %3215 = vmatmul.f32.gmra.mxu0 %v3214
    %v3216 = vpop.f32.mrf.mxu0
    %v3217 = vadd.f32 %v3180, %v3216
    %v3218 = vand.u32 %v2111, 4294901760
    %3219 = vmatmul.f32.gmra.mxu0 %v3218
    %v3220 = vpop.f32.mrf.mxu0
    %v3221 = vadd.f32 %v3184, %v3220
    %v3222 = vand.u32 %v2114, 4294901760
    %3223 = vmatmul.f32.gmra.mxu0 %v3222
    %v3224 = vpop.f32.mrf.mxu0
    %v3225 = vadd.f32 %v3188, %v3224
    %v3226 = vand.u32 %v2117, 4294901760
    %3227 = vmatmul.f32.gmra.mxu0 %v3226
    %v3228 = vpop.f32.mrf.mxu0
    %v3229 = vadd.f32 %v3192, %v3228
    %3230 = vdwg.mxu0
    %v3231 = vtanh.pop %v2383
    %v3232 = vtanh.pop %v2661
    %v3233 = vtanh.pop %v2939
    %v3234 = vtanh.pop %v3217
    %v3235 = vtanh.pop %v2387
    %v3236 = vtanh.pop %v2665
    %v3237 = vtanh.pop %v2943
    %v3238 = vtanh.pop %v3221
    %v3239 = vtanh.pop %v2391
    %v3240 = vtanh.pop %v2669
    %v3241 = vtanh.pop %v2947
    %v3242 = vtanh.pop %v3225
    %v3243 = vtanh.pop %v2395
    %v3244 = vtanh.pop %v2673
    %v3245 = vtanh.pop %v2951
    %v3246 = vtanh.pop %v3229
    %v3247 = vld [vmem:[%s5] sm:$0xff]
    %v3248 = vld [vmem:[%s5 + $0x8] sm:$0xff]
    %v3249 = vld [vmem:[%s5 + $0x10] sm:$0xff]
    %v3250 = vld [vmem:[%s5 + $0x18] sm:$0xff]
    %3252 = vset.pattern.permute.xlu0 0
    %3253 = vperm.xlu0 %3252, %v3247
    %v3254 = vpop.permute.xlu0 %3253
    %3257 = vset.pattern.permute.xlu0 0
    %3258 = vperm.xlu0 %3257, %v3248
    %v3259 = vpop.permute.xlu0 %3258
    %3262 = vset.pattern.permute.xlu0 0
    %3263 = vperm.xlu0 %3262, %v3249
    %v3264 = vpop.permute.xlu0 %3263
    %3267 = vset.pattern.permute.xlu0 0
    %3268 = vperm.xlu0 %3267, %v3250
    %v3269 = vpop.permute.xlu0 %3268
    %v3271 = vmul.f32 %v3231, %v3254
    %v3272 = vmul.f32 %v3232, %v3254
    %v3273 = vmul.f32 %v3233, %v3254
    %v3274 = vmul.f32 %v3234, %v3254
    %v3275 = vmul.f32 %v3235, %v3259
    %v3276 = vmul.f32 %v3236, %v3259
    %v3277 = vmul.f32 %v3237, %v3259
    %v3278 = vmul.f32 %v3238, %v3259
    %v3279 = vmul.f32 %v3239, %v3264
    %v3280 = vmul.f32 %v3240, %v3264
    %v3281 = vmul.f32 %v3241, %v3264
    %v3282 = vmul.f32 %v3242, %v3264
    %v3283 = vmul.f32 %v3243, %v3269
    %v3284 = vmul.f32 %v3244, %v3269
    %v3285 = vmul.f32 %v3245, %v3269
    %v3286 = vmul.f32 %v3246, %v3269
    %v3287 = vadd.f32 %v3271, %v3275
    %v3288 = vadd.f32 %v3287, %v3279
    %v3289 = vadd.f32 %v3288, %v3283
    %v3290 = vrot.slane %v3289, 4
    %v3291 = vadd.f32 %v3289, %v3290
    %v3292 = vrot.slane %v3291, 2
    %v3293 = vadd.f32 %v3291, %v3292
    %v3294 = vrot.slane %v3293, 1
    %v3295 = vadd.f32 %v3293, %v3294
    %v3296 = vadd.f32 %v3272, %v3276
    %v3297 = vadd.f32 %v3296, %v3280
    %v3298 = vadd.f32 %v3297, %v3284
    %v3299 = vrot.slane %v3298, 4
    %v3300 = vadd.f32 %v3298, %v3299
    %v3301 = vrot.slane %v3300, 2
    %v3302 = vadd.f32 %v3300, %v3301
    %v3303 = vrot.slane %v3302, 1
    %v3304 = vadd.f32 %v3302, %v3303
    %v3305 = vadd.f32 %v3273, %v3277
    %v3306 = vadd.f32 %v3305, %v3281
    %v3307 = vadd.f32 %v3306, %v3285
    %v3308 = vrot.slane %v3307, 4
    %v3309 = vadd.f32 %v3307, %v3308
    %v3310 = vrot.slane %v3309, 2
    %v3311 = vadd.f32 %v3309, %v3310
    %v3312 = vrot.slane %v3311, 1
    %v3313 = vadd.f32 %v3311, %v3312
    %v3314 = vadd.f32 %v3274, %v3278
    %v3315 = vadd.f32 %v3314, %v3282
    %v3316 = vadd.f32 %v3315, %v3286
    %v3317 = vrot.slane %v3316, 4
    %v3318 = vadd.f32 %v3316, %v3317
    %v3319 = vrot.slane %v3318, 2
    %v3320 = vadd.f32 %v3318, %v3319
    %v3321 = vrot.slane %v3320, 1
    %v3322 = vadd.f32 %v3320, %v3321
    %v3323 = vld [vmem:[#allocation2] sm:$0x1]
    %3325 = vset.pattern.permute.xlu0 0
    %3326 = vperm.xlu0 %3325, %v3323
    %v3327 = vpop.permute.xlu0 %3326
    %v3329 = vperm.slane %v3327, 0
    %v3330 = vadd.f32 %v3295, %v3329
    %v3331 = vadd.f32 %v3304, %v3329
    %v3332 = vadd.f32 %v3313, %v3329
    %v3333 = vadd.f32 %v3322, %v3329
    %v3334 = vmul.f32 %v3330, 1.442695
    %v3335 = vpow.pop %v3334
    %v3336 = vmul.f32 %v3331, 1.442695
    %v3337 = vpow.pop %v3336
    %v3338 = vmul.f32 %v3332, 1.442695
    %v3339 = vpow.pop %v3338
    %v3340 = vmul.f32 %v3333, 1.442695
    %v3341 = vpow.pop %v3340
    %v3346 = vrot.slane %v3337, 7
    %v3347 = vrot.slane %v3339, 6
    %v3348 = vrot.slane %v3341, 5
    %vm3349 = vcmask 1040384
    %v3350 = vsel %vm3349, %v3335, %v3346
    %vm3351 = vcmask 1042434
    %v3352 = vsel %vm3351, %v3347, %v3348
    %vm3353 = vcmask 1041408
    %v3354 = vsel %vm3353, %v3350, %v3352
    %v3356 = vlaneseq
    %vm3357 = vcmp.ge.s32.totalorder %v3356, 0
    %vm3358 = vcmp.lt.s32.totalorder %v3356, 512
    %vm3359 = vmand %vm3357, %vm3358
    %3360 = vst.msk [vmem:[#allocation3] sm:$0xf] %vm3359, %v3354
    // Predicated region
    $region30: #{tpu_custom_call.1} parent=1 // pred_check
      _
    $region31: #{tpu_custom_call.1} parent=1 // pred_check_branch
      %3362 = sbr.rel (0) target = $region33
    $region32: #{tpu_custom_call.1} parent=1 // pred_region
      %3364 = vsyncadd [#allocation4], 0
      %s3366 = sshll.u32 [#allocation3], 4
      %s3367 = int_to_ptr.vmem [resolvable:$true] %s3366
      %s3368 = sshll.u32 %s7, 4
      %s3369 = int_to_ptr.hbm [resolvable:$true] %s3368
      %3371 = dma.vmem_to_hbm [thread:$0]  %s3367, 64, %s3369, [#allocation4]
    $region33: #{tpu_custom_call.1} parent=1 // pred_fallthru
      _
    // Predicated region
    $region34: #{tpu_custom_call.1} parent=1 // pred_check
      _
    $region35: #{tpu_custom_call.1} parent=1 // pred_check_branch
      %3373 = sbr.rel (0) target = $region37
    $region36: #{tpu_custom_call.1} parent=1 // pred_region
      %3375 = dma.done [#allocation4], 64
    $region37: #{tpu_custom_call.1} parent=1 // pred_fallthru
      _
    %3376 = vsyncpa [#allocation4], 1

</llo_original>
